<compile_context>
chip_gen: v6e
topology: v6e:2x2x1
jax: 0.10.0
libtpu: 0.0.40
codegen_flags: <defaults>
</compile_context>

<pallas_src>
import functools

import jax
import jax.numpy as jnp
from jax.experimental import pallas as pl
from jax.experimental.pallas import tpu as pltpu

# ----------------------------- model dimensions -----------------------------
D_GEO, D_EXP, D_APP = 32, 16, 16     # latent code sizes (condition dict)
H_EX, H_ID, H_COL = 64, 64, 64       # hidden widths
D_FEAT = 16                          # geometry feature passed to color head
TILE_N = 1024                        # points per grid step (lane axis), sweepable

# Matmul operand dtype. f32 keeps the 1e-4 check tight everywhere; set to
# jnp.bfloat16 on v6e/v7x for native MXU throughput (relax tolerance ~2e-2).
MATMUL_DTYPE = jnp.float32

PARAM_ORDER = [
    "we0", "be0", "we1", "be1", "we2", "be2",          # deformation MLP
    "wi0", "bi0", "wi1", "bi1",                        # geometry trunk
    "wsdf", "bsdf", "wfeat", "bfeat",                  # sdf / feature heads
    "wc0", "bc0", "wc1", "bc1",                        # color MLP
]


def _softplus(x, beta=100.0):
    # numerically-stable softplus(beta=100), the activation used by NPHM MLPs
    z = beta * x
    return jnp.where(z > 20.0,
                     x,
                     jnp.log(1.0 + jnp.exp(jnp.minimum(z, 20.0))) / beta)


# ------------------------------ kernel helpers -------------------------------
def _matmul(w_ref, x):
    # (out_f, in_f) @ (in_f, TILE_N) -> (out_f, TILE_N), f32 accumulation on MXU.
    return jnp.dot(w_ref[...], x.astype(w_ref.dtype),
                   preferred_element_type=jnp.float32)


def _pos_affine(w3, pos, c):
    # K=3 contraction as rank-1 VPU updates: (H,3) x (3,TN) + (H,1) -> (H,TN).
    return (c
            + w3[:, 0:1] * pos[0:1, :]
            + w3[:, 1:2] * pos[1:2, :]
            + w3[:, 2:3] * pos[2:3, :])


# --------------------------------- kernel -----------------------------------
def _mononphm_kernel(include_color,
                     pos_ref,
                     we0p, ce0, we1, be1, we2, be2,
                     wi0p, ci0, wi1, bi1, wh, bh,
                     *rest):
    if include_color:
        wc0f, cc0, wc1, bc1, out_ref = rest
    else:
        (out_ref,) = rest

    pos = pos_ref[...]                                           # (3, TN)

    # ---- expression / deformation MLP (ex_model) ----
    h = _softplus(_pos_affine(we0p[...], pos, ce0[...]))         # (H_EX, TN)
    h = _softplus(_matmul(we1, h) + be1[...])                    # (H_EX, TN)
    offsets = _matmul(we2, h) + be2[...]                         # (3, TN)
    pos_can = pos + offsets                                      # canonical space

    # ---- identity / geometry MLP (id_model) ----
    g = _softplus(_pos_affine(wi0p[...], pos_can, ci0[...]))     # (H_ID, TN)
    g = _softplus(_matmul(wi1, g) + bi1[...])                    # (H_ID, TN)
    head = _matmul(wh, g) + bh[...]          # rows: [feat(16), sdf] or [sdf]

    if include_color:
        feat = head[:D_FEAT, :]                                  # (D_FEAT, TN)
        sdf = head[D_FEAT:D_FEAT + 1, :]                         # (1, TN)
        hc = _softplus(_matmul(wc0f, feat) + cc0[...])           # (H_COL, TN)
        color = _matmul(wc1, hc) + bc1[...]                      # (3, TN)
        out_ref[...] = jnp.concatenate([sdf, color],
                                       axis=0).astype(out_ref.dtype)
    else:
        out_ref[...] = head.astype(out_ref.dtype)                # (1, TN)


# -------------------------------- wrapper ------------------------------------
def init_params(key):
    """Deterministic synthetic parameters (shapes follow the MLP structure)."""
    shapes = {
        "we0": (3 + D_EXP + D_GEO, H_EX), "be0": (1, H_EX),
        "we1": (H_EX, H_EX),              "be1": (1, H_EX),
        "we2": (H_EX, 3),                 "be2": (1, 3),
        "wi0": (3 + D_GEO, H_ID),         "bi0": (1, H_ID),
        "wi1": (H_ID, H_ID),              "bi1": (1, H_ID),
        "wsdf": (H_ID, 1),                "bsdf": (1, 1),
        "wfeat": (H_ID, D_FEAT),          "bfeat": (1, D_FEAT),
        "wc0": (D_FEAT + D_APP, H_COL),   "bc0": (1, H_COL),
        "wc1": (H_COL, 3),                "bc1": (1, 3),
    }
    params = {}
    keys = jax.random.split(key, len(PARAM_ORDER))
    for k, name in zip(keys, PARAM_ORDER):
        params[name] = 0.1 * jax.random.normal(k, shapes[name], dtype=jnp.float32)
    return params


def _prepare_operands(condition, params, include_color):
    """Transpose weights to (out,in), fold constant latent contributions."""
    geo = condition["geo"].reshape(D_GEO).astype(jnp.float32)
    exp = condition["exp"].reshape(D_EXP).astype(jnp.float32)
    app = condition["app"].reshape(D_APP).astype(jnp.float32)
    p = params
    mm = MATMUL_DTYPE

    # expression MLP, first layer split: pos part (VPU) + folded latent constant
    lat_ex = jnp.concatenate([exp, geo])[:, None]                     # (48, 1)
    we0p = p["we0"][:3, :].T                                          # (H_EX, 3)
    ce0 = p["we0"][3:, :].T @ lat_ex + p["be0"].T                     # (H_EX, 1)
    we1 = p["we1"].T.astype(mm)
    be1 = p["be1"].T
    we2 = p["we2"].T.astype(mm)
    be2 = p["be2"].T

    # identity MLP, first layer split
    wi0p = p["wi0"][:3, :].T                                          # (H_ID, 3)
    ci0 = p["wi0"][3:, :].T @ geo[:, None] + p["bi0"].T               # (H_ID, 1)
    wi1 = p["wi1"].T.astype(mm)
    bi1 = p["bi1"].T

    if include_color:
        # fused [feat, sdf] head: one MXU pass over the shared trunk activations
        wh = jnp.concatenate([p["wfeat"], p["wsdf"]], axis=1).T.astype(mm)
        bh = jnp.concatenate([p["bfeat"], p["bsdf"]], axis=1).T       # (17, 1)
        wc0f = p["wc0"][:D_FEAT, :].T.astype(mm)                      # (H_COL, 16)
        cc0 = p["wc0"][D_FEAT:, :].T @ app[:, None] + p["bc0"].T      # (H_COL, 1)
        wc1 = p["wc1"].T.astype(mm)
        bc1 = p["bc1"].T
        extra = [wc0f, cc0, wc1, bc1]
    else:
        wh = p["wsdf"].T.astype(mm)                                   # (1, H_ID)
        bh = p["bsdf"].T                                              # (1, 1)
        extra = []

    return [we0p, ce0, we1, be1, we2, be2,
            wi0p, ci0, wi1, bi1, wh, bh] + extra


@functools.partial(jax.jit, static_argnames=("include_color",))
def wrap_mononphm_forward(positions, condition, params, include_color=False):
    """Pallas equivalent of WrapMonoNPHM.forward (return_grad unsupported)."""
    if positions.ndim == 3:
        assert positions.shape[0] == 1, "single batch of query points expected"
        positions = positions[0]
    n = positions.shape[0]
    n_pad = -(-n // TILE_N) * TILE_N

    # lane-dense layout: points on lanes, xyz on sublanes
    pos_t = positions.astype(jnp.float32).T                           # (3, N)
    if n_pad != n:
        pos_t = jnp.pad(pos_t, ((0, 0), (0, n_pad - n)))

    consts = _prepare_operands(condition, params, include_color)
    out_dim = 4 if include_color else 1

    in_specs = [pl.BlockSpec((3, TILE_N), lambda i: (0, i))]          # positions
    in_specs += [pl.BlockSpec(c.shape, lambda i: (0, 0)) for c in consts]

    out_t = pl.pallas_call(
        functools.partial(_mononphm_kernel, include_color),
        grid=(n_pad // TILE_N,),
        in_specs=in_specs,
        out_specs=pl.BlockSpec((out_dim, TILE_N), lambda i: (0, i)),
        out_shape=jax.ShapeDtypeStruct((out_dim, n_pad), jnp.float32),
        compiler_params=pltpu.CompilerParams(
            dimension_semantics=("parallel",)),
    )(pos_t, *consts)

    # drop padding, back to (N, out_dim) to match the torch module's output
    return out_t[:, :n].T


# ------------------------------ pure-JAX reference ---------------------------
def _reference(positions, condition, params, include_color):
    if positions.ndim == 2:
        positions = positions[None]
    pos = positions[0]
    n = pos.shape[0]
    geo = jnp.broadcast_to(condition["geo"].reshape(1, D_GEO), (n, D_GEO))
    exp = jnp.broadcast_to(condition["exp"].reshape(1, D_EXP), (n, D_EXP))
    p = params
    x = jnp.concatenate([pos, exp, geo], -1)
    h = _softplus(x @ p["we0"] + p["be0"])
    h = _softplus(h @ p["we1"] + p["be1"])
    pos_can = pos + (h @ p["we2"] + p["be2"])
    xi = jnp.concatenate([pos_can, geo], -1)
    h = _softplus(xi @ p["wi0"] + p["bi0"])
    h = _softplus(h @ p["wi1"] + p["bi1"])
    sdf = h @ p["wsdf"] + p["bsdf"]
    if not include_color:
        return sdf
    feat = h @ p["wfeat"] + p["bfeat"]
    app = jnp.broadcast_to(condition["app"].reshape(1, D_APP), (n, D_APP))
    xc = jnp.concatenate([feat, app], -1)
    hc = _softplus(xc @ p["wc0"] + p["bc0"])
    color = hc @ p["wc1"] + p["bc1"]
    return jnp.concatenate([sdf, color], -1)


# ---------------------------------- main -------------------------------------
if __name__ == "__main__":
    key = jax.random.PRNGKey(0)
    k_pos, k_geo, k_exp, k_app, k_par, k_pos2 = jax.random.split(key, 6)

    n_points = 4096                         # grid of 4 tiles (v7x megacore-friendly)
    positions = jax.random.normal(k_pos, (n_points, 3), dtype=jnp.float32)
    condition = {
        "geo": jax.random.normal(k_geo, (1, 1, D_GEO), dtype=jnp.float32),
        "exp": jax.random.normal(k_exp, (1, 1, D_EXP), dtype=jnp.float32),
        "app": jax.random.normal(k_app, (1, 1, D_APP), dtype=jnp.float32),
    }
    params = init_params(k_par)

    # include_color=False -> (N, 1) sdf
    sdf = wrap_mononphm_forward(positions, condition, params,
                                include_color=False)
    jax.block_until_ready(sdf)
    assert sdf.shape == (n_points, 1)

    # include_color=True -> (N, 4) [sdf, rgb]
    sdf_color = wrap_mononphm_forward(positions, condition, params,
                                      include_color=True)
    jax.block_until_ready(sdf_color)
    assert sdf_color.shape == (n_points, 4)

    # correctness vs pure-JAX reference
    ref0 = _reference(positions, condition, params, include_color=False)
    ref1 = _reference(positions, condition, params, include_color=True)
    assert jnp.max(jnp.abs(sdf - ref0)) < 1e-4
    assert jnp.max(jnp.abs(sdf_color - ref1)) < 1e-4

    # ragged point count (exercises the padding path, N not multiple of TILE_N)
    n2 = 777
    pos2 = jax.random.normal(k_pos2, (n2, 3), dtype=jnp.float32)
    out2 = wrap_mononphm_forward(pos2, condition, params, include_color=True)
    jax.block_until_ready(out2)
    assert out2.shape == (n2, 4)
    ref2 = _reference(pos2, condition, params, include_color=True)
    assert jnp.max(jnp.abs(out2 - ref2)) < 1e-4

    print("KERNEL_OK")
</pallas_src>

<mosaic_0001>
module attributes {stable_mosaic.version = 11 : i64} {
  func.func @_mononphm_kernel(%arg0: i32, %arg1: memref<3x1024xf32, #tpu.memory_space<vmem>>, %arg2: memref<64x3xf32, #tpu.memory_space<vmem>>, %arg3: memref<64x1xf32, #tpu.memory_space<vmem>>, %arg4: memref<64x64xf32, #tpu.memory_space<vmem>>, %arg5: memref<64x1xf32, #tpu.memory_space<vmem>>, %arg6: memref<3x64xf32, #tpu.memory_space<vmem>>, %arg7: memref<3x1xf32, #tpu.memory_space<vmem>>, %arg8: memref<64x3xf32, #tpu.memory_space<vmem>>, %arg9: memref<64x1xf32, #tpu.memory_space<vmem>>, %arg10: memref<64x64xf32, #tpu.memory_space<vmem>>, %arg11: memref<64x1xf32, #tpu.memory_space<vmem>>, %arg12: memref<1x64xf32, #tpu.memory_space<vmem>>, %arg13: memref<1x1xf32, #tpu.memory_space<vmem>>, %arg14: memref<1x1024xf32, #tpu.memory_space<vmem>>) attributes {dimension_semantics = [#tpu.dimension_semantics<parallel>], iteration_bounds = array<i64: 4>, scalar_prefetch = 0 : i64, scratch_operands = 0 : i64, tpu.core_type = #tpu.core_type<tc>, window_params = [{transform_indices = @transform_0, window_bounds = array<i64: 3, 1024>}, {pipeline_mode = #tpu.pipeline_mode<synchronous>, transform_indices = @transform_1, window_bounds = array<i64: 64, 3>}, {pipeline_mode = #tpu.pipeline_mode<synchronous>, transform_indices = @transform_2, window_bounds = array<i64: 64, 1>}, {pipeline_mode = #tpu.pipeline_mode<synchronous>, transform_indices = @transform_3, window_bounds = array<i64: 64, 64>}, {pipeline_mode = #tpu.pipeline_mode<synchronous>, transform_indices = @transform_4, window_bounds = array<i64: 64, 1>}, {pipeline_mode = #tpu.pipeline_mode<synchronous>, transform_indices = @transform_5, window_bounds = array<i64: 3, 64>}, {pipeline_mode = #tpu.pipeline_mode<synchronous>, transform_indices = @transform_6, window_bounds = array<i64: 3, 1>}, {pipeline_mode = #tpu.pipeline_mode<synchronous>, transform_indices = @transform_7, window_bounds = array<i64: 64, 3>}, {pipeline_mode = #tpu.pipeline_mode<synchronous>, transform_indices = @transform_8, window_bounds = array<i64: 64, 1>}, {pipeline_mode = #tpu.pipeline_mode<synchronous>, transform_indices = @transform_9, window_bounds = array<i64: 64, 64>}, {pipeline_mode = #tpu.pipeline_mode<synchronous>, transform_indices = @transform_10, window_bounds = array<i64: 64, 1>}, {pipeline_mode = #tpu.pipeline_mode<synchronous>, transform_indices = @transform_11, window_bounds = array<i64: 1, 64>}, {pipeline_mode = #tpu.pipeline_mode<synchronous>, transform_indices = @transform_12, window_bounds = array<i64: 1, 1>}, {transform_indices = @transform_13, window_bounds = array<i64: 1, 1024>}]} {
    %c0 = arith.constant 0 : index
    %c0_0 = arith.constant 0 : index
    %0 = vector.load %arg1[%c0, %c0_0] : memref<3x1024xf32, #tpu.memory_space<vmem>>, vector<3x1024xf32>
    %c0_1 = arith.constant 0 : index
    %c0_2 = arith.constant 0 : index
    %1 = vector.load %arg2[%c0_1, %c0_2] : memref<64x3xf32, #tpu.memory_space<vmem>>, vector<64x3xf32>
    %c0_3 = arith.constant 0 : index
    %c0_4 = arith.constant 0 : index
    %2 = vector.load %arg3[%c0_3, %c0_4] : memref<64x1xf32, #tpu.memory_space<vmem>>, vector<64x1xf32>
    %3 = vector.extract_strided_slice %1 {offsets = [0, 0], sizes = [64, 1], strides = [1, 1]} : vector<64x3xf32> to vector<64x1xf32>
    %4 = vector.extract_strided_slice %0 {offsets = [0, 0], sizes = [1, 1024], strides = [1, 1]} : vector<3x1024xf32> to vector<1x1024xf32>
    %5 = vector.broadcast %3 : vector<64x1xf32> to vector<64x1024xf32>
    %6 = vector.broadcast %4 : vector<1x1024xf32> to vector<64x1024xf32>
    %7 = arith.mulf %5, %6 : vector<64x1024xf32>
    %8 = vector.broadcast %2 : vector<64x1xf32> to vector<64x1024xf32>
    %9 = arith.addf %8, %7 : vector<64x1024xf32>
    %10 = vector.extract_strided_slice %1 {offsets = [0, 1], sizes = [64, 1], strides = [1, 1]} : vector<64x3xf32> to vector<64x1xf32>
    %11 = vector.extract_strided_slice %0 {offsets = [1, 0], sizes = [1, 1024], strides = [1, 1]} : vector<3x1024xf32> to vector<1x1024xf32>
    %12 = vector.broadcast %10 : vector<64x1xf32> to vector<64x1024xf32>
    %13 = vector.broadcast %11 : vector<1x1024xf32> to vector<64x1024xf32>
    %14 = arith.mulf %12, %13 : vector<64x1024xf32>
    %15 = arith.addf %9, %14 : vector<64x1024xf32>
    %16 = vector.extract_strided_slice %1 {offsets = [0, 2], sizes = [64, 1], strides = [1, 1]} : vector<64x3xf32> to vector<64x1xf32>
    %17 = vector.extract_strided_slice %0 {offsets = [2, 0], sizes = [1, 1024], strides = [1, 1]} : vector<3x1024xf32> to vector<1x1024xf32>
    %18 = vector.broadcast %16 : vector<64x1xf32> to vector<64x1024xf32>
    %19 = vector.broadcast %17 : vector<1x1024xf32> to vector<64x1024xf32>
    %20 = arith.mulf %18, %19 : vector<64x1024xf32>
    %21 = arith.addf %15, %20 : vector<64x1024xf32>
    %cst = arith.constant 1.000000e+02 : f32
    %22 = vector.broadcast %cst : f32 to vector<64x1024xf32>
    %23 = arith.mulf %22, %21 : vector<64x1024xf32>
    %cst_5 = arith.constant 2.000000e+01 : f32
    %24 = vector.broadcast %cst_5 : f32 to vector<64x1024xf32>
    %25 = arith.cmpf ogt, %23, %24 : vector<64x1024xf32>
    %cst_6 = arith.constant 2.000000e+01 : f32
    %26 = vector.broadcast %cst_6 : f32 to vector<64x1024xf32>
    %27 = arith.minimumf %23, %26 : vector<64x1024xf32>
    %28 = math.exp %27 : vector<64x1024xf32>
    %cst_7 = arith.constant 1.000000e+00 : f32
    %29 = vector.broadcast %cst_7 : f32 to vector<64x1024xf32>
    %30 = arith.addf %29, %28 : vector<64x1024xf32>
    %31 = math.log %30 : vector<64x1024xf32>
    %cst_8 = arith.constant 1.000000e+02 : f32
    %32 = vector.broadcast %cst_8 : f32 to vector<64x1024xf32>
    %33 = arith.divf %31, %32 : vector<64x1024xf32>
    %34 = arith.select %25, %21, %33 : vector<64x1024xi1>, vector<64x1024xf32>
    %c0_9 = arith.constant 0 : index
    %c0_10 = arith.constant 0 : index
    %35 = vector.load %arg4[%c0_9, %c0_10] : memref<64x64xf32, #tpu.memory_space<vmem>>, vector<64x64xf32>
    %cst_11 = arith.constant dense<0.000000e+00> : vector<64x1024xf32>
    %36 = tpu.matmul %35, %34, %cst_11 {dimension_numbers = #tpu.dot_dimension_numbers<[1], [0], [0], [1], [0, 0, 1, 1], [], []>} : vector<64x64xf32>, vector<64x1024xf32>, vector<64x1024xf32> -> vector<64x1024xf32>
    %c0_12 = arith.constant 0 : index
    %c0_13 = arith.constant 0 : index
    %37 = vector.load %arg5[%c0_12, %c0_13] : memref<64x1xf32, #tpu.memory_space<vmem>>, vector<64x1xf32>
    %38 = vector.broadcast %37 : vector<64x1xf32> to vector<64x1024xf32>
    %39 = arith.addf %36, %38 : vector<64x1024xf32>
    %cst_14 = arith.constant 1.000000e+02 : f32
    %40 = vector.broadcast %cst_14 : f32 to vector<64x1024xf32>
    %41 = arith.mulf %40, %39 : vector<64x1024xf32>
    %cst_15 = arith.constant 2.000000e+01 : f32
    %42 = vector.broadcast %cst_15 : f32 to vector<64x1024xf32>
    %43 = arith.cmpf ogt, %41, %42 : vector<64x1024xf32>
    %cst_16 = arith.constant 2.000000e+01 : f32
    %44 = vector.broadcast %cst_16 : f32 to vector<64x1024xf32>
    %45 = arith.minimumf %41, %44 : vector<64x1024xf32>
    %46 = math.exp %45 : vector<64x1024xf32>
    %cst_17 = arith.constant 1.000000e+00 : f32
    %47 = vector.broadcast %cst_17 : f32 to vector<64x1024xf32>
    %48 = arith.addf %47, %46 : vector<64x1024xf32>
    %49 = math.log %48 : vector<64x1024xf32>
    %cst_18 = arith.constant 1.000000e+02 : f32
    %50 = vector.broadcast %cst_18 : f32 to vector<64x1024xf32>
    %51 = arith.divf %49, %50 : vector<64x1024xf32>
    %52 = arith.select %43, %39, %51 : vector<64x1024xi1>, vector<64x1024xf32>
    %c0_19 = arith.constant 0 : index
    %c0_20 = arith.constant 0 : index
    %53 = vector.load %arg6[%c0_19, %c0_20] : memref<3x64xf32, #tpu.memory_space<vmem>>, vector<3x64xf32>
    %cst_21 = arith.constant dense<0.000000e+00> : vector<3x1024xf32>
    %54 = tpu.matmul %53, %52, %cst_21 {dimension_numbers = #tpu.dot_dimension_numbers<[1], [0], [0], [1], [0, 0, 1, 1], [], []>} : vector<3x64xf32>, vector<64x1024xf32>, vector<3x1024xf32> -> vector<3x1024xf32>
    %c0_22 = arith.constant 0 : index
    %c0_23 = arith.constant 0 : index
    %55 = vector.load %arg7[%c0_22, %c0_23] : memref<3x1xf32, #tpu.memory_space<vmem>>, vector<3x1xf32>
    %56 = vector.broadcast %55 : vector<3x1xf32> to vector<3x1024xf32>
    %57 = arith.addf %54, %56 : vector<3x1024xf32>
    %58 = arith.addf %0, %57 : vector<3x1024xf32>
    %c0_24 = arith.constant 0 : index
    %c0_25 = arith.constant 0 : index
    %59 = vector.load %arg8[%c0_24, %c0_25] : memref<64x3xf32, #tpu.memory_space<vmem>>, vector<64x3xf32>
    %c0_26 = arith.constant 0 : index
    %c0_27 = arith.constant 0 : index
    %60 = vector.load %arg9[%c0_26, %c0_27] : memref<64x1xf32, #tpu.memory_space<vmem>>, vector<64x1xf32>
    %61 = vector.extract_strided_slice %59 {offsets = [0, 0], sizes = [64, 1], strides = [1, 1]} : vector<64x3xf32> to vector<64x1xf32>
    %62 = vector.extract_strided_slice %58 {offsets = [0, 0], sizes = [1, 1024], strides = [1, 1]} : vector<3x1024xf32> to vector<1x1024xf32>
    %63 = vector.broadcast %61 : vector<64x1xf32> to vector<64x1024xf32>
    %64 = vector.broadcast %62 : vector<1x1024xf32> to vector<64x1024xf32>
    %65 = arith.mulf %63, %64 : vector<64x1024xf32>
    %66 = vector.broadcast %60 : vector<64x1xf32> to vector<64x1024xf32>
    %67 = arith.addf %66, %65 : vector<64x1024xf32>
    %68 = vector.extract_strided_slice %59 {offsets = [0, 1], sizes = [64, 1], strides = [1, 1]} : vector<64x3xf32> to vector<64x1xf32>
    %69 = vector.extract_strided_slice %58 {offsets = [1, 0], sizes = [1, 1024], strides = [1, 1]} : vector<3x1024xf32> to vector<1x1024xf32>
    %70 = vector.broadcast %68 : vector<64x1xf32> to vector<64x1024xf32>
    %71 = vector.broadcast %69 : vector<1x1024xf32> to vector<64x1024xf32>
    %72 = arith.mulf %70, %71 : vector<64x1024xf32>
    %73 = arith.addf %67, %72 : vector<64x1024xf32>
    %74 = vector.extract_strided_slice %59 {offsets = [0, 2], sizes = [64, 1], strides = [1, 1]} : vector<64x3xf32> to vector<64x1xf32>
    %75 = vector.extract_strided_slice %58 {offsets = [2, 0], sizes = [1, 1024], strides = [1, 1]} : vector<3x1024xf32> to vector<1x1024xf32>
    %76 = vector.broadcast %74 : vector<64x1xf32> to vector<64x1024xf32>
    %77 = vector.broadcast %75 : vector<1x1024xf32> to vector<64x1024xf32>
    %78 = arith.mulf %76, %77 : vector<64x1024xf32>
    %79 = arith.addf %73, %78 : vector<64x1024xf32>
    %cst_28 = arith.constant 1.000000e+02 : f32
    %80 = vector.broadcast %cst_28 : f32 to vector<64x1024xf32>
    %81 = arith.mulf %80, %79 : vector<64x1024xf32>
    %cst_29 = arith.constant 2.000000e+01 : f32
    %82 = vector.broadcast %cst_29 : f32 to vector<64x1024xf32>
    %83 = arith.cmpf ogt, %81, %82 : vector<64x1024xf32>
    %cst_30 = arith.constant 2.000000e+01 : f32
    %84 = vector.broadcast %cst_30 : f32 to vector<64x1024xf32>
    %85 = arith.minimumf %81, %84 : vector<64x1024xf32>
    %86 = math.exp %85 : vector<64x1024xf32>
    %cst_31 = arith.constant 1.000000e+00 : f32
    %87 = vector.broadcast %cst_31 : f32 to vector<64x1024xf32>
    %88 = arith.addf %87, %86 : vector<64x1024xf32>
    %89 = math.log %88 : vector<64x1024xf32>
    %cst_32 = arith.constant 1.000000e+02 : f32
    %90 = vector.broadcast %cst_32 : f32 to vector<64x1024xf32>
    %91 = arith.divf %89, %90 : vector<64x1024xf32>
    %92 = arith.select %83, %79, %91 : vector<64x1024xi1>, vector<64x1024xf32>
    %c0_33 = arith.constant 0 : index
    %c0_34 = arith.constant 0 : index
    %93 = vector.load %arg10[%c0_33, %c0_34] : memref<64x64xf32, #tpu.memory_space<vmem>>, vector<64x64xf32>
    %cst_35 = arith.constant dense<0.000000e+00> : vector<64x1024xf32>
    %94 = tpu.matmul %93, %92, %cst_35 {dimension_numbers = #tpu.dot_dimension_numbers<[1], [0], [0], [1], [0, 0, 1, 1], [], []>} : vector<64x64xf32>, vector<64x1024xf32>, vector<64x1024xf32> -> vector<64x1024xf32>
    %c0_36 = arith.constant 0 : index
    %c0_37 = arith.constant 0 : index
    %95 = vector.load %arg11[%c0_36, %c0_37] : memref<64x1xf32, #tpu.memory_space<vmem>>, vector<64x1xf32>
    %96 = vector.broadcast %95 : vector<64x1xf32> to vector<64x1024xf32>
    %97 = arith.addf %94, %96 : vector<64x1024xf32>
    %cst_38 = arith.constant 1.000000e+02 : f32
    %98 = vector.broadcast %cst_38 : f32 to vector<64x1024xf32>
    %99 = arith.mulf %98, %97 : vector<64x1024xf32>
    %cst_39 = arith.constant 2.000000e+01 : f32
    %100 = vector.broadcast %cst_39 : f32 to vector<64x1024xf32>
    %101 = arith.cmpf ogt, %99, %100 : vector<64x1024xf32>
    %cst_40 = arith.constant 2.000000e+01 : f32
    %102 = vector.broadcast %cst_40 : f32 to vector<64x1024xf32>
    %103 = arith.minimumf %99, %102 : vector<64x1024xf32>
    %104 = math.exp %103 : vector<64x1024xf32>
    %cst_41 = arith.constant 1.000000e+00 : f32
    %105 = vector.broadcast %cst_41 : f32 to vector<64x1024xf32>
    %106 = arith.addf %105, %104 : vector<64x1024xf32>
    %107 = math.log %106 : vector<64x1024xf32>
    %cst_42 = arith.constant 1.000000e+02 : f32
    %108 = vector.broadcast %cst_42 : f32 to vector<64x1024xf32>
    %109 = arith.divf %107, %108 : vector<64x1024xf32>
    %110 = arith.select %101, %97, %109 : vector<64x1024xi1>, vector<64x1024xf32>
    %c0_43 = arith.constant 0 : index
    %c0_44 = arith.constant 0 : index
    %111 = vector.load %arg12[%c0_43, %c0_44] : memref<1x64xf32, #tpu.memory_space<vmem>>, vector<1x64xf32>
    %cst_45 = arith.constant dense<0.000000e+00> : vector<1x1024xf32>
    %112 = tpu.matmul %111, %110, %cst_45 {dimension_numbers = #tpu.dot_dimension_numbers<[1], [0], [0], [1], [0, 0, 1, 1], [], []>} : vector<1x64xf32>, vector<64x1024xf32>, vector<1x1024xf32> -> vector<1x1024xf32>
    %c0_46 = arith.constant 0 : index
    %c0_47 = arith.constant 0 : index
    %113 = vector.load %arg13[%c0_46, %c0_47] : memref<1x1xf32, #tpu.memory_space<vmem>>, vector<1x1xf32>
    %114 = vector.broadcast %113 : vector<1x1xf32> to vector<1x1024xf32>
    %115 = arith.addf %112, %114 : vector<1x1024xf32>
    %c0_48 = arith.constant 0 : index
    %c0_49 = arith.constant 0 : index
    %116 = vector.load %arg14[%c0_48, %c0_49] : memref<1x1024xf32, #tpu.memory_space<vmem>>, vector<1x1024xf32>
    tpu.vector_store %arg14[%c0_48, %c0_49], %115 {strides = array<i32>} : memref<1x1024xf32, #tpu.memory_space<vmem>>, vector<1x1024xf32>,
    return
  }
  func.func @transform_0(%arg0: i32) -> (i32, i32) {
    %c0_i32 = arith.constant 0 : i32
    %c0_i32_0 = arith.constant 0 : i32
    return %c0_i32, %arg0 : i32, i32
  }
  func.func @transform_1(%arg0: i32) -> (i32, i32) {
    %c0_i32 = arith.constant 0 : i32
    %c0_i32_0 = arith.constant 0 : i32
    %c0_i32_1 = arith.constant 0 : i32
    return %c0_i32, %c0_i32_0 : i32, i32
  }
  func.func @transform_2(%arg0: i32) -> (i32, i32) {
    %c0_i32 = arith.constant 0 : i32
    %c0_i32_0 = arith.constant 0 : i32
    %c0_i32_1 = arith.constant 0 : i32
    return %c0_i32, %c0_i32_0 : i32, i32
  }
  func.func @transform_3(%arg0: i32) -> (i32, i32) {
    %c0_i32 = arith.constant 0 : i32
    %c0_i32_0 = arith.constant 0 : i32
    %c0_i32_1 = arith.constant 0 : i32
    return %c0_i32, %c0_i32_0 : i32, i32
  }
  func.func @transform_4(%arg0: i32) -> (i32, i32) {
    %c0_i32 = arith.constant 0 : i32
    %c0_i32_0 = arith.constant 0 : i32
    %c0_i32_1 = arith.constant 0 : i32
    return %c0_i32, %c0_i32_0 : i32, i32
  }
  func.func @transform_5(%arg0: i32) -> (i32, i32) {
    %c0_i32 = arith.constant 0 : i32
    %c0_i32_0 = arith.constant 0 : i32
    %c0_i32_1 = arith.constant 0 : i32
    return %c0_i32, %c0_i32_0 : i32, i32
  }
  func.func @transform_6(%arg0: i32) -> (i32, i32) {
    %c0_i32 = arith.constant 0 : i32
    %c0_i32_0 = arith.constant 0 : i32
    %c0_i32_1 = arith.constant 0 : i32
    return %c0_i32, %c0_i32_0 : i32, i32
  }
  func.func @transform_7(%arg0: i32) -> (i32, i32) {
    %c0_i32 = arith.constant 0 : i32
    %c0_i32_0 = arith.constant 0 : i32
    %c0_i32_1 = arith.constant 0 : i32
    return %c0_i32, %c0_i32_0 : i32, i32
  }
  func.func @transform_8(%arg0: i32) -> (i32, i32) {
    %c0_i32 = arith.constant 0 : i32
    %c0_i32_0 = arith.constant 0 : i32
    %c0_i32_1 = arith.constant 0 : i32
    return %c0_i32, %c0_i32_0 : i32, i32
  }
  func.func @transform_9(%arg0: i32) -> (i32, i32) {
    %c0_i32 = arith.constant 0 : i32
    %c0_i32_0 = arith.constant 0 : i32
    %c0_i32_1 = arith.constant 0 : i32
    return %c0_i32, %c0_i32_0 : i32, i32
  }
  func.func @transform_10(%arg0: i32) -> (i32, i32) {
    %c0_i32 = arith.constant 0 : i32
    %c0_i32_0 = arith.constant 0 : i32
    %c0_i32_1 = arith.constant 0 : i32
    return %c0_i32, %c0_i32_0 : i32, i32
  }
  func.func @transform_11(%arg0: i32) -> (i32, i32) {
    %c0_i32 = arith.constant 0 : i32
    %c0_i32_0 = arith.constant 0 : i32
    %c0_i32_1 = arith.constant 0 : i32
    return %c0_i32, %c0_i32_0 : i32, i32
  }
  func.func @transform_12(%arg0: i32) -> (i32, i32) {
    %c0_i32 = arith.constant 0 : i32
    %c0_i32_0 = arith.constant 0 : i32
    %c0_i32_1 = arith.constant 0 : i32
    return %c0_i32, %c0_i32_0 : i32, i32
  }
  func.func @transform_13(%arg0: i32) -> (i32, i32) {
    %c0_i32 = arith.constant 0 : i32
    %c0_i32_0 = arith.constant 0 : i32
    return %c0_i32, %arg0 : i32, i32
  }
}

</mosaic_0001>

<llo_original>
// kernel: wrap_mononphm_forward.1
$region0: #{wrap_mononphm_forward.1}
  #allocation0 [shape = 'u32[]', space=smem, size = 0x4, offset = 0x4, fixed_abs, tag = 'smem constant byte address 0x4 - core index']
  #allocation1 [shape = 'u32[144,128]{1,0:T(1,128)}', space=vmem, size = 0x12000, scoped, tag = 'internal scratch']
  #allocation2 [shape = 'f32[1,1]{1,0:T(1,128)S(1)}', space=vmem, size = 0x200, scoped, tag = 'scoped memory for wrap_mononphm_forward.1']
  %s0 = inlined_call_operand.vmem [shape: f32[3,4096], index: 0, kind: input, shape index: {}]
  %s1 = inlined_call_operand.vmem [shape: f32[64,3], index: 1, kind: input, shape index: {}]
  %s2 = inlined_call_operand.vmem [shape: f32[64,1], index: 2, kind: input, shape index: {}]
  %s3 = inlined_call_operand.vmem [shape: f32[64,64], index: 3, kind: input, shape index: {}]
  %s4 = inlined_call_operand.vmem [shape: f32[64,1], index: 4, kind: input, shape index: {}]
  %s5 = inlined_call_operand.vmem [shape: f32[3,64], index: 5, kind: input, shape index: {}]
  %s6 = inlined_call_operand.vmem [shape: f32[3,1], index: 6, kind: input, shape index: {}]
  %s7 = inlined_call_operand.vmem [shape: f32[64,3], index: 7, kind: input, shape index: {}]
  %s8 = inlined_call_operand.vmem [shape: f32[64,1], index: 8, kind: input, shape index: {}]
  %s9 = inlined_call_operand.vmem [shape: f32[64,64], index: 9, kind: input, shape index: {}]
  %s10 = inlined_call_operand.vmem [shape: f32[64,1], index: 10, kind: input, shape index: {}]
  %s11 = inlined_call_operand.vmem [shape: f32[1,64], index: 11, kind: input, shape index: {}]
  %s12 = inlined_call_operand.<no memory space> [shape: f32[1,1], index: 12, kind: input, shape index: {}]
  %s13 = inlined_call_operand.hbm [shape: f32[1,4096], index: 13, kind: output, shape index: {}]
  %s14 = sld [smem:[#allocation0]]
  $region85: #{wrap_mononphm_forward.1} parent=0
    _
  %s16 = ssub.s32 1, %s14
  %s17 = scalar_select 0, %s16, %s14
  %v18 = vstv %s12
  %19 = vst [vmem:[#allocation2] sm:$0x1] %v18
  $region1: #{wrap_mononphm_forward.1} parent=0
    #allocation3 [shape = 'u8[8192]{0}', space=vmem, size = 0x2000, scoped, tag = 'output window, operand 0']
    #allocation4 [shape = 's32[2]{0}', space=sflag, size = 0x8, scoped, tag = 'scoped memory for wrap_mononphm_forward.1']
    %20 = vsyncpa [#allocation4], 0
    %s21 = scalar_lea.sflag [#allocation4], 1
    %22 = vsyncpa %s21, 0
    loop: start=0, step=1, limit=6
    $region2: #{wrap_mononphm_forward.1} parent=1 // loop_pre_header
      _
    $region3: #{wrap_mononphm_forward.1} parent=1 // loop_header
      %s24 = sphi 0, %s28
      %p25 = scmp.ge.s32.totalorder %s24, 6
      %s34 = sphi 0, %s36
      %s37 = sphi 0, %s34
      %s38 = sphi 0, %s37
      %s54 = sphi 0, %s38
      %s58 = sphi 0, %s58
      %s60 = sphi 0, %s58
      %s61 = sphi 0, %s60
      %s75 = sphi 0, %s61
      %s79 = sphi 0, %s79
      %s81 = sphi 0, %s79
      %s82 = sphi 0, %s81
      %s96 = sphi 0, %s82
      %s100 = sphi 0, %s100
      %s102 = sphi 0, %s100
      %s103 = sphi 0, %s102
      %s117 = sphi 0, %s103
      %s121 = sphi 0, %s121
      %s123 = sphi 0, %s121
      %s124 = sphi 0, %s123
      %s138 = sphi 0, %s124
      %s142 = sphi 0, %s142
      %s144 = sphi 0, %s142
      %s145 = sphi 0, %s144
      %s159 = sphi 0, %s145
      %s163 = sphi 0, %s163
      %s165 = sphi 0, %s163
      %s166 = sphi 0, %s165
      %s180 = sphi 0, %s166
      %s184 = sphi 0, %s184
      %s186 = sphi 0, %s184
      %s187 = sphi 0, %s186
      %s201 = sphi 0, %s187
      %s205 = sphi 0, %s205
      %s207 = sphi 0, %s205
      %s208 = sphi 0, %s207
      %s222 = sphi 0, %s208
      %s226 = sphi 0, %s226
      %s228 = sphi 0, %s226
      %s229 = sphi 0, %s228
      %s243 = sphi 0, %s229
      %s247 = sphi 0, %s247
      %s249 = sphi 0, %s247
      %s250 = sphi 0, %s249
      %s264 = sphi 0, %s250
      %s268 = sphi 0, %s268
      %s270 = sphi 0, %s268
      %s271 = sphi 0, %s270
      %s285 = sphi 0, %s271
      %s289 = sphi 0, %s289
      %s291 = sphi 0, %s289
      %s292 = sphi 0, %s291
      %s306 = sphi 0, %s292
      %s312 = sphi 0, %s314
      %s315 = sphi 0, %s312
      %s316 = sphi 0, %s315
      %s332 = sphi 0, %s316
    $region4: #{wrap_mononphm_forward.1} parent=1 // loop_header_branch
      %27 = sbr.rel (%p25) target = $region8
    $region5: #{wrap_mononphm_forward.1} parent=1 // loop_body
      %s29 = ssub.s32 %s24, 1
      %s30 = ssub.s32 %s24, 2
      %s31 = sadd.s32 %s24, 1
      %s32 = ssub.s32 %s24, %s31
      %p33 = scmp.eq.s32.totalorder %s32, 0
      %s35 = sadd.s32 %s34, 1
      %s36 = scalar_select %p33, %s34, %s35
      %p39 = pneg %p33
      %p40 = scmp.eq.s32.totalorder %s24, 3
      %p41 = por %p39, %p40
      %p42 = scmp.ne.s32.totalorder %s34, %s37
      %p43 = scmp.eq.s32.totalorder %s24, 0
      %p44 = por %p42, %p43
      %p45 = scmp.ne.s32.totalorder %s34, %s37
      %p46 = scmp.eq.s32.totalorder %s29, 3
      %p47 = por %p45, %p46
      %p48 = scmp.ne.s32.totalorder %s37, %s38
      %p49 = scmp.eq.s32.totalorder %s29, 0
      %p50 = por %p48, %p49
      %p51 = scmp.ne.s32.totalorder %s37, %s38
      %p52 = scmp.eq.s32.totalorder %s30, 3
      %p53 = por %p51, %p52
      %p55 = scmp.ne.s32.totalorder %s38, %s54
      %p56 = scmp.eq.s32.totalorder %s30, 0
      %p57 = por %p55, %p56
      %s59 = sadd.s32 %s58, 1
      %p62 = scmp.eq.s32.totalorder %s24, 3
      %p63 = scmp.ne.s32.totalorder %s58, %s60
      %p64 = scmp.eq.s32.totalorder %s24, 0
      %p65 = por %p63, %p64
      %p66 = scmp.ne.s32.totalorder %s58, %s60
      %p67 = scmp.eq.s32.totalorder %s29, 3
      %p68 = por %p66, %p67
      %p69 = scmp.ne.s32.totalorder %s60, %s61
      %p70 = scmp.eq.s32.totalorder %s29, 0
      %p71 = por %p69, %p70
      %p72 = scmp.ne.s32.totalorder %s60, %s61
      %p73 = scmp.eq.s32.totalorder %s30, 3
      %p74 = por %p72, %p73
      %p76 = scmp.ne.s32.totalorder %s61, %s75
      %p77 = scmp.eq.s32.totalorder %s30, 0
      %p78 = por %p76, %p77
      %s80 = sadd.s32 %s79, 1
      %p83 = scmp.eq.s32.totalorder %s24, 3
      %p84 = scmp.ne.s32.totalorder %s79, %s81
      %p85 = scmp.eq.s32.totalorder %s24, 0
      %p86 = por %p84, %p85
      %p87 = scmp.ne.s32.totalorder %s79, %s81
      %p88 = scmp.eq.s32.totalorder %s29, 3
      %p89 = por %p87, %p88
      %p90 = scmp.ne.s32.totalorder %s81, %s82
      %p91 = scmp.eq.s32.totalorder %s29, 0
      %p92 = por %p90, %p91
      %p93 = scmp.ne.s32.totalorder %s81, %s82
      %p94 = scmp.eq.s32.totalorder %s30, 3
      %p95 = por %p93, %p94
      %p97 = scmp.ne.s32.totalorder %s82, %s96
      %p98 = scmp.eq.s32.totalorder %s30, 0
      %p99 = por %p97, %p98
      %s101 = sadd.s32 %s100, 1
      %p104 = scmp.eq.s32.totalorder %s24, 3
      %p105 = scmp.ne.s32.totalorder %s100, %s102
      %p106 = scmp.eq.s32.totalorder %s24, 0
      %p107 = por %p105, %p106
      %p108 = scmp.ne.s32.totalorder %s100, %s102
      %p109 = scmp.eq.s32.totalorder %s29, 3
      %p110 = por %p108, %p109
      %p111 = scmp.ne.s32.totalorder %s102, %s103
      %p112 = scmp.eq.s32.totalorder %s29, 0
      %p113 = por %p111, %p112
      %p114 = scmp.ne.s32.totalorder %s102, %s103
      %p115 = scmp.eq.s32.totalorder %s30, 3
      %p116 = por %p114, %p115
      %p118 = scmp.ne.s32.totalorder %s103, %s117
      %p119 = scmp.eq.s32.totalorder %s30, 0
      %p120 = por %p118, %p119
      %s122 = sadd.s32 %s121, 1
      %p125 = scmp.eq.s32.totalorder %s24, 3
      %p126 = scmp.ne.s32.totalorder %s121, %s123
      %p127 = scmp.eq.s32.totalorder %s24, 0
      %p128 = por %p126, %p127
      %p129 = scmp.ne.s32.totalorder %s121, %s123
      %p130 = scmp.eq.s32.totalorder %s29, 3
      %p131 = por %p129, %p130
      %p132 = scmp.ne.s32.totalorder %s123, %s124
      %p133 = scmp.eq.s32.totalorder %s29, 0
      %p134 = por %p132, %p133
      %p135 = scmp.ne.s32.totalorder %s123, %s124
      %p136 = scmp.eq.s32.totalorder %s30, 3
      %p137 = por %p135, %p136
      %p139 = scmp.ne.s32.totalorder %s124, %s138
      %p140 = scmp.eq.s32.totalorder %s30, 0
      %p141 = por %p139, %p140
      %s143 = sadd.s32 %s142, 1
      %p146 = scmp.eq.s32.totalorder %s24, 3
      %p147 = scmp.ne.s32.totalorder %s142, %s144
      %p148 = scmp.eq.s32.totalorder %s24, 0
      %p149 = por %p147, %p148
      %p150 = scmp.ne.s32.totalorder %s142, %s144
      %p151 = scmp.eq.s32.totalorder %s29, 3
      %p152 = por %p150, %p151
      %p153 = scmp.ne.s32.totalorder %s144, %s145
      %p154 = scmp.eq.s32.totalorder %s29, 0
      %p155 = por %p153, %p154
      %p156 = scmp.ne.s32.totalorder %s144, %s145
      %p157 = scmp.eq.s32.totalorder %s30, 3
      %p158 = por %p156, %p157
      %p160 = scmp.ne.s32.totalorder %s145, %s159
      %p161 = scmp.eq.s32.totalorder %s30, 0
      %p162 = por %p160, %p161
      %s164 = sadd.s32 %s163, 1
      %p167 = scmp.eq.s32.totalorder %s24, 3
      %p168 = scmp.ne.s32.totalorder %s163, %s165
      %p169 = scmp.eq.s32.totalorder %s24, 0
      %p170 = por %p168, %p169
      %p171 = scmp.ne.s32.totalorder %s163, %s165
      %p172 = scmp.eq.s32.totalorder %s29, 3
      %p173 = por %p171, %p172
      %p174 = scmp.ne.s32.totalorder %s165, %s166
      %p175 = scmp.eq.s32.totalorder %s29, 0
      %p176 = por %p174, %p175
      %p177 = scmp.ne.s32.totalorder %s165, %s166
      %p178 = scmp.eq.s32.totalorder %s30, 3
      %p179 = por %p177, %p178
      %p181 = scmp.ne.s32.totalorder %s166, %s180
      %p182 = scmp.eq.s32.totalorder %s30, 0
      %p183 = por %p181, %p182
      %s185 = sadd.s32 %s184, 1
      %p188 = scmp.eq.s32.totalorder %s24, 3
      %p189 = scmp.ne.s32.totalorder %s184, %s186
      %p190 = scmp.eq.s32.totalorder %s24, 0
      %p191 = por %p189, %p190
      %p192 = scmp.ne.s32.totalorder %s184, %s186
      %p193 = scmp.eq.s32.totalorder %s29, 3
      %p194 = por %p192, %p193
      %p195 = scmp.ne.s32.totalorder %s186, %s187
      %p196 = scmp.eq.s32.totalorder %s29, 0
      %p197 = por %p195, %p196
      %p198 = scmp.ne.s32.totalorder %s186, %s187
      %p199 = scmp.eq.s32.totalorder %s30, 3
      %p200 = por %p198, %p199
      %p202 = scmp.ne.s32.totalorder %s187, %s201
      %p203 = scmp.eq.s32.totalorder %s30, 0
      %p204 = por %p202, %p203
      %s206 = sadd.s32 %s205, 1
      %p209 = scmp.eq.s32.totalorder %s24, 3
      %p210 = scmp.ne.s32.totalorder %s205, %s207
      %p211 = scmp.eq.s32.totalorder %s24, 0
      %p212 = por %p210, %p211
      %p213 = scmp.ne.s32.totalorder %s205, %s207
      %p214 = scmp.eq.s32.totalorder %s29, 3
      %p215 = por %p213, %p214
      %p216 = scmp.ne.s32.totalorder %s207, %s208
      %p217 = scmp.eq.s32.totalorder %s29, 0
      %p218 = por %p216, %p217
      %p219 = scmp.ne.s32.totalorder %s207, %s208
      %p220 = scmp.eq.s32.totalorder %s30, 3
      %p221 = por %p219, %p220
      %p223 = scmp.ne.s32.totalorder %s208, %s222
      %p224 = scmp.eq.s32.totalorder %s30, 0
      %p225 = por %p223, %p224
      %s227 = sadd.s32 %s226, 1
      %p230 = scmp.eq.s32.totalorder %s24, 3
      %p231 = scmp.ne.s32.totalorder %s226, %s228
      %p232 = scmp.eq.s32.totalorder %s24, 0
      %p233 = por %p231, %p232
      %p234 = scmp.ne.s32.totalorder %s226, %s228
      %p235 = scmp.eq.s32.totalorder %s29, 3
      %p236 = por %p234, %p235
      %p237 = scmp.ne.s32.totalorder %s228, %s229
      %p238 = scmp.eq.s32.totalorder %s29, 0
      %p239 = por %p237, %p238
      %p240 = scmp.ne.s32.totalorder %s228, %s229
      %p241 = scmp.eq.s32.totalorder %s30, 3
      %p242 = por %p240, %p241
      %p244 = scmp.ne.s32.totalorder %s229, %s243
      %p245 = scmp.eq.s32.totalorder %s30, 0
      %p246 = por %p244, %p245
      %s248 = sadd.s32 %s247, 1
      %p251 = scmp.eq.s32.totalorder %s24, 3
      %p252 = scmp.ne.s32.totalorder %s247, %s249
      %p253 = scmp.eq.s32.totalorder %s24, 0
      %p254 = por %p252, %p253
      %p255 = scmp.ne.s32.totalorder %s247, %s249
      %p256 = scmp.eq.s32.totalorder %s29, 3
      %p257 = por %p255, %p256
      %p258 = scmp.ne.s32.totalorder %s249, %s250
      %p259 = scmp.eq.s32.totalorder %s29, 0
      %p260 = por %p258, %p259
      %p261 = scmp.ne.s32.totalorder %s249, %s250
      %p262 = scmp.eq.s32.totalorder %s30, 3
      %p263 = por %p261, %p262
      %p265 = scmp.ne.s32.totalorder %s250, %s264
      %p266 = scmp.eq.s32.totalorder %s30, 0
      %p267 = por %p265, %p266
      %s269 = sadd.s32 %s268, 1
      %p272 = scmp.eq.s32.totalorder %s24, 3
      %p273 = scmp.ne.s32.totalorder %s268, %s270
      %p274 = scmp.eq.s32.totalorder %s24, 0
      %p275 = por %p273, %p274
      %p276 = scmp.ne.s32.totalorder %s268, %s270
      %p277 = scmp.eq.s32.totalorder %s29, 3
      %p278 = por %p276, %p277
      %p279 = scmp.ne.s32.totalorder %s270, %s271
      %p280 = scmp.eq.s32.totalorder %s29, 0
      %p281 = por %p279, %p280
      %p282 = scmp.ne.s32.totalorder %s270, %s271
      %p283 = scmp.eq.s32.totalorder %s30, 3
      %p284 = por %p282, %p283
      %p286 = scmp.ne.s32.totalorder %s271, %s285
      %p287 = scmp.eq.s32.totalorder %s30, 0
      %p288 = por %p286, %p287
      %s290 = sadd.s32 %s289, 1
      %p293 = scmp.eq.s32.totalorder %s24, 3
      %p294 = scmp.ne.s32.totalorder %s289, %s291
      %p295 = scmp.eq.s32.totalorder %s24, 0
      %p296 = por %p294, %p295
      %p297 = scmp.ne.s32.totalorder %s289, %s291
      %p298 = scmp.eq.s32.totalorder %s29, 3
      %p299 = por %p297, %p298
      %p300 = scmp.ne.s32.totalorder %s291, %s292
      %p301 = scmp.eq.s32.totalorder %s29, 0
      %p302 = por %p300, %p301
      %p303 = scmp.ne.s32.totalorder %s291, %s292
      %p304 = scmp.eq.s32.totalorder %s30, 3
      %p305 = por %p303, %p304
      %p307 = scmp.ne.s32.totalorder %s292, %s306
      %p308 = scmp.eq.s32.totalorder %s30, 0
      %p309 = por %p307, %p308
      %s310 = ssub.s32 %s24, %s31
      %p311 = scmp.eq.s32.totalorder %s310, 0
      %s313 = sadd.s32 %s312, 1
      %s314 = scalar_select %p311, %s312, %s313
      %p317 = pneg %p311
      %p318 = scmp.eq.s32.totalorder %s24, 3
      %p319 = por %p317, %p318
      %p320 = scmp.ne.s32.totalorder %s312, %s315
      %p321 = scmp.eq.s32.totalorder %s24, 0
      %p322 = por %p320, %p321
      %p323 = scmp.ne.s32.totalorder %s312, %s315
      %p324 = scmp.eq.s32.totalorder %s29, 3
      %p325 = por %p323, %p324
      %p326 = scmp.ne.s32.totalorder %s315, %s316
      %p327 = scmp.eq.s32.totalorder %s29, 0
      %p328 = por %p326, %p327
      %p329 = scmp.ne.s32.totalorder %s315, %s316
      %p330 = scmp.eq.s32.totalorder %s30, 3
      %p331 = por %p329, %p330
      %p333 = scmp.ne.s32.totalorder %s316, %s332
      %p334 = scmp.eq.s32.totalorder %s30, 0
      %p335 = por %p333, %p334
      %p336 = scmp.le.s32.totalorder 1, %s24
      %p337 = scmp.lt.s32.totalorder %s24, 5
      %p338 = pnand %p336, %p337
      %p339 = pneg %p338
      // Predicated region
      $region9: #{wrap_mononphm_forward.1} parent=5 // pred_check
        _
      $region10: #{wrap_mononphm_forward.1} parent=5 // pred_check_branch
        %341 = sbr.rel (%p338) target = $region12
      $region11: #{wrap_mononphm_forward.1} parent=5 // pred_region
        %s342 = ssub.s32 %s24, 1
        // Predicated region
        $region13: #{wrap_mononphm_forward.1} parent=11 // pred_check
          %p343 = pneg %p71
        $region14: #{wrap_mononphm_forward.1} parent=11 // pred_check_branch
          %345 = sbr.rel (%p343) target = $region16
        $region15: #{wrap_mononphm_forward.1} parent=11 // pred_region
          _
        $region16: #{wrap_mononphm_forward.1} parent=11 // pred_fallthru
          _
        // Predicated region
        $region17: #{wrap_mononphm_forward.1} parent=11 // pred_check
          %p346 = pneg %p92
        $region18: #{wrap_mononphm_forward.1} parent=11 // pred_check_branch
          %348 = sbr.rel (%p346) target = $region20
        $region19: #{wrap_mononphm_forward.1} parent=11 // pred_region
          _
        $region20: #{wrap_mononphm_forward.1} parent=11 // pred_fallthru
          _
        // Predicated region
        $region21: #{wrap_mononphm_forward.1} parent=11 // pred_check
          %p349 = pneg %p113
        $region22: #{wrap_mononphm_forward.1} parent=11 // pred_check_branch
          %351 = sbr.rel (%p349) target = $region24
        $region23: #{wrap_mononphm_forward.1} parent=11 // pred_region
          _
        $region24: #{wrap_mononphm_forward.1} parent=11 // pred_fallthru
          _
        // Predicated region
        $region25: #{wrap_mononphm_forward.1} parent=11 // pred_check
          %p352 = pneg %p134
        $region26: #{wrap_mononphm_forward.1} parent=11 // pred_check_branch
          %354 = sbr.rel (%p352) target = $region28
        $region27: #{wrap_mononphm_forward.1} parent=11 // pred_region
          _
        $region28: #{wrap_mononphm_forward.1} parent=11 // pred_fallthru
          _
        // Predicated region
        $region29: #{wrap_mononphm_forward.1} parent=11 // pred_check
          %p355 = pneg %p155
        $region30: #{wrap_mononphm_forward.1} parent=11 // pred_check_branch
          %357 = sbr.rel (%p355) target = $region32
        $region31: #{wrap_mononphm_forward.1} parent=11 // pred_region
          _
        $region32: #{wrap_mononphm_forward.1} parent=11 // pred_fallthru
          _
        // Predicated region
        $region33: #{wrap_mononphm_forward.1} parent=11 // pred_check
          %p358 = pneg %p176
        $region34: #{wrap_mononphm_forward.1} parent=11 // pred_check_branch
          %360 = sbr.rel (%p358) target = $region36
        $region35: #{wrap_mononphm_forward.1} parent=11 // pred_region
          _
        $region36: #{wrap_mononphm_forward.1} parent=11 // pred_fallthru
          _
        // Predicated region
        $region37: #{wrap_mononphm_forward.1} parent=11 // pred_check
          %p361 = pneg %p197
        $region38: #{wrap_mononphm_forward.1} parent=11 // pred_check_branch
          %363 = sbr.rel (%p361) target = $region40
        $region39: #{wrap_mononphm_forward.1} parent=11 // pred_region
          _
        $region40: #{wrap_mononphm_forward.1} parent=11 // pred_fallthru
          _
        // Predicated region
        $region41: #{wrap_mononphm_forward.1} parent=11 // pred_check
          %p364 = pneg %p218
        $region42: #{wrap_mononphm_forward.1} parent=11 // pred_check_branch
          %366 = sbr.rel (%p364) target = $region44
        $region43: #{wrap_mononphm_forward.1} parent=11 // pred_region
          _
        $region44: #{wrap_mononphm_forward.1} parent=11 // pred_fallthru
          _
        // Predicated region
        $region45: #{wrap_mononphm_forward.1} parent=11 // pred_check
          %p367 = pneg %p239
        $region46: #{wrap_mononphm_forward.1} parent=11 // pred_check_branch
          %369 = sbr.rel (%p367) target = $region48
        $region47: #{wrap_mononphm_forward.1} parent=11 // pred_region
          _
        $region48: #{wrap_mononphm_forward.1} parent=11 // pred_fallthru
          _
        // Predicated region
        $region49: #{wrap_mononphm_forward.1} parent=11 // pred_check
          %p370 = pneg %p260
        $region50: #{wrap_mononphm_forward.1} parent=11 // pred_check_branch
          %372 = sbr.rel (%p370) target = $region52
        $region51: #{wrap_mononphm_forward.1} parent=11 // pred_region
          _
        $region52: #{wrap_mononphm_forward.1} parent=11 // pred_fallthru
          _
        // Predicated region
        $region53: #{wrap_mononphm_forward.1} parent=11 // pred_check
          %p373 = pneg %p281
        $region54: #{wrap_mononphm_forward.1} parent=11 // pred_check_branch
          %375 = sbr.rel (%p373) target = $region56
        $region55: #{wrap_mononphm_forward.1} parent=11 // pred_region
          _
        $region56: #{wrap_mononphm_forward.1} parent=11 // pred_fallthru
          _
        // Predicated region
        $region57: #{wrap_mononphm_forward.1} parent=11 // pred_check
          %p376 = pneg %p302
        $region58: #{wrap_mononphm_forward.1} parent=11 // pred_check_branch
          %378 = sbr.rel (%p376) target = $region60
        $region59: #{wrap_mononphm_forward.1} parent=11 // pred_region
          _
        $region60: #{wrap_mononphm_forward.1} parent=11 // pred_fallthru
          _
      $region12: #{wrap_mononphm_forward.1} parent=5 // pred_fallthru
        _
      %p379 = scmp.lt.s32.totalorder %s24, 4
      // Predicated region
      $region61: #{wrap_mononphm_forward.1} parent=5 // pred_check
        %p380 = pneg %p379
      $region62: #{wrap_mononphm_forward.1} parent=5 // pred_check_branch
        %382 = sbr.rel (%p380) target = $region64
      $region63: #{wrap_mononphm_forward.1} parent=5 // pred_region
        // Predicated region
        $region65: #{wrap_mononphm_forward.1} parent=63 // pred_check
          %p383 = pneg %p44
        $region66: #{wrap_mononphm_forward.1} parent=63 // pred_check_branch
          %385 = sbr.rel (%p383) target = $region68
        $region67: #{wrap_mononphm_forward.1} parent=63 // pred_region
          %s386 = smul.u32 8, %s24
          %p387 = scmp.lt.s32.totalorder %s386, 31
          %s388 = scalar_select %p387, %s386, 31
          %s389 = smul.addr %s388, 4
          %s390 = scalar_lea.vmem %s0, %s389
          %s391 = smul.u32 8, %s24
        $region68: #{wrap_mononphm_forward.1} parent=63 // pred_fallthru
          _
      $region64: #{wrap_mononphm_forward.1} parent=5 // pred_fallthru
        _
      %p392 = scmp.le.s32.totalorder 1, %s24
      %p393 = scmp.lt.s32.totalorder %s24, 5
      %p394 = pnand %p392, %p393
      %p395 = pneg %p394
      // Predicated region
      $region69: #{wrap_mononphm_forward.1} parent=5 // pred_check
        _
      $region70: #{wrap_mononphm_forward.1} parent=5 // pred_check_branch
        %397 = sbr.rel (%p394) target = $region72
      $region71: #{wrap_mononphm_forward.1} parent=5 // pred_region
        %s398 = ssub.s32 %s24, 1
        %s399 = smul.u32 8, %s29
        %p400 = scmp.lt.s32.totalorder %s399, 31
        %s401 = scalar_select %p400, %s399, 31
        %s402 = smul.addr %s401, 4
        %s403 = scalar_lea.vmem %s0, %s402
        %p404 = pneg %p50
        %p405 = pneg %p47
        %p406 = pneg %p71
        %p407 = pneg %p68
        %p408 = pneg %p92
        %p409 = pneg %p89
        %p410 = pneg %p113
        %p411 = pneg %p110
        %p412 = pneg %p134
        %p413 = pneg %p131
        %p414 = pneg %p155
        %p415 = pneg %p152
        %p416 = pneg %p176
        %p417 = pneg %p173
        %p418 = pneg %p197
        %p419 = pneg %p194
        %p420 = pneg %p218
        %p421 = pneg %p215
        %p422 = pneg %p239
        %p423 = pneg %p236
        %p424 = pneg %p260
        %p425 = pneg %p257
        %p426 = pneg %p281
        %p427 = pneg %p278
        %p428 = pneg %p302
        %p429 = pneg %p299
        %p430 = pneg %p328
        %p431 = pneg %p325
        %s432 = sand.u32 %s315, 1
        %s433 = scalar_lea.sflag [#allocation4], %s432
        %s434 = sand.u32 %s315, 1
        %s435 = smul.addr %s434, 8
        %s436 = scalar_lea.vmem [#allocation3], %s435
        %s437 = smul.u32 8, %s29
        %p438 = scmp.lt.s32.totalorder %s437, 31
        %s439 = scalar_select %p438, %s437, 31
        %s440 = smul.addr %s439, 4
        %s441 = scalar_lea.vmem %s0, %s440
        %s442 = smul.u32 8, %s29
        %s443 = smul.u32 8, %s29
        %v444 = vld [vmem:[%s441] sm:$0x77]
        %v445 = vld [vmem:[%s441 + $0x8] sm:$0x77]
        %v446 = vld [vmem:[%s441 + $0x10] sm:$0x77]
        %v447 = vld [vmem:[%s441 + $0x18] sm:$0x77]
        %v448 = vld [vmem:[%s1] sm:$0xff]
        %v449 = vld [vmem:[%s1 + $0x8] sm:$0xff]
        %v450 = vld [vmem:[%s1 + $0x10] sm:$0xff]
        %v451 = vld [vmem:[%s1 + $0x18] sm:$0xff]
        %v452 = vld [vmem:[%s1 + $0x20] sm:$0xff]
        %v453 = vld [vmem:[%s1 + $0x28] sm:$0xff]
        %v454 = vld [vmem:[%s1 + $0x30] sm:$0xff]
        %v455 = vld [vmem:[%s1 + $0x38] sm:$0xff]
        %v456 = vld [vmem:[%s2] sm:$0xff]
        %v457 = vld [vmem:[%s2 + $0x8] sm:$0xff]
        %v458 = vld [vmem:[%s2 + $0x10] sm:$0xff]
        %v459 = vld [vmem:[%s2 + $0x18] sm:$0xff]
        %v460 = vld [vmem:[%s2 + $0x20] sm:$0xff]
        %v461 = vld [vmem:[%s2 + $0x28] sm:$0xff]
        %v462 = vld [vmem:[%s2 + $0x30] sm:$0xff]
        %v463 = vld [vmem:[%s2 + $0x38] sm:$0xff]
        %465 = vset.pattern.permute.xlu0 0
        %466 = vperm.xlu0 %465, %v448
        %v467 = vpop.permute.xlu0 %466
        %470 = vset.pattern.permute.xlu0 0
        %471 = vperm.xlu0 %470, %v449
        %v472 = vpop.permute.xlu0 %471
        %475 = vset.pattern.permute.xlu0 0
        %476 = vperm.xlu0 %475, %v450
        %v477 = vpop.permute.xlu0 %476
        %480 = vset.pattern.permute.xlu0 0
        %481 = vperm.xlu0 %480, %v451
        %v482 = vpop.permute.xlu0 %481
        %485 = vset.pattern.permute.xlu0 0
        %486 = vperm.xlu0 %485, %v452
        %v487 = vpop.permute.xlu0 %486
        %490 = vset.pattern.permute.xlu0 0
        %491 = vperm.xlu0 %490, %v453
        %v492 = vpop.permute.xlu0 %491
        %495 = vset.pattern.permute.xlu0 0
        %496 = vperm.xlu0 %495, %v454
        %v497 = vpop.permute.xlu0 %496
        %500 = vset.pattern.permute.xlu0 0
        %501 = vperm.xlu0 %500, %v455
        %v502 = vpop.permute.xlu0 %501
        %v508 = vlaneseq
        %v509 = vshrl.u32 %v508, 7
        %v510 = vsub.s32 0, %v509
        %v511 = vrot.slane %v444, %v510
        %v512 = vlaneseq
        %v513 = vshrl.u32 %v512, 7
        %v514 = vsub.s32 4, %v513
        %v515 = vrot.slane %v444, %v514
        %v516 = vlaneseq
        %v517 = vshrl.u32 %v516, 7
        %v518 = vsub.s32 0, %v517
        %v519 = vrot.slane %v445, %v518
        %v520 = vlaneseq
        %v521 = vshrl.u32 %v520, 7
        %v522 = vsub.s32 4, %v521
        %v523 = vrot.slane %v445, %v522
        %v524 = vlaneseq
        %v525 = vshrl.u32 %v524, 7
        %v526 = vsub.s32 0, %v525
        %v527 = vrot.slane %v446, %v526
        %v528 = vlaneseq
        %v529 = vshrl.u32 %v528, 7
        %v530 = vsub.s32 4, %v529
        %v531 = vrot.slane %v446, %v530
        %v532 = vlaneseq
        %v533 = vshrl.u32 %v532, 7
        %v534 = vsub.s32 0, %v533
        %v535 = vrot.slane %v447, %v534
        %v536 = vlaneseq
        %v537 = vshrl.u32 %v536, 7
        %v538 = vsub.s32 4, %v537
        %v539 = vrot.slane %v447, %v538
        %v548 = vlaneseq
        %v549 = vshrl.u32 %v548, 7
        %v550 = vsub.s32 0, %v549
        %v551 = vrot.slane %v511, %v550
        %v552 = vlaneseq
        %v553 = vshrl.u32 %v552, 7
        %v554 = vsub.s32 0, %v553
        %v555 = vrot.slane %v515, %v554
        %v556 = vlaneseq
        %v557 = vshrl.u32 %v556, 7
        %v558 = vsub.s32 0, %v557
        %v559 = vrot.slane %v519, %v558
        %v560 = vlaneseq
        %v561 = vshrl.u32 %v560, 7
        %v562 = vsub.s32 0, %v561
        %v563 = vrot.slane %v523, %v562
        %v564 = vlaneseq
        %v565 = vshrl.u32 %v564, 7
        %v566 = vsub.s32 0, %v565
        %v567 = vrot.slane %v527, %v566
        %v568 = vlaneseq
        %v569 = vshrl.u32 %v568, 7
        %v570 = vsub.s32 0, %v569
        %v571 = vrot.slane %v531, %v570
        %v572 = vlaneseq
        %v573 = vshrl.u32 %v572, 7
        %v574 = vsub.s32 0, %v573
        %v575 = vrot.slane %v535, %v574
        %v576 = vlaneseq
        %v577 = vshrl.u32 %v576, 7
        %v578 = vsub.s32 0, %v577
        %v579 = vrot.slane %v539, %v578
        %v580 = vmul.f32 %v467, %v551
        %v581 = vmul.f32 %v467, %v555
        %v582 = vmul.f32 %v467, %v559
        %v583 = vmul.f32 %v467, %v563
        %v584 = vmul.f32 %v467, %v567
        %v585 = vmul.f32 %v467, %v571
        %v586 = vmul.f32 %v467, %v575
        %v587 = vmul.f32 %v467, %v579
        %v588 = vmul.f32 %v472, %v551
        %v589 = vmul.f32 %v472, %v555
        %v590 = vmul.f32 %v472, %v559
        %v591 = vmul.f32 %v472, %v563
        %v592 = vmul.f32 %v472, %v567
        %v593 = vmul.f32 %v472, %v571
        %v594 = vmul.f32 %v472, %v575
        %v595 = vmul.f32 %v472, %v579
        %v596 = vmul.f32 %v477, %v551
        %v597 = vmul.f32 %v477, %v555
        %v598 = vmul.f32 %v477, %v559
        %v599 = vmul.f32 %v477, %v563
        %v600 = vmul.f32 %v477, %v567
        %v601 = vmul.f32 %v477, %v571
        %v602 = vmul.f32 %v477, %v575
        %v603 = vmul.f32 %v477, %v579
        %v604 = vmul.f32 %v482, %v551
        %v605 = vmul.f32 %v482, %v555
        %v606 = vmul.f32 %v482, %v559
        %v607 = vmul.f32 %v482, %v563
        %v608 = vmul.f32 %v482, %v567
        %v609 = vmul.f32 %v482, %v571
        %v610 = vmul.f32 %v482, %v575
        %v611 = vmul.f32 %v482, %v579
        %v612 = vmul.f32 %v487, %v551
        %v613 = vmul.f32 %v487, %v555
        %v614 = vmul.f32 %v487, %v559
        %v615 = vmul.f32 %v487, %v563
        %v616 = vmul.f32 %v487, %v567
        %v617 = vmul.f32 %v487, %v571
        %v618 = vmul.f32 %v487, %v575
        %v619 = vmul.f32 %v487, %v579
        %v620 = vmul.f32 %v492, %v551
        %v621 = vmul.f32 %v492, %v555
        %v622 = vmul.f32 %v492, %v559
        %v623 = vmul.f32 %v492, %v563
        %v624 = vmul.f32 %v492, %v567
        %v625 = vmul.f32 %v492, %v571
        %v626 = vmul.f32 %v492, %v575
        %v627 = vmul.f32 %v492, %v579
        %v628 = vmul.f32 %v497, %v551
        %v629 = vmul.f32 %v497, %v555
        %v630 = vmul.f32 %v497, %v559
        %v631 = vmul.f32 %v497, %v563
        %v632 = vmul.f32 %v497, %v567
        %v633 = vmul.f32 %v497, %v571
        %v634 = vmul.f32 %v497, %v575
        %v635 = vmul.f32 %v497, %v579
        %v636 = vmul.f32 %v502, %v551
        %v637 = vmul.f32 %v502, %v555
        %v638 = vmul.f32 %v502, %v559
        %v639 = vmul.f32 %v502, %v563
        %v640 = vmul.f32 %v502, %v567
        %v641 = vmul.f32 %v502, %v571
        %v642 = vmul.f32 %v502, %v575
        %v643 = vmul.f32 %v502, %v579
        %645 = vset.pattern.permute.xlu0 0
        %646 = vperm.xlu0 %645, %v456
        %v647 = vpop.permute.xlu0 %646
        %650 = vset.pattern.permute.xlu0 0
        %651 = vperm.xlu0 %650, %v457
        %v652 = vpop.permute.xlu0 %651
        %655 = vset.pattern.permute.xlu0 0
        %656 = vperm.xlu0 %655, %v458
        %v657 = vpop.permute.xlu0 %656
        %660 = vset.pattern.permute.xlu0 0
        %661 = vperm.xlu0 %660, %v459
        %v662 = vpop.permute.xlu0 %661
        %665 = vset.pattern.permute.xlu0 0
        %666 = vperm.xlu0 %665, %v460
        %v667 = vpop.permute.xlu0 %666
        %670 = vset.pattern.permute.xlu0 0
        %671 = vperm.xlu0 %670, %v461
        %v672 = vpop.permute.xlu0 %671
        %675 = vset.pattern.permute.xlu0 0
        %676 = vperm.xlu0 %675, %v462
        %v677 = vpop.permute.xlu0 %676
        %680 = vset.pattern.permute.xlu0 0
        %681 = vperm.xlu0 %680, %v463
        %v682 = vpop.permute.xlu0 %681
        %v684 = vadd.f32 %v647, %v580
        %v685 = vadd.f32 %v647, %v581
        %v686 = vadd.f32 %v647, %v582
        %v687 = vadd.f32 %v647, %v583
        %v688 = vadd.f32 %v647, %v584
        %v689 = vadd.f32 %v647, %v585
        %v690 = vadd.f32 %v647, %v586
        %v691 = vadd.f32 %v647, %v587
        %v692 = vadd.f32 %v652, %v588
        %v693 = vadd.f32 %v652, %v589
        %v694 = vadd.f32 %v652, %v590
        %v695 = vadd.f32 %v652, %v591
        %v696 = vadd.f32 %v652, %v592
        %v697 = vadd.f32 %v652, %v593
        %v698 = vadd.f32 %v652, %v594
        %v699 = vadd.f32 %v652, %v595
        %v700 = vadd.f32 %v657, %v596
        %v701 = vadd.f32 %v657, %v597
        %v702 = vadd.f32 %v657, %v598
        %v703 = vadd.f32 %v657, %v599
        %v704 = vadd.f32 %v657, %v600
        %v705 = vadd.f32 %v657, %v601
        %v706 = vadd.f32 %v657, %v602
        %v707 = vadd.f32 %v657, %v603
        %v708 = vadd.f32 %v662, %v604
        %v709 = vadd.f32 %v662, %v605
        %v710 = vadd.f32 %v662, %v606
        %v711 = vadd.f32 %v662, %v607
        %v712 = vadd.f32 %v662, %v608
        %v713 = vadd.f32 %v662, %v609
        %v714 = vadd.f32 %v662, %v610
        %v715 = vadd.f32 %v662, %v611
        %v716 = vadd.f32 %v667, %v612
        %v717 = vadd.f32 %v667, %v613
        %v718 = vadd.f32 %v667, %v614
        %v719 = vadd.f32 %v667, %v615
        %v720 = vadd.f32 %v667, %v616
        %v721 = vadd.f32 %v667, %v617
        %v722 = vadd.f32 %v667, %v618
        %v723 = vadd.f32 %v667, %v619
        %v724 = vadd.f32 %v672, %v620
        %v725 = vadd.f32 %v672, %v621
        %v726 = vadd.f32 %v672, %v622
        %v727 = vadd.f32 %v672, %v623
        %v728 = vadd.f32 %v672, %v624
        %v729 = vadd.f32 %v672, %v625
        %v730 = vadd.f32 %v672, %v626
        %v731 = vadd.f32 %v672, %v627
        %v732 = vadd.f32 %v677, %v628
        %v733 = vadd.f32 %v677, %v629
        %v734 = vadd.f32 %v677, %v630
        %v735 = vadd.f32 %v677, %v631
        %v736 = vadd.f32 %v677, %v632
        %v737 = vadd.f32 %v677, %v633
        %v738 = vadd.f32 %v677, %v634
        %v739 = vadd.f32 %v677, %v635
        %v740 = vadd.f32 %v682, %v636
        %v741 = vadd.f32 %v682, %v637
        %v742 = vadd.f32 %v682, %v638
        %v743 = vadd.f32 %v682, %v639
        %v744 = vadd.f32 %v682, %v640
        %v745 = vadd.f32 %v682, %v641
        %v746 = vadd.f32 %v682, %v642
        %v747 = vadd.f32 %v682, %v643
        %748 = vset.pattern.permute.xlu0 1
        %749 = vperm.xlu0 %748, %v448
        %v750 = vpop.permute.xlu0 %749
        %752 = vset.pattern.permute.xlu0 1
        %753 = vperm.xlu0 %752, %v449
        %v754 = vpop.permute.xlu0 %753
        %756 = vset.pattern.permute.xlu0 1
        %757 = vperm.xlu0 %756, %v450
        %v758 = vpop.permute.xlu0 %757
        %760 = vset.pattern.permute.xlu0 1
        %761 = vperm.xlu0 %760, %v451
        %v762 = vpop.permute.xlu0 %761
        %764 = vset.pattern.permute.xlu0 1
        %765 = vperm.xlu0 %764, %v452
        %v766 = vpop.permute.xlu0 %765
        %768 = vset.pattern.permute.xlu0 1
        %769 = vperm.xlu0 %768, %v453
        %v770 = vpop.permute.xlu0 %769
        %772 = vset.pattern.permute.xlu0 1
        %773 = vperm.xlu0 %772, %v454
        %v774 = vpop.permute.xlu0 %773
        %776 = vset.pattern.permute.xlu0 1
        %777 = vperm.xlu0 %776, %v455
        %v778 = vpop.permute.xlu0 %777
        %v780 = vlaneseq
        %v781 = vshrl.u32 %v780, 7
        %v782 = vsub.s32 1, %v781
        %v783 = vrot.slane %v444, %v782
        %v784 = vlaneseq
        %v785 = vshrl.u32 %v784, 7
        %v786 = vsub.s32 5, %v785
        %v787 = vrot.slane %v444, %v786
        %v788 = vlaneseq
        %v789 = vshrl.u32 %v788, 7
        %v790 = vsub.s32 1, %v789
        %v791 = vrot.slane %v445, %v790
        %v792 = vlaneseq
        %v793 = vshrl.u32 %v792, 7
        %v794 = vsub.s32 5, %v793
        %v795 = vrot.slane %v445, %v794
        %v796 = vlaneseq
        %v797 = vshrl.u32 %v796, 7
        %v798 = vsub.s32 1, %v797
        %v799 = vrot.slane %v446, %v798
        %v800 = vlaneseq
        %v801 = vshrl.u32 %v800, 7
        %v802 = vsub.s32 5, %v801
        %v803 = vrot.slane %v446, %v802
        %v804 = vlaneseq
        %v805 = vshrl.u32 %v804, 7
        %v806 = vsub.s32 1, %v805
        %v807 = vrot.slane %v447, %v806
        %v808 = vlaneseq
        %v809 = vshrl.u32 %v808, 7
        %v810 = vsub.s32 5, %v809
        %v811 = vrot.slane %v447, %v810
        %v820 = vlaneseq
        %v821 = vshrl.u32 %v820, 7
        %v822 = vsub.s32 1, %v821
        %v823 = vrot.slane %v783, %v822
        %v824 = vlaneseq
        %v825 = vshrl.u32 %v824, 7
        %v826 = vsub.s32 1, %v825
        %v827 = vrot.slane %v787, %v826
        %v828 = vlaneseq
        %v829 = vshrl.u32 %v828, 7
        %v830 = vsub.s32 1, %v829
        %v831 = vrot.slane %v791, %v830
        %v832 = vlaneseq
        %v833 = vshrl.u32 %v832, 7
        %v834 = vsub.s32 1, %v833
        %v835 = vrot.slane %v795, %v834
        %v836 = vlaneseq
        %v837 = vshrl.u32 %v836, 7
        %v838 = vsub.s32 1, %v837
        %v839 = vrot.slane %v799, %v838
        %v840 = vlaneseq
        %v841 = vshrl.u32 %v840, 7
        %v842 = vsub.s32 1, %v841
        %v843 = vrot.slane %v803, %v842
        %v844 = vlaneseq
        %v845 = vshrl.u32 %v844, 7
        %v846 = vsub.s32 1, %v845
        %v847 = vrot.slane %v807, %v846
        %v848 = vlaneseq
        %v849 = vshrl.u32 %v848, 7
        %v850 = vsub.s32 1, %v849
        %v851 = vrot.slane %v811, %v850
        %v852 = vmul.f32 %v750, %v823
        %v853 = vmul.f32 %v750, %v827
        %v854 = vmul.f32 %v750, %v831
        %v855 = vmul.f32 %v750, %v835
        %v856 = vmul.f32 %v750, %v839
        %v857 = vmul.f32 %v750, %v843
        %v858 = vmul.f32 %v750, %v847
        %v859 = vmul.f32 %v750, %v851
        %v860 = vmul.f32 %v754, %v823
        %v861 = vmul.f32 %v754, %v827
        %v862 = vmul.f32 %v754, %v831
        %v863 = vmul.f32 %v754, %v835
        %v864 = vmul.f32 %v754, %v839
        %v865 = vmul.f32 %v754, %v843
        %v866 = vmul.f32 %v754, %v847
        %v867 = vmul.f32 %v754, %v851
        %v868 = vmul.f32 %v758, %v823
        %v869 = vmul.f32 %v758, %v827
        %v870 = vmul.f32 %v758, %v831
        %v871 = vmul.f32 %v758, %v835
        %v872 = vmul.f32 %v758, %v839
        %v873 = vmul.f32 %v758, %v843
        %v874 = vmul.f32 %v758, %v847
        %v875 = vmul.f32 %v758, %v851
        %v876 = vmul.f32 %v762, %v823
        %v877 = vmul.f32 %v762, %v827
        %v878 = vmul.f32 %v762, %v831
        %v879 = vmul.f32 %v762, %v835
        %v880 = vmul.f32 %v762, %v839
        %v881 = vmul.f32 %v762, %v843
        %v882 = vmul.f32 %v762, %v847
        %v883 = vmul.f32 %v762, %v851
        %v884 = vmul.f32 %v766, %v823
        %v885 = vmul.f32 %v766, %v827
        %v886 = vmul.f32 %v766, %v831
        %v887 = vmul.f32 %v766, %v835
        %v888 = vmul.f32 %v766, %v839
        %v889 = vmul.f32 %v766, %v843
        %v890 = vmul.f32 %v766, %v847
        %v891 = vmul.f32 %v766, %v851
        %v892 = vmul.f32 %v770, %v823
        %v893 = vmul.f32 %v770, %v827
        %v894 = vmul.f32 %v770, %v831
        %v895 = vmul.f32 %v770, %v835
        %v896 = vmul.f32 %v770, %v839
        %v897 = vmul.f32 %v770, %v843
        %v898 = vmul.f32 %v770, %v847
        %v899 = vmul.f32 %v770, %v851
        %v900 = vmul.f32 %v774, %v823
        %v901 = vmul.f32 %v774, %v827
        %v902 = vmul.f32 %v774, %v831
        %v903 = vmul.f32 %v774, %v835
        %v904 = vmul.f32 %v774, %v839
        %v905 = vmul.f32 %v774, %v843
        %v906 = vmul.f32 %v774, %v847
        %v907 = vmul.f32 %v774, %v851
        %v908 = vmul.f32 %v778, %v823
        %v909 = vmul.f32 %v778, %v827
        %v910 = vmul.f32 %v778, %v831
        %v911 = vmul.f32 %v778, %v835
        %v912 = vmul.f32 %v778, %v839
        %v913 = vmul.f32 %v778, %v843
        %v914 = vmul.f32 %v778, %v847
        %v915 = vmul.f32 %v778, %v851
        %v916 = vadd.f32 %v684, %v852
        %v917 = vadd.f32 %v685, %v853
        %v918 = vadd.f32 %v686, %v854
        %v919 = vadd.f32 %v687, %v855
        %v920 = vadd.f32 %v688, %v856
        %v921 = vadd.f32 %v689, %v857
        %v922 = vadd.f32 %v690, %v858
        %v923 = vadd.f32 %v691, %v859
        %v924 = vadd.f32 %v692, %v860
        %v925 = vadd.f32 %v693, %v861
        %v926 = vadd.f32 %v694, %v862
        %v927 = vadd.f32 %v695, %v863
        %v928 = vadd.f32 %v696, %v864
        %v929 = vadd.f32 %v697, %v865
        %v930 = vadd.f32 %v698, %v866
        %v931 = vadd.f32 %v699, %v867
        %v932 = vadd.f32 %v700, %v868
        %v933 = vadd.f32 %v701, %v869
        %v934 = vadd.f32 %v702, %v870
        %v935 = vadd.f32 %v703, %v871
        %v936 = vadd.f32 %v704, %v872
        %v937 = vadd.f32 %v705, %v873
        %v938 = vadd.f32 %v706, %v874
        %v939 = vadd.f32 %v707, %v875
        %v940 = vadd.f32 %v708, %v876
        %v941 = vadd.f32 %v709, %v877
        %v942 = vadd.f32 %v710, %v878
        %v943 = vadd.f32 %v711, %v879
        %v944 = vadd.f32 %v712, %v880
        %v945 = vadd.f32 %v713, %v881
        %v946 = vadd.f32 %v714, %v882
        %v947 = vadd.f32 %v715, %v883
        %v948 = vadd.f32 %v716, %v884
        %v949 = vadd.f32 %v717, %v885
        %v950 = vadd.f32 %v718, %v886
        %v951 = vadd.f32 %v719, %v887
        %v952 = vadd.f32 %v720, %v888
        %v953 = vadd.f32 %v721, %v889
        %v954 = vadd.f32 %v722, %v890
        %v955 = vadd.f32 %v723, %v891
        %v956 = vadd.f32 %v724, %v892
        %v957 = vadd.f32 %v725, %v893
        %v958 = vadd.f32 %v726, %v894
        %v959 = vadd.f32 %v727, %v895
        %v960 = vadd.f32 %v728, %v896
        %v961 = vadd.f32 %v729, %v897
        %v962 = vadd.f32 %v730, %v898
        %v963 = vadd.f32 %v731, %v899
        %v964 = vadd.f32 %v732, %v900
        %v965 = vadd.f32 %v733, %v901
        %v966 = vadd.f32 %v734, %v902
        %v967 = vadd.f32 %v735, %v903
        %v968 = vadd.f32 %v736, %v904
        %v969 = vadd.f32 %v737, %v905
        %v970 = vadd.f32 %v738, %v906
        %v971 = vadd.f32 %v739, %v907
        %v972 = vadd.f32 %v740, %v908
        %v973 = vadd.f32 %v741, %v909
        %v974 = vadd.f32 %v742, %v910
        %v975 = vadd.f32 %v743, %v911
        %v976 = vadd.f32 %v744, %v912
        %v977 = vadd.f32 %v745, %v913
        %v978 = vadd.f32 %v746, %v914
        %v979 = vadd.f32 %v747, %v915
        %980 = vset.pattern.permute.xlu0 2
        %981 = vperm.xlu0 %980, %v448
        %v982 = vpop.permute.xlu0 %981
        %984 = vset.pattern.permute.xlu0 2
        %985 = vperm.xlu0 %984, %v449
        %v986 = vpop.permute.xlu0 %985
        %988 = vset.pattern.permute.xlu0 2
        %989 = vperm.xlu0 %988, %v450
        %v990 = vpop.permute.xlu0 %989
        %992 = vset.pattern.permute.xlu0 2
        %993 = vperm.xlu0 %992, %v451
        %v994 = vpop.permute.xlu0 %993
        %996 = vset.pattern.permute.xlu0 2
        %997 = vperm.xlu0 %996, %v452
        %v998 = vpop.permute.xlu0 %997
        %1000 = vset.pattern.permute.xlu0 2
        %1001 = vperm.xlu0 %1000, %v453
        %v1002 = vpop.permute.xlu0 %1001
        %1004 = vset.pattern.permute.xlu0 2
        %1005 = vperm.xlu0 %1004, %v454
        %v1006 = vpop.permute.xlu0 %1005
        %1008 = vset.pattern.permute.xlu0 2
        %1009 = vperm.xlu0 %1008, %v455
        %v1010 = vpop.permute.xlu0 %1009
        %v1012 = vlaneseq
        %v1013 = vshrl.u32 %v1012, 7
        %v1014 = vsub.s32 2, %v1013
        %v1015 = vrot.slane %v444, %v1014
        %v1016 = vlaneseq
        %v1017 = vshrl.u32 %v1016, 7
        %v1018 = vsub.s32 6, %v1017
        %v1019 = vrot.slane %v444, %v1018
        %v1020 = vlaneseq
        %v1021 = vshrl.u32 %v1020, 7
        %v1022 = vsub.s32 2, %v1021
        %v1023 = vrot.slane %v445, %v1022
        %v1024 = vlaneseq
        %v1025 = vshrl.u32 %v1024, 7
        %v1026 = vsub.s32 6, %v1025
        %v1027 = vrot.slane %v445, %v1026
        %v1028 = vlaneseq
        %v1029 = vshrl.u32 %v1028, 7
        %v1030 = vsub.s32 2, %v1029
        %v1031 = vrot.slane %v446, %v1030
        %v1032 = vlaneseq
        %v1033 = vshrl.u32 %v1032, 7
        %v1034 = vsub.s32 6, %v1033
        %v1035 = vrot.slane %v446, %v1034
        %v1036 = vlaneseq
        %v1037 = vshrl.u32 %v1036, 7
        %v1038 = vsub.s32 2, %v1037
        %v1039 = vrot.slane %v447, %v1038
        %v1040 = vlaneseq
        %v1041 = vshrl.u32 %v1040, 7
        %v1042 = vsub.s32 6, %v1041
        %v1043 = vrot.slane %v447, %v1042
        %v1052 = vlaneseq
        %v1053 = vshrl.u32 %v1052, 7
        %v1054 = vsub.s32 2, %v1053
        %v1055 = vrot.slane %v1015, %v1054
        %v1056 = vlaneseq
        %v1057 = vshrl.u32 %v1056, 7
        %v1058 = vsub.s32 2, %v1057
        %v1059 = vrot.slane %v1019, %v1058
        %v1060 = vlaneseq
        %v1061 = vshrl.u32 %v1060, 7
        %v1062 = vsub.s32 2, %v1061
        %v1063 = vrot.slane %v1023, %v1062
        %v1064 = vlaneseq
        %v1065 = vshrl.u32 %v1064, 7
        %v1066 = vsub.s32 2, %v1065
        %v1067 = vrot.slane %v1027, %v1066
        %v1068 = vlaneseq
        %v1069 = vshrl.u32 %v1068, 7
        %v1070 = vsub.s32 2, %v1069
        %v1071 = vrot.slane %v1031, %v1070
        %v1072 = vlaneseq
        %v1073 = vshrl.u32 %v1072, 7
        %v1074 = vsub.s32 2, %v1073
        %v1075 = vrot.slane %v1035, %v1074
        %v1076 = vlaneseq
        %v1077 = vshrl.u32 %v1076, 7
        %v1078 = vsub.s32 2, %v1077
        %v1079 = vrot.slane %v1039, %v1078
        %v1080 = vlaneseq
        %v1081 = vshrl.u32 %v1080, 7
        %v1082 = vsub.s32 2, %v1081
        %v1083 = vrot.slane %v1043, %v1082
        %v1084 = vmul.f32 %v982, %v1055
        %v1085 = vmul.f32 %v982, %v1059
        %v1086 = vmul.f32 %v982, %v1063
        %v1087 = vmul.f32 %v982, %v1067
        %v1088 = vmul.f32 %v982, %v1071
        %v1089 = vmul.f32 %v982, %v1075
        %v1090 = vmul.f32 %v982, %v1079
        %v1091 = vmul.f32 %v982, %v1083
        %v1092 = vmul.f32 %v986, %v1055
        %v1093 = vmul.f32 %v986, %v1059
        %v1094 = vmul.f32 %v986, %v1063
        %v1095 = vmul.f32 %v986, %v1067
        %v1096 = vmul.f32 %v986, %v1071
        %v1097 = vmul.f32 %v986, %v1075
        %v1098 = vmul.f32 %v986, %v1079
        %v1099 = vmul.f32 %v986, %v1083
        %v1100 = vmul.f32 %v990, %v1055
        %v1101 = vmul.f32 %v990, %v1059
        %v1102 = vmul.f32 %v990, %v1063
        %v1103 = vmul.f32 %v990, %v1067
        %v1104 = vmul.f32 %v990, %v1071
        %v1105 = vmul.f32 %v990, %v1075
        %v1106 = vmul.f32 %v990, %v1079
        %v1107 = vmul.f32 %v990, %v1083
        %v1108 = vmul.f32 %v994, %v1055
        %v1109 = vmul.f32 %v994, %v1059
        %v1110 = vmul.f32 %v994, %v1063
        %v1111 = vmul.f32 %v994, %v1067
        %v1112 = vmul.f32 %v994, %v1071
        %v1113 = vmul.f32 %v994, %v1075
        %v1114 = vmul.f32 %v994, %v1079
        %v1115 = vmul.f32 %v994, %v1083
        %v1116 = vmul.f32 %v998, %v1055
        %v1117 = vmul.f32 %v998, %v1059
        %v1118 = vmul.f32 %v998, %v1063
        %v1119 = vmul.f32 %v998, %v1067
        %v1120 = vmul.f32 %v998, %v1071
        %v1121 = vmul.f32 %v998, %v1075
        %v1122 = vmul.f32 %v998, %v1079
        %v1123 = vmul.f32 %v998, %v1083
        %v1124 = vmul.f32 %v1002, %v1055
        %v1125 = vmul.f32 %v1002, %v1059
        %v1126 = vmul.f32 %v1002, %v1063
        %v1127 = vmul.f32 %v1002, %v1067
        %v1128 = vmul.f32 %v1002, %v1071
        %v1129 = vmul.f32 %v1002, %v1075
        %v1130 = vmul.f32 %v1002, %v1079
        %v1131 = vmul.f32 %v1002, %v1083
        %v1132 = vmul.f32 %v1006, %v1055
        %v1133 = vmul.f32 %v1006, %v1059
        %v1134 = vmul.f32 %v1006, %v1063
        %v1135 = vmul.f32 %v1006, %v1067
        %v1136 = vmul.f32 %v1006, %v1071
        %v1137 = vmul.f32 %v1006, %v1075
        %v1138 = vmul.f32 %v1006, %v1079
        %v1139 = vmul.f32 %v1006, %v1083
        %v1140 = vmul.f32 %v1010, %v1055
        %v1141 = vmul.f32 %v1010, %v1059
        %v1142 = vmul.f32 %v1010, %v1063
        %v1143 = vmul.f32 %v1010, %v1067
        %v1144 = vmul.f32 %v1010, %v1071
        %v1145 = vmul.f32 %v1010, %v1075
        %v1146 = vmul.f32 %v1010, %v1079
        %v1147 = vmul.f32 %v1010, %v1083
        %v1148 = vadd.f32 %v916, %v1084
        %v1149 = vadd.f32 %v917, %v1085
        %v1150 = vadd.f32 %v918, %v1086
        %v1151 = vadd.f32 %v919, %v1087
        %v1152 = vadd.f32 %v920, %v1088
        %v1153 = vadd.f32 %v921, %v1089
        %v1154 = vadd.f32 %v922, %v1090
        %v1155 = vadd.f32 %v923, %v1091
        %v1156 = vadd.f32 %v924, %v1092
        %v1157 = vadd.f32 %v925, %v1093
        %v1158 = vadd.f32 %v926, %v1094
        %v1159 = vadd.f32 %v927, %v1095
        %v1160 = vadd.f32 %v928, %v1096
        %v1161 = vadd.f32 %v929, %v1097
        %v1162 = vadd.f32 %v930, %v1098
        %v1163 = vadd.f32 %v931, %v1099
        %v1164 = vadd.f32 %v932, %v1100
        %v1165 = vadd.f32 %v933, %v1101
        %v1166 = vadd.f32 %v934, %v1102
        %v1167 = vadd.f32 %v935, %v1103
        %v1168 = vadd.f32 %v936, %v1104
        %v1169 = vadd.f32 %v937, %v1105
        %v1170 = vadd.f32 %v938, %v1106
        %v1171 = vadd.f32 %v939, %v1107
        %v1172 = vadd.f32 %v940, %v1108
        %v1173 = vadd.f32 %v941, %v1109
        %v1174 = vadd.f32 %v942, %v1110
        %v1175 = vadd.f32 %v943, %v1111
        %v1176 = vadd.f32 %v944, %v1112
        %v1177 = vadd.f32 %v945, %v1113
        %v1178 = vadd.f32 %v946, %v1114
        %v1179 = vadd.f32 %v947, %v1115
        %v1180 = vadd.f32 %v948, %v1116
        %v1181 = vadd.f32 %v949, %v1117
        %v1182 = vadd.f32 %v950, %v1118
        %v1183 = vadd.f32 %v951, %v1119
        %v1184 = vadd.f32 %v952, %v1120
        %v1185 = vadd.f32 %v953, %v1121
        %v1186 = vadd.f32 %v954, %v1122
        %v1187 = vadd.f32 %v955, %v1123
        %v1188 = vadd.f32 %v956, %v1124
        %v1189 = vadd.f32 %v957, %v1125
        %v1190 = vadd.f32 %v958, %v1126
        %v1191 = vadd.f32 %v959, %v1127
        %v1192 = vadd.f32 %v960, %v1128
        %v1193 = vadd.f32 %v961, %v1129
        %v1194 = vadd.f32 %v962, %v1130
        %v1195 = vadd.f32 %v963, %v1131
        %v1196 = vadd.f32 %v964, %v1132
        %v1197 = vadd.f32 %v965, %v1133
        %v1198 = vadd.f32 %v966, %v1134
        %v1199 = vadd.f32 %v967, %v1135
        %v1200 = vadd.f32 %v968, %v1136
        %v1201 = vadd.f32 %v969, %v1137
        %v1202 = vadd.f32 %v970, %v1138
        %v1203 = vadd.f32 %v971, %v1139
        %v1204 = vadd.f32 %v972, %v1140
        %v1205 = vadd.f32 %v973, %v1141
        %v1206 = vadd.f32 %v974, %v1142
        %v1207 = vadd.f32 %v975, %v1143
        %v1208 = vadd.f32 %v976, %v1144
        %v1209 = vadd.f32 %v977, %v1145
        %v1210 = vadd.f32 %v978, %v1146
        %v1211 = vadd.f32 %v979, %v1147
        %v1212 = vmul.f32 %v1148, 100.0
        %v1213 = vmul.f32 %v1149, 100.0
        %v1214 = vmul.f32 %v1150, 100.0
        %v1215 = vmul.f32 %v1151, 100.0
        %v1216 = vmul.f32 %v1152, 100.0
        %v1217 = vmul.f32 %v1153, 100.0
        %v1218 = vmul.f32 %v1154, 100.0
        %v1219 = vmul.f32 %v1155, 100.0
        %v1220 = vmul.f32 %v1156, 100.0
        %v1221 = vmul.f32 %v1157, 100.0
        %v1222 = vmul.f32 %v1158, 100.0
        %v1223 = vmul.f32 %v1159, 100.0
        %v1224 = vmul.f32 %v1160, 100.0
        %v1225 = vmul.f32 %v1161, 100.0
        %v1226 = vmul.f32 %v1162, 100.0
        %v1227 = vmul.f32 %v1163, 100.0
        %v1228 = vmul.f32 %v1164, 100.0
        %v1229 = vmul.f32 %v1165, 100.0
        %v1230 = vmul.f32 %v1166, 100.0
        %v1231 = vmul.f32 %v1167, 100.0
        %v1232 = vmul.f32 %v1168, 100.0
        %v1233 = vmul.f32 %v1169, 100.0
        %v1234 = vmul.f32 %v1170, 100.0
        %v1235 = vmul.f32 %v1171, 100.0
        %v1236 = vmul.f32 %v1172, 100.0
        %v1237 = vmul.f32 %v1173, 100.0
        %v1238 = vmul.f32 %v1174, 100.0
        %v1239 = vmul.f32 %v1175, 100.0
        %v1240 = vmul.f32 %v1176, 100.0
        %v1241 = vmul.f32 %v1177, 100.0
        %v1242 = vmul.f32 %v1178, 100.0
        %v1243 = vmul.f32 %v1179, 100.0
        %v1244 = vmul.f32 %v1180, 100.0
        %v1245 = vmul.f32 %v1181, 100.0
        %v1246 = vmul.f32 %v1182, 100.0
        %v1247 = vmul.f32 %v1183, 100.0
        %v1248 = vmul.f32 %v1184, 100.0
        %v1249 = vmul.f32 %v1185, 100.0
        %v1250 = vmul.f32 %v1186, 100.0
        %v1251 = vmul.f32 %v1187, 100.0
        %v1252 = vmul.f32 %v1188, 100.0
        %v1253 = vmul.f32 %v1189, 100.0
        %v1254 = vmul.f32 %v1190, 100.0
        %v1255 = vmul.f32 %v1191, 100.0
        %v1256 = vmul.f32 %v1192, 100.0
        %v1257 = vmul.f32 %v1193, 100.0
        %v1258 = vmul.f32 %v1194, 100.0
        %v1259 = vmul.f32 %v1195, 100.0
        %v1260 = vmul.f32 %v1196, 100.0
        %v1261 = vmul.f32 %v1197, 100.0
        %v1262 = vmul.f32 %v1198, 100.0
        %v1263 = vmul.f32 %v1199, 100.0
        %v1264 = vmul.f32 %v1200, 100.0
        %v1265 = vmul.f32 %v1201, 100.0
        %v1266 = vmul.f32 %v1202, 100.0
        %v1267 = vmul.f32 %v1203, 100.0
        %v1268 = vmul.f32 %v1204, 100.0
        %v1269 = vmul.f32 %v1205, 100.0
        %v1270 = vmul.f32 %v1206, 100.0
        %v1271 = vmul.f32 %v1207, 100.0
        %v1272 = vmul.f32 %v1208, 100.0
        %v1273 = vmul.f32 %v1209, 100.0
        %v1274 = vmul.f32 %v1210, 100.0
        %v1275 = vmul.f32 %v1211, 100.0
        %vm1276 = vcmp.gt.f32.partialorder %v1212, 20.0
        %vm1277 = vcmp.gt.f32.partialorder %v1213, 20.0
        %vm1278 = vcmp.gt.f32.partialorder %v1214, 20.0
        %vm1279 = vcmp.gt.f32.partialorder %v1215, 20.0
        %vm1280 = vcmp.gt.f32.partialorder %v1216, 20.0
        %vm1281 = vcmp.gt.f32.partialorder %v1217, 20.0
        %vm1282 = vcmp.gt.f32.partialorder %v1218, 20.0
        %vm1283 = vcmp.gt.f32.partialorder %v1219, 20.0
        %vm1284 = vcmp.gt.f32.partialorder %v1220, 20.0
        %vm1285 = vcmp.gt.f32.partialorder %v1221, 20.0
        %vm1286 = vcmp.gt.f32.partialorder %v1222, 20.0
        %vm1287 = vcmp.gt.f32.partialorder %v1223, 20.0
        %vm1288 = vcmp.gt.f32.partialorder %v1224, 20.0
        %vm1289 = vcmp.gt.f32.partialorder %v1225, 20.0
        %vm1290 = vcmp.gt.f32.partialorder %v1226, 20.0
        %vm1291 = vcmp.gt.f32.partialorder %v1227, 20.0
        %vm1292 = vcmp.gt.f32.partialorder %v1228, 20.0
        %vm1293 = vcmp.gt.f32.partialorder %v1229, 20.0
        %vm1294 = vcmp.gt.f32.partialorder %v1230, 20.0
        %vm1295 = vcmp.gt.f32.partialorder %v1231, 20.0
        %vm1296 = vcmp.gt.f32.partialorder %v1232, 20.0
        %vm1297 = vcmp.gt.f32.partialorder %v1233, 20.0
        %vm1298 = vcmp.gt.f32.partialorder %v1234, 20.0
        %vm1299 = vcmp.gt.f32.partialorder %v1235, 20.0
        %vm1300 = vcmp.gt.f32.partialorder %v1236, 20.0
        %vm1301 = vcmp.gt.f32.partialorder %v1237, 20.0
        %vm1302 = vcmp.gt.f32.partialorder %v1238, 20.0
        %vm1303 = vcmp.gt.f32.partialorder %v1239, 20.0
        %vm1304 = vcmp.gt.f32.partialorder %v1240, 20.0
        %vm1305 = vcmp.gt.f32.partialorder %v1241, 20.0
        %vm1306 = vcmp.gt.f32.partialorder %v1242, 20.0
        %vm1307 = vcmp.gt.f32.partialorder %v1243, 20.0
        %vm1308 = vcmp.gt.f32.partialorder %v1244, 20.0
        %vm1309 = vcmp.gt.f32.partialorder %v1245, 20.0
        %vm1310 = vcmp.gt.f32.partialorder %v1246, 20.0
        %vm1311 = vcmp.gt.f32.partialorder %v1247, 20.0
        %vm1312 = vcmp.gt.f32.partialorder %v1248, 20.0
        %vm1313 = vcmp.gt.f32.partialorder %v1249, 20.0
        %vm1314 = vcmp.gt.f32.partialorder %v1250, 20.0
        %vm1315 = vcmp.gt.f32.partialorder %v1251, 20.0
        %vm1316 = vcmp.gt.f32.partialorder %v1252, 20.0
        %vm1317 = vcmp.gt.f32.partialorder %v1253, 20.0
        %vm1318 = vcmp.gt.f32.partialorder %v1254, 20.0
        %vm1319 = vcmp.gt.f32.partialorder %v1255, 20.0
        %vm1320 = vcmp.gt.f32.partialorder %v1256, 20.0
        %vm1321 = vcmp.gt.f32.partialorder %v1257, 20.0
        %vm1322 = vcmp.gt.f32.partialorder %v1258, 20.0
        %vm1323 = vcmp.gt.f32.partialorder %v1259, 20.0
        %vm1324 = vcmp.gt.f32.partialorder %v1260, 20.0
        %vm1325 = vcmp.gt.f32.partialorder %v1261, 20.0
        %vm1326 = vcmp.gt.f32.partialorder %v1262, 20.0
        %vm1327 = vcmp.gt.f32.partialorder %v1263, 20.0
        %vm1328 = vcmp.gt.f32.partialorder %v1264, 20.0
        %vm1329 = vcmp.gt.f32.partialorder %v1265, 20.0
        %vm1330 = vcmp.gt.f32.partialorder %v1266, 20.0
        %vm1331 = vcmp.gt.f32.partialorder %v1267, 20.0
        %vm1332 = vcmp.gt.f32.partialorder %v1268, 20.0
        %vm1333 = vcmp.gt.f32.partialorder %v1269, 20.0
        %vm1334 = vcmp.gt.f32.partialorder %v1270, 20.0
        %vm1335 = vcmp.gt.f32.partialorder %v1271, 20.0
        %vm1336 = vcmp.gt.f32.partialorder %v1272, 20.0
        %vm1337 = vcmp.gt.f32.partialorder %v1273, 20.0
        %vm1338 = vcmp.gt.f32.partialorder %v1274, 20.0
        %vm1339 = vcmp.gt.f32.partialorder %v1275, 20.0
        %v1340 = vmin.f32 %v1212, 20.0
        %v1341 = vmin.f32 %v1213, 20.0
        %v1342 = vmin.f32 %v1214, 20.0
        %v1343 = vmin.f32 %v1215, 20.0
        %v1344 = vmin.f32 %v1216, 20.0
        %v1345 = vmin.f32 %v1217, 20.0
        %v1346 = vmin.f32 %v1218, 20.0
        %v1347 = vmin.f32 %v1219, 20.0
        %v1348 = vmin.f32 %v1220, 20.0
        %v1349 = vmin.f32 %v1221, 20.0
        %v1350 = vmin.f32 %v1222, 20.0
        %v1351 = vmin.f32 %v1223, 20.0
        %v1352 = vmin.f32 %v1224, 20.0
        %v1353 = vmin.f32 %v1225, 20.0
        %v1354 = vmin.f32 %v1226, 20.0
        %v1355 = vmin.f32 %v1227, 20.0
        %v1356 = vmin.f32 %v1228, 20.0
        %v1357 = vmin.f32 %v1229, 20.0
        %v1358 = vmin.f32 %v1230, 20.0
        %v1359 = vmin.f32 %v1231, 20.0
        %v1360 = vmin.f32 %v1232, 20.0
        %v1361 = vmin.f32 %v1233, 20.0
        %v1362 = vmin.f32 %v1234, 20.0
        %v1363 = vmin.f32 %v1235, 20.0
        %v1364 = vmin.f32 %v1236, 20.0
        %v1365 = vmin.f32 %v1237, 20.0
        %v1366 = vmin.f32 %v1238, 20.0
        %v1367 = vmin.f32 %v1239, 20.0
        %v1368 = vmin.f32 %v1240, 20.0
        %v1369 = vmin.f32 %v1241, 20.0
        %v1370 = vmin.f32 %v1242, 20.0
        %v1371 = vmin.f32 %v1243, 20.0
        %v1372 = vmin.f32 %v1244, 20.0
        %v1373 = vmin.f32 %v1245, 20.0
        %v1374 = vmin.f32 %v1246, 20.0
        %v1375 = vmin.f32 %v1247, 20.0
        %v1376 = vmin.f32 %v1248, 20.0
        %v1377 = vmin.f32 %v1249, 20.0
        %v1378 = vmin.f32 %v1250, 20.0
        %v1379 = vmin.f32 %v1251, 20.0
        %v1380 = vmin.f32 %v1252, 20.0
        %v1381 = vmin.f32 %v1253, 20.0
        %v1382 = vmin.f32 %v1254, 20.0
        %v1383 = vmin.f32 %v1255, 20.0
        %v1384 = vmin.f32 %v1256, 20.0
        %v1385 = vmin.f32 %v1257, 20.0
        %v1386 = vmin.f32 %v1258, 20.0
        %v1387 = vmin.f32 %v1259, 20.0
        %v1388 = vmin.f32 %v1260, 20.0
        %v1389 = vmin.f32 %v1261, 20.0
        %v1390 = vmin.f32 %v1262, 20.0
        %v1391 = vmin.f32 %v1263, 20.0
        %v1392 = vmin.f32 %v1264, 20.0
        %v1393 = vmin.f32 %v1265, 20.0
        %v1394 = vmin.f32 %v1266, 20.0
        %v1395 = vmin.f32 %v1267, 20.0
        %v1396 = vmin.f32 %v1268, 20.0
        %v1397 = vmin.f32 %v1269, 20.0
        %v1398 = vmin.f32 %v1270, 20.0
        %v1399 = vmin.f32 %v1271, 20.0
        %v1400 = vmin.f32 %v1272, 20.0
        %v1401 = vmin.f32 %v1273, 20.0
        %v1402 = vmin.f32 %v1274, 20.0
        %v1403 = vmin.f32 %v1275, 20.0
        %v1404 = vmul.f32 %v1340, 1.442695
        %v1405 = vpow.pop %v1404
        %v1406 = vmul.f32 %v1341, 1.442695
        %v1407 = vpow.pop %v1406
        %v1408 = vmul.f32 %v1342, 1.442695
        %v1409 = vpow.pop %v1408
        %v1410 = vmul.f32 %v1343, 1.442695
        %v1411 = vpow.pop %v1410
        %v1412 = vmul.f32 %v1344, 1.442695
        %v1413 = vpow.pop %v1412
        %v1414 = vmul.f32 %v1345, 1.442695
        %v1415 = vpow.pop %v1414
        %v1416 = vmul.f32 %v1346, 1.442695
        %v1417 = vpow.pop %v1416
        %v1418 = vmul.f32 %v1347, 1.442695
        %v1419 = vpow.pop %v1418
        %v1420 = vmul.f32 %v1348, 1.442695
        %v1421 = vpow.pop %v1420
        %v1422 = vmul.f32 %v1349, 1.442695
        %v1423 = vpow.pop %v1422
        %v1424 = vmul.f32 %v1350, 1.442695
        %v1425 = vpow.pop %v1424
        %v1426 = vmul.f32 %v1351, 1.442695
        %v1427 = vpow.pop %v1426
        %v1428 = vmul.f32 %v1352, 1.442695
        %v1429 = vpow.pop %v1428
        %v1430 = vmul.f32 %v1353, 1.442695
        %v1431 = vpow.pop %v1430
        %v1432 = vmul.f32 %v1354, 1.442695
        %v1433 = vpow.pop %v1432
        %v1434 = vmul.f32 %v1355, 1.442695
        %v1435 = vpow.pop %v1434
        %v1436 = vmul.f32 %v1356, 1.442695
        %v1437 = vpow.pop %v1436
        %v1438 = vmul.f32 %v1357, 1.442695
        %v1439 = vpow.pop %v1438
        %v1440 = vmul.f32 %v1358, 1.442695
        %v1441 = vpow.pop %v1440
        %v1442 = vmul.f32 %v1359, 1.442695
        %v1443 = vpow.pop %v1442
        %v1444 = vmul.f32 %v1360, 1.442695
        %v1445 = vpow.pop %v1444
        %v1446 = vmul.f32 %v1361, 1.442695
        %v1447 = vpow.pop %v1446
        %v1448 = vmul.f32 %v1362, 1.442695
        %v1449 = vpow.pop %v1448
        %v1450 = vmul.f32 %v1363, 1.442695
        %v1451 = vpow.pop %v1450
        %v1452 = vmul.f32 %v1364, 1.442695
        %v1453 = vpow.pop %v1452
        %v1454 = vmul.f32 %v1365, 1.442695
        %v1455 = vpow.pop %v1454
        %v1456 = vmul.f32 %v1366, 1.442695
        %v1457 = vpow.pop %v1456
        %v1458 = vmul.f32 %v1367, 1.442695
        %v1459 = vpow.pop %v1458
        %v1460 = vmul.f32 %v1368, 1.442695
        %v1461 = vpow.pop %v1460
        %v1462 = vmul.f32 %v1369, 1.442695
        %v1463 = vpow.pop %v1462
        %v1464 = vmul.f32 %v1370, 1.442695
        %v1465 = vpow.pop %v1464
        %v1466 = vmul.f32 %v1371, 1.442695
        %v1467 = vpow.pop %v1466
        %v1468 = vmul.f32 %v1372, 1.442695
        %v1469 = vpow.pop %v1468
        %v1470 = vmul.f32 %v1373, 1.442695
        %v1471 = vpow.pop %v1470
        %v1472 = vmul.f32 %v1374, 1.442695
        %v1473 = vpow.pop %v1472
        %v1474 = vmul.f32 %v1375, 1.442695
        %v1475 = vpow.pop %v1474
        %v1476 = vmul.f32 %v1376, 1.442695
        %v1477 = vpow.pop %v1476
        %v1478 = vmul.f32 %v1377, 1.442695
        %v1479 = vpow.pop %v1478
        %v1480 = vmul.f32 %v1378, 1.442695
        %v1481 = vpow.pop %v1480
        %v1482 = vmul.f32 %v1379, 1.442695
        %v1483 = vpow.pop %v1482
        %v1484 = vmul.f32 %v1380, 1.442695
        %v1485 = vpow.pop %v1484
        %v1486 = vmul.f32 %v1381, 1.442695
        %v1487 = vpow.pop %v1486
        %v1488 = vmul.f32 %v1382, 1.442695
        %v1489 = vpow.pop %v1488
        %v1490 = vmul.f32 %v1383, 1.442695
        %v1491 = vpow.pop %v1490
        %v1492 = vmul.f32 %v1384, 1.442695
        %v1493 = vpow.pop %v1492
        %v1494 = vmul.f32 %v1385, 1.442695
        %v1495 = vpow.pop %v1494
        %v1496 = vmul.f32 %v1386, 1.442695
        %v1497 = vpow.pop %v1496
        %v1498 = vmul.f32 %v1387, 1.442695
        %v1499 = vpow.pop %v1498
        %v1500 = vmul.f32 %v1388, 1.442695
        %v1501 = vpow.pop %v1500
        %v1502 = vmul.f32 %v1389, 1.442695
        %v1503 = vpow.pop %v1502
        %v1504 = vmul.f32 %v1390, 1.442695
        %v1505 = vpow.pop %v1504
        %v1506 = vmul.f32 %v1391, 1.442695
        %v1507 = vpow.pop %v1506
        %v1508 = vmul.f32 %v1392, 1.442695
        %v1509 = vpow.pop %v1508
        %v1510 = vmul.f32 %v1393, 1.442695
        %v1511 = vpow.pop %v1510
        %v1512 = vmul.f32 %v1394, 1.442695
        %v1513 = vpow.pop %v1512
        %v1514 = vmul.f32 %v1395, 1.442695
        %v1515 = vpow.pop %v1514
        %v1516 = vmul.f32 %v1396, 1.442695
        %v1517 = vpow.pop %v1516
        %v1518 = vmul.f32 %v1397, 1.442695
        %v1519 = vpow.pop %v1518
        %v1520 = vmul.f32 %v1398, 1.442695
        %v1521 = vpow.pop %v1520
        %v1522 = vmul.f32 %v1399, 1.442695
        %v1523 = vpow.pop %v1522
        %v1524 = vmul.f32 %v1400, 1.442695
        %v1525 = vpow.pop %v1524
        %v1526 = vmul.f32 %v1401, 1.442695
        %v1527 = vpow.pop %v1526
        %v1528 = vmul.f32 %v1402, 1.442695
        %v1529 = vpow.pop %v1528
        %v1530 = vmul.f32 %v1403, 1.442695
        %v1531 = vpow.pop %v1530
        %v1532 = vadd.f32 %v1405, 1.0
        %v1533 = vadd.f32 %v1407, 1.0
        %v1534 = vadd.f32 %v1409, 1.0
        %v1535 = vadd.f32 %v1411, 1.0
        %v1536 = vadd.f32 %v1413, 1.0
        %v1537 = vadd.f32 %v1415, 1.0
        %v1538 = vadd.f32 %v1417, 1.0
        %v1539 = vadd.f32 %v1419, 1.0
        %v1540 = vadd.f32 %v1421, 1.0
        %v1541 = vadd.f32 %v1423, 1.0
        %v1542 = vadd.f32 %v1425, 1.0
        %v1543 = vadd.f32 %v1427, 1.0
        %v1544 = vadd.f32 %v1429, 1.0
        %v1545 = vadd.f32 %v1431, 1.0
        %v1546 = vadd.f32 %v1433, 1.0
        %v1547 = vadd.f32 %v1435, 1.0
        %v1548 = vadd.f32 %v1437, 1.0
        %v1549 = vadd.f32 %v1439, 1.0
        %v1550 = vadd.f32 %v1441, 1.0
        %v1551 = vadd.f32 %v1443, 1.0
        %v1552 = vadd.f32 %v1445, 1.0
        %v1553 = vadd.f32 %v1447, 1.0
        %v1554 = vadd.f32 %v1449, 1.0
        %v1555 = vadd.f32 %v1451, 1.0
        %v1556 = vadd.f32 %v1453, 1.0
        %v1557 = vadd.f32 %v1455, 1.0
        %v1558 = vadd.f32 %v1457, 1.0
        %v1559 = vadd.f32 %v1459, 1.0
        %v1560 = vadd.f32 %v1461, 1.0
        %v1561 = vadd.f32 %v1463, 1.0
        %v1562 = vadd.f32 %v1465, 1.0
        %v1563 = vadd.f32 %v1467, 1.0
        %v1564 = vadd.f32 %v1469, 1.0
        %v1565 = vadd.f32 %v1471, 1.0
        %v1566 = vadd.f32 %v1473, 1.0
        %v1567 = vadd.f32 %v1475, 1.0
        %v1568 = vadd.f32 %v1477, 1.0
        %v1569 = vadd.f32 %v1479, 1.0
        %v1570 = vadd.f32 %v1481, 1.0
        %v1571 = vadd.f32 %v1483, 1.0
        %v1572 = vadd.f32 %v1485, 1.0
        %v1573 = vadd.f32 %v1487, 1.0
        %v1574 = vadd.f32 %v1489, 1.0
        %v1575 = vadd.f32 %v1491, 1.0
        %v1576 = vadd.f32 %v1493, 1.0
        %v1577 = vadd.f32 %v1495, 1.0
        %v1578 = vadd.f32 %v1497, 1.0
        %v1579 = vadd.f32 %v1499, 1.0
        %v1580 = vadd.f32 %v1501, 1.0
        %v1581 = vadd.f32 %v1503, 1.0
        %v1582 = vadd.f32 %v1505, 1.0
        %v1583 = vadd.f32 %v1507, 1.0
        %v1584 = vadd.f32 %v1509, 1.0
        %v1585 = vadd.f32 %v1511, 1.0
        %v1586 = vadd.f32 %v1513, 1.0
        %v1587 = vadd.f32 %v1515, 1.0
        %v1588 = vadd.f32 %v1517, 1.0
        %v1589 = vadd.f32 %v1519, 1.0
        %v1590 = vadd.f32 %v1521, 1.0
        %v1591 = vadd.f32 %v1523, 1.0
        %v1592 = vadd.f32 %v1525, 1.0
        %v1593 = vadd.f32 %v1527, 1.0
        %v1594 = vadd.f32 %v1529, 1.0
        %v1595 = vadd.f32 %v1531, 1.0
        %v1596 = vlog2.pop %v1532
        %v1597 = vmul.f32 %v1596, 0.6931472
        %v1598 = vlog2.pop %v1533
        %v1599 = vmul.f32 %v1598, 0.6931472
        %v1600 = vlog2.pop %v1534
        %v1601 = vmul.f32 %v1600, 0.6931472
        %v1602 = vlog2.pop %v1535
        %v1603 = vmul.f32 %v1602, 0.6931472
        %v1604 = vlog2.pop %v1536
        %v1605 = vmul.f32 %v1604, 0.6931472
        %v1606 = vlog2.pop %v1537
        %v1607 = vmul.f32 %v1606, 0.6931472
        %v1608 = vlog2.pop %v1538
        %v1609 = vmul.f32 %v1608, 0.6931472
        %v1610 = vlog2.pop %v1539
        %v1611 = vmul.f32 %v1610, 0.6931472
        %v1612 = vlog2.pop %v1540
        %v1613 = vmul.f32 %v1612, 0.6931472
        %v1614 = vlog2.pop %v1541
        %v1615 = vmul.f32 %v1614, 0.6931472
        %v1616 = vlog2.pop %v1542
        %v1617 = vmul.f32 %v1616, 0.6931472
        %v1618 = vlog2.pop %v1543
        %v1619 = vmul.f32 %v1618, 0.6931472
        %v1620 = vlog2.pop %v1544
        %v1621 = vmul.f32 %v1620, 0.6931472
        %v1622 = vlog2.pop %v1545
        %v1623 = vmul.f32 %v1622, 0.6931472
        %v1624 = vlog2.pop %v1546
        %v1625 = vmul.f32 %v1624, 0.6931472
        %v1626 = vlog2.pop %v1547
        %v1627 = vmul.f32 %v1626, 0.6931472
        %v1628 = vlog2.pop %v1548
        %v1629 = vmul.f32 %v1628, 0.6931472
        %v1630 = vlog2.pop %v1549
        %v1631 = vmul.f32 %v1630, 0.6931472
        %v1632 = vlog2.pop %v1550
        %v1633 = vmul.f32 %v1632, 0.6931472
        %v1634 = vlog2.pop %v1551
        %v1635 = vmul.f32 %v1634, 0.6931472
        %v1636 = vlog2.pop %v1552
        %v1637 = vmul.f32 %v1636, 0.6931472
        %v1638 = vlog2.pop %v1553
        %v1639 = vmul.f32 %v1638, 0.6931472
        %v1640 = vlog2.pop %v1554
        %v1641 = vmul.f32 %v1640, 0.6931472
        %v1642 = vlog2.pop %v1555
        %v1643 = vmul.f32 %v1642, 0.6931472
        %v1644 = vlog2.pop %v1556
        %v1645 = vmul.f32 %v1644, 0.6931472
        %v1646 = vlog2.pop %v1557
        %v1647 = vmul.f32 %v1646, 0.6931472
        %v1648 = vlog2.pop %v1558
        %v1649 = vmul.f32 %v1648, 0.6931472
        %v1650 = vlog2.pop %v1559
        %v1651 = vmul.f32 %v1650, 0.6931472
        %v1652 = vlog2.pop %v1560
        %v1653 = vmul.f32 %v1652, 0.6931472
        %v1654 = vlog2.pop %v1561
        %v1655 = vmul.f32 %v1654, 0.6931472
        %v1656 = vlog2.pop %v1562
        %v1657 = vmul.f32 %v1656, 0.6931472
        %v1658 = vlog2.pop %v1563
        %v1659 = vmul.f32 %v1658, 0.6931472
        %v1660 = vlog2.pop %v1564
        %v1661 = vmul.f32 %v1660, 0.6931472
        %v1662 = vlog2.pop %v1565
        %v1663 = vmul.f32 %v1662, 0.6931472
        %v1664 = vlog2.pop %v1566
        %v1665 = vmul.f32 %v1664, 0.6931472
        %v1666 = vlog2.pop %v1567
        %v1667 = vmul.f32 %v1666, 0.6931472
        %v1668 = vlog2.pop %v1568
        %v1669 = vmul.f32 %v1668, 0.6931472
        %v1670 = vlog2.pop %v1569
        %v1671 = vmul.f32 %v1670, 0.6931472
        %v1672 = vlog2.pop %v1570
        %v1673 = vmul.f32 %v1672, 0.6931472
        %v1674 = vlog2.pop %v1571
        %v1675 = vmul.f32 %v1674, 0.6931472
        %v1676 = vlog2.pop %v1572
        %v1677 = vmul.f32 %v1676, 0.6931472
        %v1678 = vlog2.pop %v1573
        %v1679 = vmul.f32 %v1678, 0.6931472
        %v1680 = vlog2.pop %v1574
        %v1681 = vmul.f32 %v1680, 0.6931472
        %v1682 = vlog2.pop %v1575
        %v1683 = vmul.f32 %v1682, 0.6931472
        %v1684 = vlog2.pop %v1576
        %v1685 = vmul.f32 %v1684, 0.6931472
        %v1686 = vlog2.pop %v1577
        %v1687 = vmul.f32 %v1686, 0.6931472
        %v1688 = vlog2.pop %v1578
        %v1689 = vmul.f32 %v1688, 0.6931472
        %v1690 = vlog2.pop %v1579
        %v1691 = vmul.f32 %v1690, 0.6931472
        %v1692 = vlog2.pop %v1580
        %v1693 = vmul.f32 %v1692, 0.6931472
        %v1694 = vlog2.pop %v1581
        %v1695 = vmul.f32 %v1694, 0.6931472
        %v1696 = vlog2.pop %v1582
        %v1697 = vmul.f32 %v1696, 0.6931472
        %v1698 = vlog2.pop %v1583
        %v1699 = vmul.f32 %v1698, 0.6931472
        %v1700 = vlog2.pop %v1584
        %v1701 = vmul.f32 %v1700, 0.6931472
        %v1702 = vlog2.pop %v1585
        %v1703 = vmul.f32 %v1702, 0.6931472
        %v1704 = vlog2.pop %v1586
        %v1705 = vmul.f32 %v1704, 0.6931472
        %v1706 = vlog2.pop %v1587
        %v1707 = vmul.f32 %v1706, 0.6931472
        %v1708 = vlog2.pop %v1588
        %v1709 = vmul.f32 %v1708, 0.6931472
        %v1710 = vlog2.pop %v1589
        %v1711 = vmul.f32 %v1710, 0.6931472
        %v1712 = vlog2.pop %v1590
        %v1713 = vmul.f32 %v1712, 0.6931472
        %v1714 = vlog2.pop %v1591
        %v1715 = vmul.f32 %v1714, 0.6931472
        %v1716 = vlog2.pop %v1592
        %v1717 = vmul.f32 %v1716, 0.6931472
        %v1718 = vlog2.pop %v1593
        %v1719 = vmul.f32 %v1718, 0.6931472
        %v1720 = vlog2.pop %v1594
        %v1721 = vmul.f32 %v1720, 0.6931472
        %v1722 = vlog2.pop %v1595
        %v1723 = vmul.f32 %v1722, 0.6931472
        %v1724 = vrcp.pop 100.0
        %v1725 = vmul.f32 %v1597, %v1724
        %v1726 = vmul.f32 %v1599, %v1724
        %v1727 = vmul.f32 %v1601, %v1724
        %v1728 = vmul.f32 %v1603, %v1724
        %v1729 = vmul.f32 %v1605, %v1724
        %v1730 = vmul.f32 %v1607, %v1724
        %v1731 = vmul.f32 %v1609, %v1724
        %v1732 = vmul.f32 %v1611, %v1724
        %v1733 = vmul.f32 %v1613, %v1724
        %v1734 = vmul.f32 %v1615, %v1724
        %v1735 = vmul.f32 %v1617, %v1724
        %v1736 = vmul.f32 %v1619, %v1724
        %v1737 = vmul.f32 %v1621, %v1724
        %v1738 = vmul.f32 %v1623, %v1724
        %v1739 = vmul.f32 %v1625, %v1724
        %v1740 = vmul.f32 %v1627, %v1724
        %v1741 = vmul.f32 %v1629, %v1724
        %v1742 = vmul.f32 %v1631, %v1724
        %v1743 = vmul.f32 %v1633, %v1724
        %v1744 = vmul.f32 %v1635, %v1724
        %v1745 = vmul.f32 %v1637, %v1724
        %v1746 = vmul.f32 %v1639, %v1724
        %v1747 = vmul.f32 %v1641, %v1724
        %v1748 = vmul.f32 %v1643, %v1724
        %v1749 = vmul.f32 %v1645, %v1724
        %v1750 = vmul.f32 %v1647, %v1724
        %v1751 = vmul.f32 %v1649, %v1724
        %v1752 = vmul.f32 %v1651, %v1724
        %v1753 = vmul.f32 %v1653, %v1724
        %v1754 = vmul.f32 %v1655, %v1724
        %v1755 = vmul.f32 %v1657, %v1724
        %v1756 = vmul.f32 %v1659, %v1724
        %v1757 = vmul.f32 %v1661, %v1724
        %v1758 = vmul.f32 %v1663, %v1724
        %v1759 = vmul.f32 %v1665, %v1724
        %v1760 = vmul.f32 %v1667, %v1724
        %v1761 = vmul.f32 %v1669, %v1724
        %v1762 = vmul.f32 %v1671, %v1724
        %v1763 = vmul.f32 %v1673, %v1724
        %v1764 = vmul.f32 %v1675, %v1724
        %v1765 = vmul.f32 %v1677, %v1724
        %v1766 = vmul.f32 %v1679, %v1724
        %v1767 = vmul.f32 %v1681, %v1724
        %v1768 = vmul.f32 %v1683, %v1724
        %v1769 = vmul.f32 %v1685, %v1724
        %v1770 = vmul.f32 %v1687, %v1724
        %v1771 = vmul.f32 %v1689, %v1724
        %v1772 = vmul.f32 %v1691, %v1724
        %v1773 = vmul.f32 %v1693, %v1724
        %v1774 = vmul.f32 %v1695, %v1724
        %v1775 = vmul.f32 %v1697, %v1724
        %v1776 = vmul.f32 %v1699, %v1724
        %v1777 = vmul.f32 %v1701, %v1724
        %v1778 = vmul.f32 %v1703, %v1724
        %v1779 = vmul.f32 %v1705, %v1724
        %v1780 = vmul.f32 %v1707, %v1724
        %v1781 = vmul.f32 %v1709, %v1724
        %v1782 = vmul.f32 %v1711, %v1724
        %v1783 = vmul.f32 %v1713, %v1724
        %v1784 = vmul.f32 %v1715, %v1724
        %v1785 = vmul.f32 %v1717, %v1724
        %v1786 = vmul.f32 %v1719, %v1724
        %v1787 = vmul.f32 %v1721, %v1724
        %v1788 = vmul.f32 %v1723, %v1724
        %v1789 = vsel %vm1276, %v1148, %v1725
        %v1790 = vsel %vm1277, %v1149, %v1726
        %v1791 = vsel %vm1278, %v1150, %v1727
        %v1792 = vsel %vm1279, %v1151, %v1728
        %v1793 = vsel %vm1280, %v1152, %v1729
        %v1794 = vsel %vm1281, %v1153, %v1730
        %v1795 = vsel %vm1282, %v1154, %v1731
        %v1796 = vsel %vm1283, %v1155, %v1732
        %v1797 = vsel %vm1284, %v1156, %v1733
        %v1798 = vsel %vm1285, %v1157, %v1734
        %v1799 = vsel %vm1286, %v1158, %v1735
        %v1800 = vsel %vm1287, %v1159, %v1736
        %v1801 = vsel %vm1288, %v1160, %v1737
        %v1802 = vsel %vm1289, %v1161, %v1738
        %v1803 = vsel %vm1290, %v1162, %v1739
        %v1804 = vsel %vm1291, %v1163, %v1740
        %v1805 = vsel %vm1292, %v1164, %v1741
        %v1806 = vsel %vm1293, %v1165, %v1742
        %v1807 = vsel %vm1294, %v1166, %v1743
        %v1808 = vsel %vm1295, %v1167, %v1744
        %v1809 = vsel %vm1296, %v1168, %v1745
        %v1810 = vsel %vm1297, %v1169, %v1746
        %v1811 = vsel %vm1298, %v1170, %v1747
        %v1812 = vsel %vm1299, %v1171, %v1748
        %v1813 = vsel %vm1300, %v1172, %v1749
        %v1814 = vsel %vm1301, %v1173, %v1750
        %v1815 = vsel %vm1302, %v1174, %v1751
        %v1816 = vsel %vm1303, %v1175, %v1752
        %v1817 = vsel %vm1304, %v1176, %v1753
        %v1818 = vsel %vm1305, %v1177, %v1754
        %v1819 = vsel %vm1306, %v1178, %v1755
        %v1820 = vsel %vm1307, %v1179, %v1756
        %v1821 = vsel %vm1308, %v1180, %v1757
        %v1822 = vsel %vm1309, %v1181, %v1758
        %v1823 = vsel %vm1310, %v1182, %v1759
        %v1824 = vsel %vm1311, %v1183, %v1760
        %v1825 = vsel %vm1312, %v1184, %v1761
        %v1826 = vsel %vm1313, %v1185, %v1762
        %v1827 = vsel %vm1314, %v1186, %v1763
        %v1828 = vsel %vm1315, %v1187, %v1764
        %v1829 = vsel %vm1316, %v1188, %v1765
        %v1830 = vsel %vm1317, %v1189, %v1766
        %v1831 = vsel %vm1318, %v1190, %v1767
        %v1832 = vsel %vm1319, %v1191, %v1768
        %v1833 = vsel %vm1320, %v1192, %v1769
        %v1834 = vsel %vm1321, %v1193, %v1770
        %v1835 = vsel %vm1322, %v1194, %v1771
        %v1836 = vsel %vm1323, %v1195, %v1772
        %v1837 = vsel %vm1324, %v1196, %v1773
        %v1838 = vsel %vm1325, %v1197, %v1774
        %v1839 = vsel %vm1326, %v1198, %v1775
        %v1840 = vsel %vm1327, %v1199, %v1776
        %v1841 = vsel %vm1328, %v1200, %v1777
        %v1842 = vsel %vm1329, %v1201, %v1778
        %v1843 = vsel %vm1330, %v1202, %v1779
        %v1844 = vsel %vm1331, %v1203, %v1780
        %v1845 = vsel %vm1332, %v1204, %v1781
        %v1846 = vsel %vm1333, %v1205, %v1782
        %v1847 = vsel %vm1334, %v1206, %v1783
        %v1848 = vsel %vm1335, %v1207, %v1784
        %v1849 = vsel %vm1336, %v1208, %v1785
        %v1850 = vsel %vm1337, %v1209, %v1786
        %v1851 = vsel %vm1338, %v1210, %v1787
        %v1852 = vsel %vm1339, %v1211, %v1788
        %v1853 = vld [vmem:[%s3] sm:$0xff]
        %v1854 = vld [vmem:[%s3 + $0x8] sm:$0xff]
        %v1855 = vld [vmem:[%s3 + $0x10] sm:$0xff]
        %v1856 = vld [vmem:[%s3 + $0x18] sm:$0xff]
        %v1857 = vld [vmem:[%s3 + $0x20] sm:$0xff]
        %v1858 = vld [vmem:[%s3 + $0x28] sm:$0xff]
        %v1859 = vld [vmem:[%s3 + $0x30] sm:$0xff]
        %v1860 = vld [vmem:[%s3 + $0x38] sm:$0xff]
        %v1861 = vld [vmem:[%s4] sm:$0xff]
        %v1862 = vld [vmem:[%s4 + $0x8] sm:$0xff]
        %v1863 = vld [vmem:[%s4 + $0x10] sm:$0xff]
        %v1864 = vld [vmem:[%s4 + $0x18] sm:$0xff]
        %v1865 = vld [vmem:[%s4 + $0x20] sm:$0xff]
        %v1866 = vld [vmem:[%s4 + $0x28] sm:$0xff]
        %v1867 = vld [vmem:[%s4 + $0x30] sm:$0xff]
        %v1868 = vld [vmem:[%s4 + $0x38] sm:$0xff]
        %1870 = vset.pattern.permute.xlu0 0
        %1871 = vperm.xlu0 %1870, %v1861
        %v1872 = vpop.permute.xlu0 %1871
        %1875 = vset.pattern.permute.xlu0 0
        %1876 = vperm.xlu0 %1875, %v1862
        %v1877 = vpop.permute.xlu0 %1876
        %1880 = vset.pattern.permute.xlu0 0
        %1881 = vperm.xlu0 %1880, %v1863
        %v1882 = vpop.permute.xlu0 %1881
        %1885 = vset.pattern.permute.xlu0 0
        %1886 = vperm.xlu0 %1885, %v1864
        %v1887 = vpop.permute.xlu0 %1886
        %1890 = vset.pattern.permute.xlu0 0
        %1891 = vperm.xlu0 %1890, %v1865
        %v1892 = vpop.permute.xlu0 %1891
        %1895 = vset.pattern.permute.xlu0 0
        %1896 = vperm.xlu0 %1895, %v1866
        %v1897 = vpop.permute.xlu0 %1896
        %1900 = vset.pattern.permute.xlu0 0
        %1901 = vperm.xlu0 %1900, %v1867
        %v1902 = vpop.permute.xlu0 %1901
        %1905 = vset.pattern.permute.xlu0 0
        %1906 = vperm.xlu0 %1905, %v1868
        %v1907 = vpop.permute.xlu0 %1906
        %vm1909 = vcmask 523264
        %v1911 = vsel %vm1909, %v1853, 0
        %v1914 = vsel %vm1909, %v1854, 0
        %v1917 = vsel %vm1909, %v1855, 0
        %v1920 = vsel %vm1909, %v1856, 0
        %v1923 = vsel %vm1909, %v1857, 0
        %v1926 = vsel %vm1909, %v1858, 0
        %v1929 = vsel %vm1909, %v1859, 0
        %v1932 = vsel %vm1909, %v1860, 0
        %1934 = vmatprep.subr.mxu0 0.0
        %1935 = vmatpush1.msra.mxu0 0.0
        %1936 = vmatprep.subr.mxu0 0.0
        %1937 = vmatpush1.msra.mxu0 0.0
        %1938 = vmatprep.subr.mxu0 0.0
        %1939 = vmatpush1.msra.mxu0 0.0
        %1940 = vmatprep.subr.mxu0 0.0
        %1941 = vmatpush1.msra.mxu0 0.0
        %1942 = vmatprep.subr.mxu0 0.0
        %1943 = vmatpush1.msra.mxu0 0.0
        %1944 = vmatprep.subr.mxu0 0.0
        %1945 = vmatpush1.msra.mxu0 0.0
        %1946 = vmatprep.subr.mxu0 0.0
        %1947 = vmatpush1.msra.mxu0 0.0
        %1948 = vmatprep.subr.mxu0 0.0
        %1949 = vmatpush1.msra.mxu0 0.0
        %1950 = vmatprep.subr.mxu0 %v1846
        %1951 = vmatpush1.msra.mxu0 %v1845
        %1952 = vmatprep.subr.mxu0 %v1838
        %1953 = vmatpush1.msra.mxu0 %v1837
        %1954 = vmatprep.subr.mxu0 %v1830
        %1955 = vmatpush1.msra.mxu0 %v1829
        %1956 = vmatprep.subr.mxu0 %v1822
        %1957 = vmatpush1.msra.mxu0 %v1821
        %1958 = vmatprep.subr.mxu0 %v1814
        %1959 = vmatpush1.msra.mxu0 %v1813
        %1960 = vmatprep.subr.mxu0 %v1806
        %1961 = vmatpush1.msra.mxu0 %v1805
        %1962 = vmatprep.subr.mxu0 %v1798
        %1963 = vmatpush1.msra.mxu0 %v1797
        %1964 = vmatprep.subr.mxu0 %v1790
        %1965 = vmatpush1.msra.mxu0 %v1789
        %1966 = vmatprep.subr.mxu0 0.0
        %1967 = vmatpush2.msra.mxu0 0.0
        %1968 = vmatprep.subr.mxu0 0.0
        %1969 = vmatpush2.msra.mxu0 0.0
        %1970 = vmatprep.subr.mxu0 0.0
        %1971 = vmatpush2.msra.mxu0 0.0
        %1972 = vmatprep.subr.mxu0 0.0
        %1973 = vmatpush2.msra.mxu0 0.0
        %1974 = vmatprep.subr.mxu0 0.0
        %1975 = vmatpush2.msra.mxu0 0.0
        %1976 = vmatprep.subr.mxu0 0.0
        %1977 = vmatpush2.msra.mxu0 0.0
        %1978 = vmatprep.subr.mxu0 0.0
        %1979 = vmatpush2.msra.mxu0 0.0
        %1980 = vmatprep.subr.mxu0 0.0
        %1981 = vmatpush2.msra.mxu0 0.0
        %1982 = vmatprep.subr.mxu0 0.0
        %1983 = vmatpush2.msra.mxu0 0.0
        %1984 = vmatprep.subr.mxu0 0.0
        %1985 = vmatpush2.msra.mxu0 0.0
        %1986 = vmatprep.subr.mxu0 0.0
        %1987 = vmatpush2.msra.mxu0 0.0
        %1988 = vmatprep.subr.mxu0 0.0
        %1989 = vmatpush2.msra.mxu0 0.0
        %1990 = vmatprep.subr.mxu0 0.0
        %1991 = vmatpush2.msra.mxu0 0.0
        %1992 = vmatprep.subr.mxu0 0.0
        %1993 = vmatpush2.msra.mxu0 0.0
        %1994 = vmatprep.subr.mxu0 0.0
        %1995 = vmatpush2.msra.mxu0 0.0
        %1996 = vmatprep.subr.mxu0 0.0
        %1997 = vmatpush2.msra.mxu0 0.0
        %1998 = vmatprep.mubr.f32.mxu0 0.0
        %1999 = vmatmul.mubr.f32.gmra.mxu0 %v1911
        %v2000 = vpop.f32.mrf.mxu0
        %v2001 = vadd.f32 %v1872, %v2000
        %v2002 = vpop.f32.mrf.mxu0
        %v2003 = vadd.f32 %v1872, %v2002
        %2004 = vmatprep.mubr.f32.mxu0 0.0
        %2005 = vmatmul.mubr.f32.gmra.mxu0 %v1914
        %v2006 = vpop.f32.mrf.mxu0
        %v2007 = vadd.f32 %v1877, %v2006
        %v2008 = vpop.f32.mrf.mxu0
        %v2009 = vadd.f32 %v1877, %v2008
        %2010 = vmatprep.mubr.f32.mxu0 0.0
        %2011 = vmatmul.mubr.f32.gmra.mxu0 %v1917
        %v2012 = vpop.f32.mrf.mxu0
        %v2013 = vadd.f32 %v1882, %v2012
        %v2014 = vpop.f32.mrf.mxu0
        %v2015 = vadd.f32 %v1882, %v2014
        %2016 = vmatprep.mubr.f32.mxu0 0.0
        %2017 = vmatmul.mubr.f32.gmra.mxu0 %v1920
        %v2018 = vpop.f32.mrf.mxu0
        %v2019 = vadd.f32 %v1887, %v2018
        %v2020 = vpop.f32.mrf.mxu0
        %v2021 = vadd.f32 %v1887, %v2020
        %2022 = vmatprep.mubr.f32.mxu0 0.0
        %2023 = vmatmul.mubr.f32.gmra.mxu0 %v1923
        %v2024 = vpop.f32.mrf.mxu0
        %v2025 = vadd.f32 %v1892, %v2024
        %v2026 = vpop.f32.mrf.mxu0
        %v2027 = vadd.f32 %v1892, %v2026
        %2028 = vmatprep.mubr.f32.mxu0 0.0
        %2029 = vmatmul.mubr.f32.gmra.mxu0 %v1926
        %v2030 = vpop.f32.mrf.mxu0
        %v2031 = vadd.f32 %v1897, %v2030
        %v2032 = vpop.f32.mrf.mxu0
        %v2033 = vadd.f32 %v1897, %v2032
        %2034 = vmatprep.mubr.f32.mxu0 0.0
        %2035 = vmatmul.mubr.f32.gmra.mxu0 %v1929
        %v2036 = vpop.f32.mrf.mxu0
        %v2037 = vadd.f32 %v1902, %v2036
        %v2038 = vpop.f32.mrf.mxu0
        %v2039 = vadd.f32 %v1902, %v2038
        %2040 = vmatprep.mubr.f32.mxu0 0.0
        %2041 = vmatmul.mubr.f32.gmra.mxu0 %v1932
        %v2042 = vpop.f32.mrf.mxu0
        %v2043 = vadd.f32 %v1907, %v2042
        %v2044 = vpop.f32.mrf.mxu0
        %v2045 = vadd.f32 %v1907, %v2044
        %2046 = vdwg.mxu0
        %2047 = vmatprep.subr.mxu0 0.0
        %2048 = vmatpush1.msra.mxu0 0.0
        %2049 = vmatprep.subr.mxu0 0.0
        %2050 = vmatpush1.msra.mxu0 0.0
        %2051 = vmatprep.subr.mxu0 0.0
        %2052 = vmatpush1.msra.mxu0 0.0
        %2053 = vmatprep.subr.mxu0 0.0
        %2054 = vmatpush1.msra.mxu0 0.0
        %2055 = vmatprep.subr.mxu0 0.0
        %2056 = vmatpush1.msra.mxu0 0.0
        %2057 = vmatprep.subr.mxu0 0.0
        %2058 = vmatpush1.msra.mxu0 0.0
        %2059 = vmatprep.subr.mxu0 0.0
        %2060 = vmatpush1.msra.mxu0 0.0
        %2061 = vmatprep.subr.mxu0 0.0
        %2062 = vmatpush1.msra.mxu0 0.0
        %2063 = vmatprep.subr.mxu0 %v1848
        %2064 = vmatpush1.msra.mxu0 %v1847
        %2065 = vmatprep.subr.mxu0 %v1840
        %2066 = vmatpush1.msra.mxu0 %v1839
        %2067 = vmatprep.subr.mxu0 %v1832
        %2068 = vmatpush1.msra.mxu0 %v1831
        %2069 = vmatprep.subr.mxu0 %v1824
        %2070 = vmatpush1.msra.mxu0 %v1823
        %2071 = vmatprep.subr.mxu0 %v1816
        %2072 = vmatpush1.msra.mxu0 %v1815
        %2073 = vmatprep.subr.mxu0 %v1808
        %2074 = vmatpush1.msra.mxu0 %v1807
        %2075 = vmatprep.subr.mxu0 %v1800
        %2076 = vmatpush1.msra.mxu0 %v1799
        %2077 = vmatprep.subr.mxu0 %v1792
        %2078 = vmatpush1.msra.mxu0 %v1791
        %2079 = vmatprep.subr.mxu0 0.0
        %2080 = vmatpush2.msra.mxu0 0.0
        %2081 = vmatprep.subr.mxu0 0.0
        %2082 = vmatpush2.msra.mxu0 0.0
        %2083 = vmatprep.subr.mxu0 0.0
        %2084 = vmatpush2.msra.mxu0 0.0
        %2085 = vmatprep.subr.mxu0 0.0
        %2086 = vmatpush2.msra.mxu0 0.0
        %2087 = vmatprep.subr.mxu0 0.0
        %2088 = vmatpush2.msra.mxu0 0.0
        %2089 = vmatprep.subr.mxu0 0.0
        %2090 = vmatpush2.msra.mxu0 0.0
        %2091 = vmatprep.subr.mxu0 0.0
        %2092 = vmatpush2.msra.mxu0 0.0
        %2093 = vmatprep.subr.mxu0 0.0
        %2094 = vmatpush2.msra.mxu0 0.0
        %2095 = vmatprep.subr.mxu0 0.0
        %2096 = vmatpush2.msra.mxu0 0.0
        %2097 = vmatprep.subr.mxu0 0.0
        %2098 = vmatpush2.msra.mxu0 0.0
        %2099 = vmatprep.subr.mxu0 0.0
        %2100 = vmatpush2.msra.mxu0 0.0
        %2101 = vmatprep.subr.mxu0 0.0
        %2102 = vmatpush2.msra.mxu0 0.0
        %2103 = vmatprep.subr.mxu0 0.0
        %2104 = vmatpush2.msra.mxu0 0.0
        %2105 = vmatprep.subr.mxu0 0.0
        %2106 = vmatpush2.msra.mxu0 0.0
        %2107 = vmatprep.subr.mxu0 0.0
        %2108 = vmatpush2.msra.mxu0 0.0
        %2109 = vmatprep.subr.mxu0 0.0
        %2110 = vmatpush2.msra.mxu0 0.0
        %2111 = vmatprep.mubr.f32.mxu0 0.0
        %2112 = vmatmul.mubr.f32.gmra.mxu0 %v1911
        %v2113 = vpop.f32.mrf.mxu0
        %v2114 = vadd.f32 %v1872, %v2113
        %v2115 = vpop.f32.mrf.mxu0
        %v2116 = vadd.f32 %v1872, %v2115
        %2117 = vmatprep.mubr.f32.mxu0 0.0
        %2118 = vmatmul.mubr.f32.gmra.mxu0 %v1914
        %v2119 = vpop.f32.mrf.mxu0
        %v2120 = vadd.f32 %v1877, %v2119
        %v2121 = vpop.f32.mrf.mxu0
        %v2122 = vadd.f32 %v1877, %v2121
        %2123 = vmatprep.mubr.f32.mxu0 0.0
        %2124 = vmatmul.mubr.f32.gmra.mxu0 %v1917
        %v2125 = vpop.f32.mrf.mxu0
        %v2126 = vadd.f32 %v1882, %v2125
        %v2127 = vpop.f32.mrf.mxu0
        %v2128 = vadd.f32 %v1882, %v2127
        %2129 = vmatprep.mubr.f32.mxu0 0.0
        %2130 = vmatmul.mubr.f32.gmra.mxu0 %v1920
        %v2131 = vpop.f32.mrf.mxu0
        %v2132 = vadd.f32 %v1887, %v2131
        %v2133 = vpop.f32.mrf.mxu0
        %v2134 = vadd.f32 %v1887, %v2133
        %2135 = vmatprep.mubr.f32.mxu0 0.0
        %2136 = vmatmul.mubr.f32.gmra.mxu0 %v1923
        %v2137 = vpop.f32.mrf.mxu0
        %v2138 = vadd.f32 %v1892, %v2137
        %v2139 = vpop.f32.mrf.mxu0
        %v2140 = vadd.f32 %v1892, %v2139
        %2141 = vmatprep.mubr.f32.mxu0 0.0
        %2142 = vmatmul.mubr.f32.gmra.mxu0 %v1926
        %v2143 = vpop.f32.mrf.mxu0
        %v2144 = vadd.f32 %v1897, %v2143
        %v2145 = vpop.f32.mrf.mxu0
        %v2146 = vadd.f32 %v1897, %v2145
        %2147 = vmatprep.mubr.f32.mxu0 0.0
        %2148 = vmatmul.mubr.f32.gmra.mxu0 %v1929
        %v2149 = vpop.f32.mrf.mxu0
        %v2150 = vadd.f32 %v1902, %v2149
        %v2151 = vpop.f32.mrf.mxu0
        %v2152 = vadd.f32 %v1902, %v2151
        %2153 = vmatprep.mubr.f32.mxu0 0.0
        %2154 = vmatmul.mubr.f32.gmra.mxu0 %v1932
        %v2155 = vpop.f32.mrf.mxu0
        %v2156 = vadd.f32 %v1907, %v2155
        %v2157 = vpop.f32.mrf.mxu0
        %v2158 = vadd.f32 %v1907, %v2157
        %2159 = vdwg.mxu0
        %2160 = vmatprep.subr.mxu0 0.0
        %2161 = vmatpush1.msra.mxu0 0.0
        %2162 = vmatprep.subr.mxu0 0.0
        %2163 = vmatpush1.msra.mxu0 0.0
        %2164 = vmatprep.subr.mxu0 0.0
        %2165 = vmatpush1.msra.mxu0 0.0
        %2166 = vmatprep.subr.mxu0 0.0
        %2167 = vmatpush1.msra.mxu0 0.0
        %2168 = vmatprep.subr.mxu0 0.0
        %2169 = vmatpush1.msra.mxu0 0.0
        %2170 = vmatprep.subr.mxu0 0.0
        %2171 = vmatpush1.msra.mxu0 0.0
        %2172 = vmatprep.subr.mxu0 0.0
        %2173 = vmatpush1.msra.mxu0 0.0
        %2174 = vmatprep.subr.mxu0 0.0
        %2175 = vmatpush1.msra.mxu0 0.0
        %2176 = vmatprep.subr.mxu0 %v1850
        %2177 = vmatpush1.msra.mxu0 %v1849
        %2178 = vmatprep.subr.mxu0 %v1842
        %2179 = vmatpush1.msra.mxu0 %v1841
        %2180 = vmatprep.subr.mxu0 %v1834
        %2181 = vmatpush1.msra.mxu0 %v1833
        %2182 = vmatprep.subr.mxu0 %v1826
        %2183 = vmatpush1.msra.mxu0 %v1825
        %2184 = vmatprep.subr.mxu0 %v1818
        %2185 = vmatpush1.msra.mxu0 %v1817
        %2186 = vmatprep.subr.mxu0 %v1810
        %2187 = vmatpush1.msra.mxu0 %v1809
        %2188 = vmatprep.subr.mxu0 %v1802
        %2189 = vmatpush1.msra.mxu0 %v1801
        %2190 = vmatprep.subr.mxu0 %v1794
        %2191 = vmatpush1.msra.mxu0 %v1793
        %2192 = vmatprep.subr.mxu0 0.0
        %2193 = vmatpush2.msra.mxu0 0.0
        %2194 = vmatprep.subr.mxu0 0.0
        %2195 = vmatpush2.msra.mxu0 0.0
        %2196 = vmatprep.subr.mxu0 0.0
        %2197 = vmatpush2.msra.mxu0 0.0
        %2198 = vmatprep.subr.mxu0 0.0
        %2199 = vmatpush2.msra.mxu0 0.0
        %2200 = vmatprep.subr.mxu0 0.0
        %2201 = vmatpush2.msra.mxu0 0.0
        %2202 = vmatprep.subr.mxu0 0.0
        %2203 = vmatpush2.msra.mxu0 0.0
        %2204 = vmatprep.subr.mxu0 0.0
        %2205 = vmatpush2.msra.mxu0 0.0
        %2206 = vmatprep.subr.mxu0 0.0
        %2207 = vmatpush2.msra.mxu0 0.0
        %2208 = vmatprep.subr.mxu0 0.0
        %2209 = vmatpush2.msra.mxu0 0.0
        %2210 = vmatprep.subr.mxu0 0.0
        %2211 = vmatpush2.msra.mxu0 0.0
        %2212 = vmatprep.subr.mxu0 0.0
        %2213 = vmatpush2.msra.mxu0 0.0
        %2214 = vmatprep.subr.mxu0 0.0
        %2215 = vmatpush2.msra.mxu0 0.0
        %2216 = vmatprep.subr.mxu0 0.0
        %2217 = vmatpush2.msra.mxu0 0.0
        %2218 = vmatprep.subr.mxu0 0.0
        %2219 = vmatpush2.msra.mxu0 0.0
        %2220 = vmatprep.subr.mxu0 0.0
        %2221 = vmatpush2.msra.mxu0 0.0
        %2222 = vmatprep.subr.mxu0 0.0
        %2223 = vmatpush2.msra.mxu0 0.0
        %2224 = vmatprep.mubr.f32.mxu0 0.0
        %2225 = vmatmul.mubr.f32.gmra.mxu0 %v1911
        %v2226 = vpop.f32.mrf.mxu0
        %v2227 = vadd.f32 %v1872, %v2226
        %v2228 = vpop.f32.mrf.mxu0
        %v2229 = vadd.f32 %v1872, %v2228
        %2230 = vmatprep.mubr.f32.mxu0 0.0
        %2231 = vmatmul.mubr.f32.gmra.mxu0 %v1914
        %v2232 = vpop.f32.mrf.mxu0
        %v2233 = vadd.f32 %v1877, %v2232
        %v2234 = vpop.f32.mrf.mxu0
        %v2235 = vadd.f32 %v1877, %v2234
        %2236 = vmatprep.mubr.f32.mxu0 0.0
        %2237 = vmatmul.mubr.f32.gmra.mxu0 %v1917
        %v2238 = vpop.f32.mrf.mxu0
        %v2239 = vadd.f32 %v1882, %v2238
        %v2240 = vpop.f32.mrf.mxu0
        %v2241 = vadd.f32 %v1882, %v2240
        %2242 = vmatprep.mubr.f32.mxu0 0.0
        %2243 = vmatmul.mubr.f32.gmra.mxu0 %v1920
        %v2244 = vpop.f32.mrf.mxu0
        %v2245 = vadd.f32 %v1887, %v2244
        %v2246 = vpop.f32.mrf.mxu0
        %v2247 = vadd.f32 %v1887, %v2246
        %2248 = vmatprep.mubr.f32.mxu0 0.0
        %2249 = vmatmul.mubr.f32.gmra.mxu0 %v1923
        %v2250 = vpop.f32.mrf.mxu0
        %v2251 = vadd.f32 %v1892, %v2250
        %v2252 = vpop.f32.mrf.mxu0
        %v2253 = vadd.f32 %v1892, %v2252
        %2254 = vmatprep.mubr.f32.mxu0 0.0
        %2255 = vmatmul.mubr.f32.gmra.mxu0 %v1926
        %v2256 = vpop.f32.mrf.mxu0
        %v2257 = vadd.f32 %v1897, %v2256
        %v2258 = vpop.f32.mrf.mxu0
        %v2259 = vadd.f32 %v1897, %v2258
        %2260 = vmatprep.mubr.f32.mxu0 0.0
        %2261 = vmatmul.mubr.f32.gmra.mxu0 %v1929
        %v2262 = vpop.f32.mrf.mxu0
        %v2263 = vadd.f32 %v1902, %v2262
        %v2264 = vpop.f32.mrf.mxu0
        %v2265 = vadd.f32 %v1902, %v2264
        %2266 = vmatprep.mubr.f32.mxu0 0.0
        %2267 = vmatmul.mubr.f32.gmra.mxu0 %v1932
        %v2268 = vpop.f32.mrf.mxu0
        %v2269 = vadd.f32 %v1907, %v2268
        %v2270 = vpop.f32.mrf.mxu0
        %v2271 = vadd.f32 %v1907, %v2270
        %2272 = vdwg.mxu0
        %2273 = vmatprep.subr.mxu0 0.0
        %2274 = vmatpush1.msra.mxu0 0.0
        %2275 = vmatprep.subr.mxu0 0.0
        %2276 = vmatpush1.msra.mxu0 0.0
        %2277 = vmatprep.subr.mxu0 0.0
        %2278 = vmatpush1.msra.mxu0 0.0
        %2279 = vmatprep.subr.mxu0 0.0
        %2280 = vmatpush1.msra.mxu0 0.0
        %2281 = vmatprep.subr.mxu0 0.0
        %2282 = vmatpush1.msra.mxu0 0.0
        %2283 = vmatprep.subr.mxu0 0.0
        %2284 = vmatpush1.msra.mxu0 0.0
        %2285 = vmatprep.subr.mxu0 0.0
        %2286 = vmatpush1.msra.mxu0 0.0
        %2287 = vmatprep.subr.mxu0 0.0
        %2288 = vmatpush1.msra.mxu0 0.0
        %2289 = vmatprep.subr.mxu0 %v1852
        %2290 = vmatpush1.msra.mxu0 %v1851
        %2291 = vmatprep.subr.mxu0 %v1844
        %2292 = vmatpush1.msra.mxu0 %v1843
        %2293 = vmatprep.subr.mxu0 %v1836
        %2294 = vmatpush1.msra.mxu0 %v1835
        %2295 = vmatprep.subr.mxu0 %v1828
        %2296 = vmatpush1.msra.mxu0 %v1827
        %2297 = vmatprep.subr.mxu0 %v1820
        %2298 = vmatpush1.msra.mxu0 %v1819
        %2299 = vmatprep.subr.mxu0 %v1812
        %2300 = vmatpush1.msra.mxu0 %v1811
        %2301 = vmatprep.subr.mxu0 %v1804
        %2302 = vmatpush1.msra.mxu0 %v1803
        %2303 = vmatprep.subr.mxu0 %v1796
        %2304 = vmatpush1.msra.mxu0 %v1795
        %2305 = vmatprep.subr.mxu0 0.0
        %2306 = vmatpush2.msra.mxu0 0.0
        %2307 = vmatprep.subr.mxu0 0.0
        %2308 = vmatpush2.msra.mxu0 0.0
        %2309 = vmatprep.subr.mxu0 0.0
        %2310 = vmatpush2.msra.mxu0 0.0
        %2311 = vmatprep.subr.mxu0 0.0
        %2312 = vmatpush2.msra.mxu0 0.0
        %2313 = vmatprep.subr.mxu0 0.0
        %2314 = vmatpush2.msra.mxu0 0.0
        %2315 = vmatprep.subr.mxu0 0.0
        %2316 = vmatpush2.msra.mxu0 0.0
        %2317 = vmatprep.subr.mxu0 0.0
        %2318 = vmatpush2.msra.mxu0 0.0
        %2319 = vmatprep.subr.mxu0 0.0
        %2320 = vmatpush2.msra.mxu0 0.0
        %2321 = vmatprep.subr.mxu0 0.0
        %2322 = vmatpush2.msra.mxu0 0.0
        %2323 = vmatprep.subr.mxu0 0.0
        %2324 = vmatpush2.msra.mxu0 0.0
        %2325 = vmatprep.subr.mxu0 0.0
        %2326 = vmatpush2.msra.mxu0 0.0
        %2327 = vmatprep.subr.mxu0 0.0
        %2328 = vmatpush2.msra.mxu0 0.0
        %2329 = vmatprep.subr.mxu0 0.0
        %2330 = vmatpush2.msra.mxu0 0.0
        %2331 = vmatprep.subr.mxu0 0.0
        %2332 = vmatpush2.msra.mxu0 0.0
        %2333 = vmatprep.subr.mxu0 0.0
        %2334 = vmatpush2.msra.mxu0 0.0
        %2335 = vmatprep.subr.mxu0 0.0
        %2336 = vmatpush2.msra.mxu0 0.0
        %2337 = vmatprep.mubr.f32.mxu0 0.0
        %2338 = vmatmul.mubr.f32.gmra.mxu0 %v1911
        %v2339 = vpop.f32.mrf.mxu0
        %v2340 = vadd.f32 %v1872, %v2339
        %v2341 = vpop.f32.mrf.mxu0
        %v2342 = vadd.f32 %v1872, %v2341
        %2343 = vmatprep.mubr.f32.mxu0 0.0
        %2344 = vmatmul.mubr.f32.gmra.mxu0 %v1914
        %v2345 = vpop.f32.mrf.mxu0
        %v2346 = vadd.f32 %v1877, %v2345
        %v2347 = vpop.f32.mrf.mxu0
        %v2348 = vadd.f32 %v1877, %v2347
        %2349 = vmatprep.mubr.f32.mxu0 0.0
        %2350 = vmatmul.mubr.f32.gmra.mxu0 %v1917
        %v2351 = vpop.f32.mrf.mxu0
        %v2352 = vadd.f32 %v1882, %v2351
        %v2353 = vpop.f32.mrf.mxu0
        %v2354 = vadd.f32 %v1882, %v2353
        %2355 = vmatprep.mubr.f32.mxu0 0.0
        %2356 = vmatmul.mubr.f32.gmra.mxu0 %v1920
        %v2357 = vpop.f32.mrf.mxu0
        %v2358 = vadd.f32 %v1887, %v2357
        %v2359 = vpop.f32.mrf.mxu0
        %v2360 = vadd.f32 %v1887, %v2359
        %2361 = vmatprep.mubr.f32.mxu0 0.0
        %2362 = vmatmul.mubr.f32.gmra.mxu0 %v1923
        %v2363 = vpop.f32.mrf.mxu0
        %v2364 = vadd.f32 %v1892, %v2363
        %v2365 = vpop.f32.mrf.mxu0
        %v2366 = vadd.f32 %v1892, %v2365
        %2367 = vmatprep.mubr.f32.mxu0 0.0
        %2368 = vmatmul.mubr.f32.gmra.mxu0 %v1926
        %v2369 = vpop.f32.mrf.mxu0
        %v2370 = vadd.f32 %v1897, %v2369
        %v2371 = vpop.f32.mrf.mxu0
        %v2372 = vadd.f32 %v1897, %v2371
        %2373 = vmatprep.mubr.f32.mxu0 0.0
        %2374 = vmatmul.mubr.f32.gmra.mxu0 %v1929
        %v2375 = vpop.f32.mrf.mxu0
        %v2376 = vadd.f32 %v1902, %v2375
        %v2377 = vpop.f32.mrf.mxu0
        %v2378 = vadd.f32 %v1902, %v2377
        %2379 = vmatprep.mubr.f32.mxu0 0.0
        %2380 = vmatmul.mubr.f32.gmra.mxu0 %v1932
        %v2381 = vpop.f32.mrf.mxu0
        %v2382 = vadd.f32 %v1907, %v2381
        %v2383 = vpop.f32.mrf.mxu0
        %v2384 = vadd.f32 %v1907, %v2383
        %2385 = vdwg.mxu0
        %v2386 = vmul.f32 %v2001, 100.0
        %v2387 = vmul.f32 %v2003, 100.0
        %v2388 = vmul.f32 %v2114, 100.0
        %v2389 = vmul.f32 %v2116, 100.0
        %v2390 = vmul.f32 %v2227, 100.0
        %v2391 = vmul.f32 %v2229, 100.0
        %v2392 = vmul.f32 %v2340, 100.0
        %v2393 = vmul.f32 %v2342, 100.0
        %v2394 = vmul.f32 %v2007, 100.0
        %v2395 = vmul.f32 %v2009, 100.0
        %v2396 = vmul.f32 %v2120, 100.0
        %v2397 = vmul.f32 %v2122, 100.0
        %v2398 = vmul.f32 %v2233, 100.0
        %v2399 = vmul.f32 %v2235, 100.0
        %v2400 = vmul.f32 %v2346, 100.0
        %v2401 = vmul.f32 %v2348, 100.0
        %v2402 = vmul.f32 %v2013, 100.0
        %v2403 = vmul.f32 %v2015, 100.0
        %v2404 = vmul.f32 %v2126, 100.0
        %v2405 = vmul.f32 %v2128, 100.0
        %v2406 = vmul.f32 %v2239, 100.0
        %v2407 = vmul.f32 %v2241, 100.0
        %v2408 = vmul.f32 %v2352, 100.0
        %v2409 = vmul.f32 %v2354, 100.0
        %v2410 = vmul.f32 %v2019, 100.0
        %v2411 = vmul.f32 %v2021, 100.0
        %v2412 = vmul.f32 %v2132, 100.0
        %v2413 = vmul.f32 %v2134, 100.0
        %v2414 = vmul.f32 %v2245, 100.0
        %v2415 = vmul.f32 %v2247, 100.0
        %v2416 = vmul.f32 %v2358, 100.0
        %v2417 = vmul.f32 %v2360, 100.0
        %v2418 = vmul.f32 %v2025, 100.0
        %v2419 = vmul.f32 %v2027, 100.0
        %v2420 = vmul.f32 %v2138, 100.0
        %v2421 = vmul.f32 %v2140, 100.0
        %v2422 = vmul.f32 %v2251, 100.0
        %v2423 = vmul.f32 %v2253, 100.0
        %v2424 = vmul.f32 %v2364, 100.0
        %v2425 = vmul.f32 %v2366, 100.0
        %v2426 = vmul.f32 %v2031, 100.0
        %v2427 = vmul.f32 %v2033, 100.0
        %v2428 = vmul.f32 %v2144, 100.0
        %v2429 = vmul.f32 %v2146, 100.0
        %v2430 = vmul.f32 %v2257, 100.0
        %v2431 = vmul.f32 %v2259, 100.0
        %v2432 = vmul.f32 %v2370, 100.0
        %v2433 = vmul.f32 %v2372, 100.0
        %v2434 = vmul.f32 %v2037, 100.0
        %v2435 = vmul.f32 %v2039, 100.0
        %v2436 = vmul.f32 %v2150, 100.0
        %v2437 = vmul.f32 %v2152, 100.0
        %v2438 = vmul.f32 %v2263, 100.0
        %v2439 = vmul.f32 %v2265, 100.0
        %v2440 = vmul.f32 %v2376, 100.0
        %v2441 = vmul.f32 %v2378, 100.0
        %v2442 = vmul.f32 %v2043, 100.0
        %v2443 = vmul.f32 %v2045, 100.0
        %v2444 = vmul.f32 %v2156, 100.0
        %v2445 = vmul.f32 %v2158, 100.0
        %v2446 = vmul.f32 %v2269, 100.0
        %v2447 = vmul.f32 %v2271, 100.0
        %v2448 = vmul.f32 %v2382, 100.0
        %v2449 = vmul.f32 %v2384, 100.0
        %vm2450 = vcmp.gt.f32.partialorder %v2386, 20.0
        %vm2451 = vcmp.gt.f32.partialorder %v2387, 20.0
        %vm2452 = vcmp.gt.f32.partialorder %v2388, 20.0
        %vm2453 = vcmp.gt.f32.partialorder %v2389, 20.0
        %vm2454 = vcmp.gt.f32.partialorder %v2390, 20.0
        %vm2455 = vcmp.gt.f32.partialorder %v2391, 20.0
        %vm2456 = vcmp.gt.f32.partialorder %v2392, 20.0
        %vm2457 = vcmp.gt.f32.partialorder %v2393, 20.0
        %vm2458 = vcmp.gt.f32.partialorder %v2394, 20.0
        %vm2459 = vcmp.gt.f32.partialorder %v2395, 20.0
        %vm2460 = vcmp.gt.f32.partialorder %v2396, 20.0
        %vm2461 = vcmp.gt.f32.partialorder %v2397, 20.0
        %vm2462 = vcmp.gt.f32.partialorder %v2398, 20.0
        %vm2463 = vcmp.gt.f32.partialorder %v2399, 20.0
        %vm2464 = vcmp.gt.f32.partialorder %v2400, 20.0
        %vm2465 = vcmp.gt.f32.partialorder %v2401, 20.0
        %vm2466 = vcmp.gt.f32.partialorder %v2402, 20.0
        %vm2467 = vcmp.gt.f32.partialorder %v2403, 20.0
        %vm2468 = vcmp.gt.f32.partialorder %v2404, 20.0
        %vm2469 = vcmp.gt.f32.partialorder %v2405, 20.0
        %vm2470 = vcmp.gt.f32.partialorder %v2406, 20.0
        %vm2471 = vcmp.gt.f32.partialorder %v2407, 20.0
        %vm2472 = vcmp.gt.f32.partialorder %v2408, 20.0
        %vm2473 = vcmp.gt.f32.partialorder %v2409, 20.0
        %vm2474 = vcmp.gt.f32.partialorder %v2410, 20.0
        %vm2475 = vcmp.gt.f32.partialorder %v2411, 20.0
        %vm2476 = vcmp.gt.f32.partialorder %v2412, 20.0
        %vm2477 = vcmp.gt.f32.partialorder %v2413, 20.0
        %vm2478 = vcmp.gt.f32.partialorder %v2414, 20.0
        %vm2479 = vcmp.gt.f32.partialorder %v2415, 20.0
        %vm2480 = vcmp.gt.f32.partialorder %v2416, 20.0
        %vm2481 = vcmp.gt.f32.partialorder %v2417, 20.0
        %vm2482 = vcmp.gt.f32.partialorder %v2418, 20.0
        %vm2483 = vcmp.gt.f32.partialorder %v2419, 20.0
        %vm2484 = vcmp.gt.f32.partialorder %v2420, 20.0
        %vm2485 = vcmp.gt.f32.partialorder %v2421, 20.0
        %vm2486 = vcmp.gt.f32.partialorder %v2422, 20.0
        %vm2487 = vcmp.gt.f32.partialorder %v2423, 20.0
        %vm2488 = vcmp.gt.f32.partialorder %v2424, 20.0
        %vm2489 = vcmp.gt.f32.partialorder %v2425, 20.0
        %vm2490 = vcmp.gt.f32.partialorder %v2426, 20.0
        %vm2491 = vcmp.gt.f32.partialorder %v2427, 20.0
        %vm2492 = vcmp.gt.f32.partialorder %v2428, 20.0
        %vm2493 = vcmp.gt.f32.partialorder %v2429, 20.0
        %vm2494 = vcmp.gt.f32.partialorder %v2430, 20.0
        %vm2495 = vcmp.gt.f32.partialorder %v2431, 20.0
        %vm2496 = vcmp.gt.f32.partialorder %v2432, 20.0
        %vm2497 = vcmp.gt.f32.partialorder %v2433, 20.0
        %vm2498 = vcmp.gt.f32.partialorder %v2434, 20.0
        %vm2499 = vcmp.gt.f32.partialorder %v2435, 20.0
        %vm2500 = vcmp.gt.f32.partialorder %v2436, 20.0
        %vm2501 = vcmp.gt.f32.partialorder %v2437, 20.0
        %vm2502 = vcmp.gt.f32.partialorder %v2438, 20.0
        %vm2503 = vcmp.gt.f32.partialorder %v2439, 20.0
        %vm2504 = vcmp.gt.f32.partialorder %v2440, 20.0
        %vm2505 = vcmp.gt.f32.partialorder %v2441, 20.0
        %vm2506 = vcmp.gt.f32.partialorder %v2442, 20.0
        %vm2507 = vcmp.gt.f32.partialorder %v2443, 20.0
        %vm2508 = vcmp.gt.f32.partialorder %v2444, 20.0
        %vm2509 = vcmp.gt.f32.partialorder %v2445, 20.0
        %vm2510 = vcmp.gt.f32.partialorder %v2446, 20.0
        %vm2511 = vcmp.gt.f32.partialorder %v2447, 20.0
        %vm2512 = vcmp.gt.f32.partialorder %v2448, 20.0
        %vm2513 = vcmp.gt.f32.partialorder %v2449, 20.0
        %v2514 = vmin.f32 %v2386, 20.0
        %v2515 = vmin.f32 %v2387, 20.0
        %v2516 = vmin.f32 %v2388, 20.0
        %v2517 = vmin.f32 %v2389, 20.0
        %v2518 = vmin.f32 %v2390, 20.0
        %v2519 = vmin.f32 %v2391, 20.0
        %v2520 = vmin.f32 %v2392, 20.0
        %v2521 = vmin.f32 %v2393, 20.0
        %v2522 = vmin.f32 %v2394, 20.0
        %v2523 = vmin.f32 %v2395, 20.0
        %v2524 = vmin.f32 %v2396, 20.0
        %v2525 = vmin.f32 %v2397, 20.0
        %v2526 = vmin.f32 %v2398, 20.0
        %v2527 = vmin.f32 %v2399, 20.0
        %v2528 = vmin.f32 %v2400, 20.0
        %v2529 = vmin.f32 %v2401, 20.0
        %v2530 = vmin.f32 %v2402, 20.0
        %v2531 = vmin.f32 %v2403, 20.0
        %v2532 = vmin.f32 %v2404, 20.0
        %v2533 = vmin.f32 %v2405, 20.0
        %v2534 = vmin.f32 %v2406, 20.0
        %v2535 = vmin.f32 %v2407, 20.0
        %v2536 = vmin.f32 %v2408, 20.0
        %v2537 = vmin.f32 %v2409, 20.0
        %v2538 = vmin.f32 %v2410, 20.0
        %v2539 = vmin.f32 %v2411, 20.0
        %v2540 = vmin.f32 %v2412, 20.0
        %v2541 = vmin.f32 %v2413, 20.0
        %v2542 = vmin.f32 %v2414, 20.0
        %v2543 = vmin.f32 %v2415, 20.0
        %v2544 = vmin.f32 %v2416, 20.0
        %v2545 = vmin.f32 %v2417, 20.0
        %v2546 = vmin.f32 %v2418, 20.0
        %v2547 = vmin.f32 %v2419, 20.0
        %v2548 = vmin.f32 %v2420, 20.0
        %v2549 = vmin.f32 %v2421, 20.0
        %v2550 = vmin.f32 %v2422, 20.0
        %v2551 = vmin.f32 %v2423, 20.0
        %v2552 = vmin.f32 %v2424, 20.0
        %v2553 = vmin.f32 %v2425, 20.0
        %v2554 = vmin.f32 %v2426, 20.0
        %v2555 = vmin.f32 %v2427, 20.0
        %v2556 = vmin.f32 %v2428, 20.0
        %v2557 = vmin.f32 %v2429, 20.0
        %v2558 = vmin.f32 %v2430, 20.0
        %v2559 = vmin.f32 %v2431, 20.0
        %v2560 = vmin.f32 %v2432, 20.0
        %v2561 = vmin.f32 %v2433, 20.0
        %v2562 = vmin.f32 %v2434, 20.0
        %v2563 = vmin.f32 %v2435, 20.0
        %v2564 = vmin.f32 %v2436, 20.0
        %v2565 = vmin.f32 %v2437, 20.0
        %v2566 = vmin.f32 %v2438, 20.0
        %v2567 = vmin.f32 %v2439, 20.0
        %v2568 = vmin.f32 %v2440, 20.0
        %v2569 = vmin.f32 %v2441, 20.0
        %v2570 = vmin.f32 %v2442, 20.0
        %v2571 = vmin.f32 %v2443, 20.0
        %v2572 = vmin.f32 %v2444, 20.0
        %v2573 = vmin.f32 %v2445, 20.0
        %v2574 = vmin.f32 %v2446, 20.0
        %v2575 = vmin.f32 %v2447, 20.0
        %v2576 = vmin.f32 %v2448, 20.0
        %v2577 = vmin.f32 %v2449, 20.0
        %v2578 = vmul.f32 %v2514, 1.442695
        %v2579 = vpow.pop %v2578
        %v2580 = vmul.f32 %v2515, 1.442695
        %v2581 = vpow.pop %v2580
        %v2582 = vmul.f32 %v2516, 1.442695
        %v2583 = vpow.pop %v2582
        %v2584 = vmul.f32 %v2517, 1.442695
        %v2585 = vpow.pop %v2584
        %v2586 = vmul.f32 %v2518, 1.442695
        %v2587 = vpow.pop %v2586
        %v2588 = vmul.f32 %v2519, 1.442695
        %v2589 = vpow.pop %v2588
        %v2590 = vmul.f32 %v2520, 1.442695
        %v2591 = vpow.pop %v2590
        %v2592 = vmul.f32 %v2521, 1.442695
        %v2593 = vpow.pop %v2592
        %v2594 = vmul.f32 %v2522, 1.442695
        %v2595 = vpow.pop %v2594
        %v2596 = vmul.f32 %v2523, 1.442695
        %v2597 = vpow.pop %v2596
        %v2598 = vmul.f32 %v2524, 1.442695
        %v2599 = vpow.pop %v2598
        %v2600 = vmul.f32 %v2525, 1.442695
        %v2601 = vpow.pop %v2600
        %v2602 = vmul.f32 %v2526, 1.442695
        %v2603 = vpow.pop %v2602
        %v2604 = vmul.f32 %v2527, 1.442695
        %v2605 = vpow.pop %v2604
        %v2606 = vmul.f32 %v2528, 1.442695
        %v2607 = vpow.pop %v2606
        %v2608 = vmul.f32 %v2529, 1.442695
        %v2609 = vpow.pop %v2608
        %v2610 = vmul.f32 %v2530, 1.442695
        %v2611 = vpow.pop %v2610
        %v2612 = vmul.f32 %v2531, 1.442695
        %v2613 = vpow.pop %v2612
        %v2614 = vmul.f32 %v2532, 1.442695
        %v2615 = vpow.pop %v2614
        %v2616 = vmul.f32 %v2533, 1.442695
        %v2617 = vpow.pop %v2616
        %v2618 = vmul.f32 %v2534, 1.442695
        %v2619 = vpow.pop %v2618
        %v2620 = vmul.f32 %v2535, 1.442695
        %v2621 = vpow.pop %v2620
        %v2622 = vmul.f32 %v2536, 1.442695
        %v2623 = vpow.pop %v2622
        %v2624 = vmul.f32 %v2537, 1.442695
        %v2625 = vpow.pop %v2624
        %v2626 = vmul.f32 %v2538, 1.442695
        %v2627 = vpow.pop %v2626
        %v2628 = vmul.f32 %v2539, 1.442695
        %v2629 = vpow.pop %v2628
        %v2630 = vmul.f32 %v2540, 1.442695
        %v2631 = vpow.pop %v2630
        %v2632 = vmul.f32 %v2541, 1.442695
        %v2633 = vpow.pop %v2632
        %v2634 = vmul.f32 %v2542, 1.442695
        %v2635 = vpow.pop %v2634
        %v2636 = vmul.f32 %v2543, 1.442695
        %v2637 = vpow.pop %v2636
        %v2638 = vmul.f32 %v2544, 1.442695
        %v2639 = vpow.pop %v2638
        %v2640 = vmul.f32 %v2545, 1.442695
        %v2641 = vpow.pop %v2640
        %v2642 = vmul.f32 %v2546, 1.442695
        %v2643 = vpow.pop %v2642
        %v2644 = vmul.f32 %v2547, 1.442695
        %v2645 = vpow.pop %v2644
        %v2646 = vmul.f32 %v2548, 1.442695
        %v2647 = vpow.pop %v2646
        %v2648 = vmul.f32 %v2549, 1.442695
        %v2649 = vpow.pop %v2648
        %v2650 = vmul.f32 %v2550, 1.442695
        %v2651 = vpow.pop %v2650
        %v2652 = vmul.f32 %v2551, 1.442695
        %v2653 = vpow.pop %v2652
        %v2654 = vmul.f32 %v2552, 1.442695
        %v2655 = vpow.pop %v2654
        %v2656 = vmul.f32 %v2553, 1.442695
        %v2657 = vpow.pop %v2656
        %v2658 = vmul.f32 %v2554, 1.442695
        %v2659 = vpow.pop %v2658
        %v2660 = vmul.f32 %v2555, 1.442695
        %v2661 = vpow.pop %v2660
        %v2662 = vmul.f32 %v2556, 1.442695
        %v2663 = vpow.pop %v2662
        %v2664 = vmul.f32 %v2557, 1.442695
        %v2665 = vpow.pop %v2664
        %v2666 = vmul.f32 %v2558, 1.442695
        %v2667 = vpow.pop %v2666
        %v2668 = vmul.f32 %v2559, 1.442695
        %v2669 = vpow.pop %v2668
        %v2670 = vmul.f32 %v2560, 1.442695
        %v2671 = vpow.pop %v2670
        %v2672 = vmul.f32 %v2561, 1.442695
        %v2673 = vpow.pop %v2672
        %v2674 = vmul.f32 %v2562, 1.442695
        %v2675 = vpow.pop %v2674
        %v2676 = vmul.f32 %v2563, 1.442695
        %v2677 = vpow.pop %v2676
        %v2678 = vmul.f32 %v2564, 1.442695
        %v2679 = vpow.pop %v2678
        %v2680 = vmul.f32 %v2565, 1.442695
        %v2681 = vpow.pop %v2680
        %v2682 = vmul.f32 %v2566, 1.442695
        %v2683 = vpow.pop %v2682
        %v2684 = vmul.f32 %v2567, 1.442695
        %v2685 = vpow.pop %v2684
        %v2686 = vmul.f32 %v2568, 1.442695
        %v2687 = vpow.pop %v2686
        %v2688 = vmul.f32 %v2569, 1.442695
        %v2689 = vpow.pop %v2688
        %v2690 = vmul.f32 %v2570, 1.442695
        %v2691 = vpow.pop %v2690
        %v2692 = vmul.f32 %v2571, 1.442695
        %v2693 = vpow.pop %v2692
        %v2694 = vmul.f32 %v2572, 1.442695
        %v2695 = vpow.pop %v2694
        %v2696 = vmul.f32 %v2573, 1.442695
        %v2697 = vpow.pop %v2696
        %v2698 = vmul.f32 %v2574, 1.442695
        %v2699 = vpow.pop %v2698
        %v2700 = vmul.f32 %v2575, 1.442695
        %v2701 = vpow.pop %v2700
        %v2702 = vmul.f32 %v2576, 1.442695
        %v2703 = vpow.pop %v2702
        %v2704 = vmul.f32 %v2577, 1.442695
        %v2705 = vpow.pop %v2704
        %v2706 = vadd.f32 %v2579, 1.0
        %v2707 = vadd.f32 %v2581, 1.0
        %v2708 = vadd.f32 %v2583, 1.0
        %v2709 = vadd.f32 %v2585, 1.0
        %v2710 = vadd.f32 %v2587, 1.0
        %v2711 = vadd.f32 %v2589, 1.0
        %v2712 = vadd.f32 %v2591, 1.0
        %v2713 = vadd.f32 %v2593, 1.0
        %v2714 = vadd.f32 %v2595, 1.0
        %v2715 = vadd.f32 %v2597, 1.0
        %v2716 = vadd.f32 %v2599, 1.0
        %v2717 = vadd.f32 %v2601, 1.0
        %v2718 = vadd.f32 %v2603, 1.0
        %v2719 = vadd.f32 %v2605, 1.0
        %v2720 = vadd.f32 %v2607, 1.0
        %v2721 = vadd.f32 %v2609, 1.0
        %v2722 = vadd.f32 %v2611, 1.0
        %v2723 = vadd.f32 %v2613, 1.0
        %v2724 = vadd.f32 %v2615, 1.0
        %v2725 = vadd.f32 %v2617, 1.0
        %v2726 = vadd.f32 %v2619, 1.0
        %v2727 = vadd.f32 %v2621, 1.0
        %v2728 = vadd.f32 %v2623, 1.0
        %v2729 = vadd.f32 %v2625, 1.0
        %v2730 = vadd.f32 %v2627, 1.0
        %v2731 = vadd.f32 %v2629, 1.0
        %v2732 = vadd.f32 %v2631, 1.0
        %v2733 = vadd.f32 %v2633, 1.0
        %v2734 = vadd.f32 %v2635, 1.0
        %v2735 = vadd.f32 %v2637, 1.0
        %v2736 = vadd.f32 %v2639, 1.0
        %v2737 = vadd.f32 %v2641, 1.0
        %v2738 = vadd.f32 %v2643, 1.0
        %v2739 = vadd.f32 %v2645, 1.0
        %v2740 = vadd.f32 %v2647, 1.0
        %v2741 = vadd.f32 %v2649, 1.0
        %v2742 = vadd.f32 %v2651, 1.0
        %v2743 = vadd.f32 %v2653, 1.0
        %v2744 = vadd.f32 %v2655, 1.0
        %v2745 = vadd.f32 %v2657, 1.0
        %v2746 = vadd.f32 %v2659, 1.0
        %v2747 = vadd.f32 %v2661, 1.0
        %v2748 = vadd.f32 %v2663, 1.0
        %v2749 = vadd.f32 %v2665, 1.0
        %v2750 = vadd.f32 %v2667, 1.0
        %v2751 = vadd.f32 %v2669, 1.0
        %v2752 = vadd.f32 %v2671, 1.0
        %v2753 = vadd.f32 %v2673, 1.0
        %v2754 = vadd.f32 %v2675, 1.0
        %v2755 = vadd.f32 %v2677, 1.0
        %v2756 = vadd.f32 %v2679, 1.0
        %v2757 = vadd.f32 %v2681, 1.0
        %v2758 = vadd.f32 %v2683, 1.0
        %v2759 = vadd.f32 %v2685, 1.0
        %v2760 = vadd.f32 %v2687, 1.0
        %v2761 = vadd.f32 %v2689, 1.0
        %v2762 = vadd.f32 %v2691, 1.0
        %v2763 = vadd.f32 %v2693, 1.0
        %v2764 = vadd.f32 %v2695, 1.0
        %v2765 = vadd.f32 %v2697, 1.0
        %v2766 = vadd.f32 %v2699, 1.0
        %v2767 = vadd.f32 %v2701, 1.0
        %v2768 = vadd.f32 %v2703, 1.0
        %v2769 = vadd.f32 %v2705, 1.0
        %v2770 = vlog2.pop %v2706
        %v2771 = vmul.f32 %v2770, 0.6931472
        %v2772 = vlog2.pop %v2707
        %v2773 = vmul.f32 %v2772, 0.6931472
        %v2774 = vlog2.pop %v2708
        %v2775 = vmul.f32 %v2774, 0.6931472
        %v2776 = vlog2.pop %v2709
        %v2777 = vmul.f32 %v2776, 0.6931472
        %v2778 = vlog2.pop %v2710
        %v2779 = vmul.f32 %v2778, 0.6931472
        %v2780 = vlog2.pop %v2711
        %v2781 = vmul.f32 %v2780, 0.6931472
        %v2782 = vlog2.pop %v2712
        %v2783 = vmul.f32 %v2782, 0.6931472
        %v2784 = vlog2.pop %v2713
        %v2785 = vmul.f32 %v2784, 0.6931472
        %v2786 = vlog2.pop %v2714
        %v2787 = vmul.f32 %v2786, 0.6931472
        %v2788 = vlog2.pop %v2715
        %v2789 = vmul.f32 %v2788, 0.6931472
        %v2790 = vlog2.pop %v2716
        %v2791 = vmul.f32 %v2790, 0.6931472
        %v2792 = vlog2.pop %v2717
        %v2793 = vmul.f32 %v2792, 0.6931472
        %v2794 = vlog2.pop %v2718
        %v2795 = vmul.f32 %v2794, 0.6931472
        %v2796 = vlog2.pop %v2719
        %v2797 = vmul.f32 %v2796, 0.6931472
        %v2798 = vlog2.pop %v2720
        %v2799 = vmul.f32 %v2798, 0.6931472
        %v2800 = vlog2.pop %v2721
        %v2801 = vmul.f32 %v2800, 0.6931472
        %v2802 = vlog2.pop %v2722
        %v2803 = vmul.f32 %v2802, 0.6931472
        %v2804 = vlog2.pop %v2723
        %v2805 = vmul.f32 %v2804, 0.6931472
        %v2806 = vlog2.pop %v2724
        %v2807 = vmul.f32 %v2806, 0.6931472
        %v2808 = vlog2.pop %v2725
        %v2809 = vmul.f32 %v2808, 0.6931472
        %v2810 = vlog2.pop %v2726
        %v2811 = vmul.f32 %v2810, 0.6931472
        %v2812 = vlog2.pop %v2727
        %v2813 = vmul.f32 %v2812, 0.6931472
        %v2814 = vlog2.pop %v2728
        %v2815 = vmul.f32 %v2814, 0.6931472
        %v2816 = vlog2.pop %v2729
        %v2817 = vmul.f32 %v2816, 0.6931472
        %v2818 = vlog2.pop %v2730
        %v2819 = vmul.f32 %v2818, 0.6931472
        %v2820 = vlog2.pop %v2731
        %v2821 = vmul.f32 %v2820, 0.6931472
        %v2822 = vlog2.pop %v2732
        %v2823 = vmul.f32 %v2822, 0.6931472
        %v2824 = vlog2.pop %v2733
        %v2825 = vmul.f32 %v2824, 0.6931472
        %v2826 = vlog2.pop %v2734
        %v2827 = vmul.f32 %v2826, 0.6931472
        %v2828 = vlog2.pop %v2735
        %v2829 = vmul.f32 %v2828, 0.6931472
        %v2830 = vlog2.pop %v2736
        %v2831 = vmul.f32 %v2830, 0.6931472
        %v2832 = vlog2.pop %v2737
        %v2833 = vmul.f32 %v2832, 0.6931472
        %v2834 = vlog2.pop %v2738
        %v2835 = vmul.f32 %v2834, 0.6931472
        %v2836 = vlog2.pop %v2739
        %v2837 = vmul.f32 %v2836, 0.6931472
        %v2838 = vlog2.pop %v2740
        %v2839 = vmul.f32 %v2838, 0.6931472
        %v2840 = vlog2.pop %v2741
        %v2841 = vmul.f32 %v2840, 0.6931472
        %v2842 = vlog2.pop %v2742
        %v2843 = vmul.f32 %v2842, 0.6931472
        %v2844 = vlog2.pop %v2743
        %v2845 = vmul.f32 %v2844, 0.6931472
        %v2846 = vlog2.pop %v2744
        %v2847 = vmul.f32 %v2846, 0.6931472
        %v2848 = vlog2.pop %v2745
        %v2849 = vmul.f32 %v2848, 0.6931472
        %v2850 = vlog2.pop %v2746
        %v2851 = vmul.f32 %v2850, 0.6931472
        %v2852 = vlog2.pop %v2747
        %v2853 = vmul.f32 %v2852, 0.6931472
        %v2854 = vlog2.pop %v2748
        %v2855 = vmul.f32 %v2854, 0.6931472
        %v2856 = vlog2.pop %v2749
        %v2857 = vmul.f32 %v2856, 0.6931472
        %v2858 = vlog2.pop %v2750
        %v2859 = vmul.f32 %v2858, 0.6931472
        %v2860 = vlog2.pop %v2751
        %v2861 = vmul.f32 %v2860, 0.6931472
        %v2862 = vlog2.pop %v2752
        %v2863 = vmul.f32 %v2862, 0.6931472
        %v2864 = vlog2.pop %v2753
        %v2865 = vmul.f32 %v2864, 0.6931472
        %v2866 = vlog2.pop %v2754
        %v2867 = vmul.f32 %v2866, 0.6931472
        %v2868 = vlog2.pop %v2755
        %v2869 = vmul.f32 %v2868, 0.6931472
        %v2870 = vlog2.pop %v2756
        %v2871 = vmul.f32 %v2870, 0.6931472
        %v2872 = vlog2.pop %v2757
        %v2873 = vmul.f32 %v2872, 0.6931472
        %v2874 = vlog2.pop %v2758
        %v2875 = vmul.f32 %v2874, 0.6931472
        %v2876 = vlog2.pop %v2759
        %v2877 = vmul.f32 %v2876, 0.6931472
        %v2878 = vlog2.pop %v2760
        %v2879 = vmul.f32 %v2878, 0.6931472
        %v2880 = vlog2.pop %v2761
        %v2881 = vmul.f32 %v2880, 0.6931472
        %v2882 = vlog2.pop %v2762
        %v2883 = vmul.f32 %v2882, 0.6931472
        %v2884 = vlog2.pop %v2763
        %v2885 = vmul.f32 %v2884, 0.6931472
        %v2886 = vlog2.pop %v2764
        %v2887 = vmul.f32 %v2886, 0.6931472
        %v2888 = vlog2.pop %v2765
        %v2889 = vmul.f32 %v2888, 0.6931472
        %v2890 = vlog2.pop %v2766
        %v2891 = vmul.f32 %v2890, 0.6931472
        %v2892 = vlog2.pop %v2767
        %v2893 = vmul.f32 %v2892, 0.6931472
        %v2894 = vlog2.pop %v2768
        %v2895 = vmul.f32 %v2894, 0.6931472
        %v2896 = vlog2.pop %v2769
        %v2897 = vmul.f32 %v2896, 0.6931472
        %v2898 = vmul.f32 %v2771, %v1724
        %v2899 = vmul.f32 %v2773, %v1724
        %v2900 = vmul.f32 %v2775, %v1724
        %v2901 = vmul.f32 %v2777, %v1724
        %v2902 = vmul.f32 %v2779, %v1724
        %v2903 = vmul.f32 %v2781, %v1724
        %v2904 = vmul.f32 %v2783, %v1724
        %v2905 = vmul.f32 %v2785, %v1724
        %v2906 = vmul.f32 %v2787, %v1724
        %v2907 = vmul.f32 %v2789, %v1724
        %v2908 = vmul.f32 %v2791, %v1724
        %v2909 = vmul.f32 %v2793, %v1724
        %v2910 = vmul.f32 %v2795, %v1724
        %v2911 = vmul.f32 %v2797, %v1724
        %v2912 = vmul.f32 %v2799, %v1724
        %v2913 = vmul.f32 %v2801, %v1724
        %v2914 = vmul.f32 %v2803, %v1724
        %v2915 = vmul.f32 %v2805, %v1724
        %v2916 = vmul.f32 %v2807, %v1724
        %v2917 = vmul.f32 %v2809, %v1724
        %v2918 = vmul.f32 %v2811, %v1724
        %v2919 = vmul.f32 %v2813, %v1724
        %v2920 = vmul.f32 %v2815, %v1724
        %v2921 = vmul.f32 %v2817, %v1724
        %v2922 = vmul.f32 %v2819, %v1724
        %v2923 = vmul.f32 %v2821, %v1724
        %v2924 = vmul.f32 %v2823, %v1724
        %v2925 = vmul.f32 %v2825, %v1724
        %v2926 = vmul.f32 %v2827, %v1724
        %v2927 = vmul.f32 %v2829, %v1724
        %v2928 = vmul.f32 %v2831, %v1724
        %v2929 = vmul.f32 %v2833, %v1724
        %v2930 = vmul.f32 %v2835, %v1724
        %v2931 = vmul.f32 %v2837, %v1724
        %v2932 = vmul.f32 %v2839, %v1724
        %v2933 = vmul.f32 %v2841, %v1724
        %v2934 = vmul.f32 %v2843, %v1724
        %v2935 = vmul.f32 %v2845, %v1724
        %v2936 = vmul.f32 %v2847, %v1724
        %v2937 = vmul.f32 %v2849, %v1724
        %v2938 = vmul.f32 %v2851, %v1724
        %v2939 = vmul.f32 %v2853, %v1724
        %v2940 = vmul.f32 %v2855, %v1724
        %v2941 = vmul.f32 %v2857, %v1724
        %v2942 = vmul.f32 %v2859, %v1724
        %v2943 = vmul.f32 %v2861, %v1724
        %v2944 = vmul.f32 %v2863, %v1724
        %v2945 = vmul.f32 %v2865, %v1724
        %v2946 = vmul.f32 %v2867, %v1724
        %v2947 = vmul.f32 %v2869, %v1724
        %v2948 = vmul.f32 %v2871, %v1724
        %v2949 = vmul.f32 %v2873, %v1724
        %v2950 = vmul.f32 %v2875, %v1724
        %v2951 = vmul.f32 %v2877, %v1724
        %v2952 = vmul.f32 %v2879, %v1724
        %v2953 = vmul.f32 %v2881, %v1724
        %v2954 = vmul.f32 %v2883, %v1724
        %v2955 = vmul.f32 %v2885, %v1724
        %v2956 = vmul.f32 %v2887, %v1724
        %v2957 = vmul.f32 %v2889, %v1724
        %v2958 = vmul.f32 %v2891, %v1724
        %v2959 = vmul.f32 %v2893, %v1724
        %v2960 = vmul.f32 %v2895, %v1724
        %v2961 = vmul.f32 %v2897, %v1724
        %v2962 = vsel %vm2450, %v2001, %v2898
        %v2963 = vsel %vm2451, %v2003, %v2899
        %v2964 = vsel %vm2452, %v2114, %v2900
        %v2965 = vsel %vm2453, %v2116, %v2901
        %v2966 = vsel %vm2454, %v2227, %v2902
        %v2967 = vsel %vm2455, %v2229, %v2903
        %v2968 = vsel %vm2456, %v2340, %v2904
        %v2969 = vsel %vm2457, %v2342, %v2905
        %v2970 = vsel %vm2458, %v2007, %v2906
        %v2971 = vsel %vm2459, %v2009, %v2907
        %v2972 = vsel %vm2460, %v2120, %v2908
        %v2973 = vsel %vm2461, %v2122, %v2909
        %v2974 = vsel %vm2462, %v2233, %v2910
        %v2975 = vsel %vm2463, %v2235, %v2911
        %v2976 = vsel %vm2464, %v2346, %v2912
        %v2977 = vsel %vm2465, %v2348, %v2913
        %v2978 = vsel %vm2466, %v2013, %v2914
        %v2979 = vsel %vm2467, %v2015, %v2915
        %v2980 = vsel %vm2468, %v2126, %v2916
        %v2981 = vsel %vm2469, %v2128, %v2917
        %v2982 = vsel %vm2470, %v2239, %v2918
        %v2983 = vsel %vm2471, %v2241, %v2919
        %v2984 = vsel %vm2472, %v2352, %v2920
        %v2985 = vsel %vm2473, %v2354, %v2921
        %v2986 = vsel %vm2474, %v2019, %v2922
        %v2987 = vsel %vm2475, %v2021, %v2923
        %v2988 = vsel %vm2476, %v2132, %v2924
        %v2989 = vsel %vm2477, %v2134, %v2925
        %v2990 = vsel %vm2478, %v2245, %v2926
        %v2991 = vsel %vm2479, %v2247, %v2927
        %v2992 = vsel %vm2480, %v2358, %v2928
        %v2993 = vsel %vm2481, %v2360, %v2929
        %v2994 = vsel %vm2482, %v2025, %v2930
        %v2995 = vsel %vm2483, %v2027, %v2931
        %v2996 = vsel %vm2484, %v2138, %v2932
        %v2997 = vsel %vm2485, %v2140, %v2933
        %v2998 = vsel %vm2486, %v2251, %v2934
        %v2999 = vsel %vm2487, %v2253, %v2935
        %v3000 = vsel %vm2488, %v2364, %v2936
        %v3001 = vsel %vm2489, %v2366, %v2937
        %v3002 = vsel %vm2490, %v2031, %v2938
        %v3003 = vsel %vm2491, %v2033, %v2939
        %v3004 = vsel %vm2492, %v2144, %v2940
        %v3005 = vsel %vm2493, %v2146, %v2941
        %v3006 = vsel %vm2494, %v2257, %v2942
        %v3007 = vsel %vm2495, %v2259, %v2943
        %v3008 = vsel %vm2496, %v2370, %v2944
        %v3009 = vsel %vm2497, %v2372, %v2945
        %v3010 = vsel %vm2498, %v2037, %v2946
        %v3011 = vsel %vm2499, %v2039, %v2947
        %v3012 = vsel %vm2500, %v2150, %v2948
        %v3013 = vsel %vm2501, %v2152, %v2949
        %v3014 = vsel %vm2502, %v2263, %v2950
        %v3015 = vsel %vm2503, %v2265, %v2951
        %v3016 = vsel %vm2504, %v2376, %v2952
        %v3017 = vsel %vm2505, %v2378, %v2953
        %v3018 = vsel %vm2506, %v2043, %v2954
        %v3019 = vsel %vm2507, %v2045, %v2955
        %v3020 = vsel %vm2508, %v2156, %v2956
        %v3021 = vsel %vm2509, %v2158, %v2957
        %v3022 = vsel %vm2510, %v2269, %v2958
        %v3023 = vsel %vm2511, %v2271, %v2959
        %v3024 = vsel %vm2512, %v2382, %v2960
        %v3025 = vsel %vm2513, %v2384, %v2961
        %v3026 = vld [vmem:[%s5] sm:$0x7]
        %v3027 = vld [vmem:[%s6] sm:$0x7]
        %3029 = vset.pattern.permute.xlu0 0
        %3030 = vperm.xlu0 %3029, %v3027
        %v3031 = vpop.permute.xlu0 %3030
        %v3034 = vsel %vm1909, %v3026, 0
        %3036 = vmatprep.subr.mxu0 0.0
        %3037 = vmatpush1.msra.mxu0 0.0
        %3038 = vmatprep.subr.mxu0 0.0
        %3039 = vmatpush1.msra.mxu0 0.0
        %3040 = vmatprep.subr.mxu0 0.0
        %3041 = vmatpush1.msra.mxu0 0.0
        %3042 = vmatprep.subr.mxu0 0.0
        %3043 = vmatpush1.msra.mxu0 0.0
        %3044 = vmatprep.subr.mxu0 0.0
        %3045 = vmatpush1.msra.mxu0 0.0
        %3046 = vmatprep.subr.mxu0 0.0
        %3047 = vmatpush1.msra.mxu0 0.0
        %3048 = vmatprep.subr.mxu0 0.0
        %3049 = vmatpush1.msra.mxu0 0.0
        %3050 = vmatprep.subr.mxu0 0.0
        %3051 = vmatpush1.msra.mxu0 0.0
        %3052 = vmatprep.subr.mxu0 %v3019
        %3053 = vmatpush1.msra.mxu0 %v3018
        %3054 = vmatprep.subr.mxu0 %v3011
        %3055 = vmatpush1.msra.mxu0 %v3010
        %3056 = vmatprep.subr.mxu0 %v3003
        %3057 = vmatpush1.msra.mxu0 %v3002
        %3058 = vmatprep.subr.mxu0 %v2995
        %3059 = vmatpush1.msra.mxu0 %v2994
        %3060 = vmatprep.subr.mxu0 %v2987
        %3061 = vmatpush1.msra.mxu0 %v2986
        %3062 = vmatprep.subr.mxu0 %v2979
        %3063 = vmatpush1.msra.mxu0 %v2978
        %3064 = vmatprep.subr.mxu0 %v2971
        %3065 = vmatpush1.msra.mxu0 %v2970
        %3066 = vmatprep.subr.mxu0 %v2963
        %3067 = vmatpush1.msra.mxu0 %v2962
        %3068 = vmatprep.subr.mxu0 0.0
        %3069 = vmatpush2.msra.mxu0 0.0
        %3070 = vmatprep.subr.mxu0 0.0
        %3071 = vmatpush2.msra.mxu0 0.0
        %3072 = vmatprep.subr.mxu0 0.0
        %3073 = vmatpush2.msra.mxu0 0.0
        %3074 = vmatprep.subr.mxu0 0.0
        %3075 = vmatpush2.msra.mxu0 0.0
        %3076 = vmatprep.subr.mxu0 0.0
        %3077 = vmatpush2.msra.mxu0 0.0
        %3078 = vmatprep.subr.mxu0 0.0
        %3079 = vmatpush2.msra.mxu0 0.0
        %3080 = vmatprep.subr.mxu0 0.0
        %3081 = vmatpush2.msra.mxu0 0.0
        %3082 = vmatprep.subr.mxu0 0.0
        %3083 = vmatpush2.msra.mxu0 0.0
        %3084 = vmatprep.subr.mxu0 0.0
        %3085 = vmatpush2.msra.mxu0 0.0
        %3086 = vmatprep.subr.mxu0 0.0
        %3087 = vmatpush2.msra.mxu0 0.0
        %3088 = vmatprep.subr.mxu0 0.0
        %3089 = vmatpush2.msra.mxu0 0.0
        %3090 = vmatprep.subr.mxu0 0.0
        %3091 = vmatpush2.msra.mxu0 0.0
        %3092 = vmatprep.subr.mxu0 0.0
        %3093 = vmatpush2.msra.mxu0 0.0
        %3094 = vmatprep.subr.mxu0 0.0
        %3095 = vmatpush2.msra.mxu0 0.0
        %3096 = vmatprep.subr.mxu0 0.0
        %3097 = vmatpush2.msra.mxu0 0.0
        %3098 = vmatprep.subr.mxu0 0.0
        %3099 = vmatpush2.msra.mxu0 0.0
        %3100 = vmatprep.mubr.f32.mxu0 0.0
        %3101 = vmatmul.mubr.f32.gmra.mxu0 %v3034
        %v3102 = vpop.f32.mrf.mxu0
        %v3103 = vadd.f32 %v3031, %v3102
        %v3104 = vpop.f32.mrf.mxu0
        %v3105 = vadd.f32 %v3031, %v3104
        %3106 = vdwg.mxu0
        %3107 = vmatprep.subr.mxu0 0.0
        %3108 = vmatpush1.msra.mxu0 0.0
        %3109 = vmatprep.subr.mxu0 0.0
        %3110 = vmatpush1.msra.mxu0 0.0
        %3111 = vmatprep.subr.mxu0 0.0
        %3112 = vmatpush1.msra.mxu0 0.0
        %3113 = vmatprep.subr.mxu0 0.0
        %3114 = vmatpush1.msra.mxu0 0.0
        %3115 = vmatprep.subr.mxu0 0.0
        %3116 = vmatpush1.msra.mxu0 0.0
        %3117 = vmatprep.subr.mxu0 0.0
        %3118 = vmatpush1.msra.mxu0 0.0
        %3119 = vmatprep.subr.mxu0 0.0
        %3120 = vmatpush1.msra.mxu0 0.0
        %3121 = vmatprep.subr.mxu0 0.0
        %3122 = vmatpush1.msra.mxu0 0.0
        %3123 = vmatprep.subr.mxu0 %v3021
        %3124 = vmatpush1.msra.mxu0 %v3020
        %3125 = vmatprep.subr.mxu0 %v3013
        %3126 = vmatpush1.msra.mxu0 %v3012
        %3127 = vmatprep.subr.mxu0 %v3005
        %3128 = vmatpush1.msra.mxu0 %v3004
        %3129 = vmatprep.subr.mxu0 %v2997
        %3130 = vmatpush1.msra.mxu0 %v2996
        %3131 = vmatprep.subr.mxu0 %v2989
        %3132 = vmatpush1.msra.mxu0 %v2988
        %3133 = vmatprep.subr.mxu0 %v2981
        %3134 = vmatpush1.msra.mxu0 %v2980
        %3135 = vmatprep.subr.mxu0 %v2973
        %3136 = vmatpush1.msra.mxu0 %v2972
        %3137 = vmatprep.subr.mxu0 %v2965
        %3138 = vmatpush1.msra.mxu0 %v2964
        %3139 = vmatprep.subr.mxu0 0.0
        %3140 = vmatpush2.msra.mxu0 0.0
        %3141 = vmatprep.subr.mxu0 0.0
        %3142 = vmatpush2.msra.mxu0 0.0
        %3143 = vmatprep.subr.mxu0 0.0
        %3144 = vmatpush2.msra.mxu0 0.0
        %3145 = vmatprep.subr.mxu0 0.0
        %3146 = vmatpush2.msra.mxu0 0.0
        %3147 = vmatprep.subr.mxu0 0.0
        %3148 = vmatpush2.msra.mxu0 0.0
        %3149 = vmatprep.subr.mxu0 0.0
        %3150 = vmatpush2.msra.mxu0 0.0
        %3151 = vmatprep.subr.mxu0 0.0
        %3152 = vmatpush2.msra.mxu0 0.0
        %3153 = vmatprep.subr.mxu0 0.0
        %3154 = vmatpush2.msra.mxu0 0.0
        %3155 = vmatprep.subr.mxu0 0.0
        %3156 = vmatpush2.msra.mxu0 0.0
        %3157 = vmatprep.subr.mxu0 0.0
        %3158 = vmatpush2.msra.mxu0 0.0
        %3159 = vmatprep.subr.mxu0 0.0
        %3160 = vmatpush2.msra.mxu0 0.0
        %3161 = vmatprep.subr.mxu0 0.0
        %3162 = vmatpush2.msra.mxu0 0.0
        %3163 = vmatprep.subr.mxu0 0.0
        %3164 = vmatpush2.msra.mxu0 0.0
        %3165 = vmatprep.subr.mxu0 0.0
        %3166 = vmatpush2.msra.mxu0 0.0
        %3167 = vmatprep.subr.mxu0 0.0
        %3168 = vmatpush2.msra.mxu0 0.0
        %3169 = vmatprep.subr.mxu0 0.0
        %3170 = vmatpush2.msra.mxu0 0.0
        %3171 = vmatprep.mubr.f32.mxu0 0.0
        %3172 = vmatmul.mubr.f32.gmra.mxu0 %v3034
        %v3173 = vpop.f32.mrf.mxu0
        %v3174 = vadd.f32 %v3031, %v3173
        %v3175 = vpop.f32.mrf.mxu0
        %v3176 = vadd.f32 %v3031, %v3175
        %3177 = vdwg.mxu0
        %3178 = vmatprep.subr.mxu0 0.0
        %3179 = vmatpush1.msra.mxu0 0.0
        %3180 = vmatprep.subr.mxu0 0.0
        %3181 = vmatpush1.msra.mxu0 0.0
        %3182 = vmatprep.subr.mxu0 0.0
        %3183 = vmatpush1.msra.mxu0 0.0
        %3184 = vmatprep.subr.mxu0 0.0
        %3185 = vmatpush1.msra.mxu0 0.0
        %3186 = vmatprep.subr.mxu0 0.0
        %3187 = vmatpush1.msra.mxu0 0.0
        %3188 = vmatprep.subr.mxu0 0.0
        %3189 = vmatpush1.msra.mxu0 0.0
        %3190 = vmatprep.subr.mxu0 0.0
        %3191 = vmatpush1.msra.mxu0 0.0
        %3192 = vmatprep.subr.mxu0 0.0
        %3193 = vmatpush1.msra.mxu0 0.0
        %3194 = vmatprep.subr.mxu0 %v3023
        %3195 = vmatpush1.msra.mxu0 %v3022
        %3196 = vmatprep.subr.mxu0 %v3015
        %3197 = vmatpush1.msra.mxu0 %v3014
        %3198 = vmatprep.subr.mxu0 %v3007
        %3199 = vmatpush1.msra.mxu0 %v3006
        %3200 = vmatprep.subr.mxu0 %v2999
        %3201 = vmatpush1.msra.mxu0 %v2998
        %3202 = vmatprep.subr.mxu0 %v2991
        %3203 = vmatpush1.msra.mxu0 %v2990
        %3204 = vmatprep.subr.mxu0 %v2983
        %3205 = vmatpush1.msra.mxu0 %v2982
        %3206 = vmatprep.subr.mxu0 %v2975
        %3207 = vmatpush1.msra.mxu0 %v2974
        %3208 = vmatprep.subr.mxu0 %v2967
        %3209 = vmatpush1.msra.mxu0 %v2966
        %3210 = vmatprep.subr.mxu0 0.0
        %3211 = vmatpush2.msra.mxu0 0.0
        %3212 = vmatprep.subr.mxu0 0.0
        %3213 = vmatpush2.msra.mxu0 0.0
        %3214 = vmatprep.subr.mxu0 0.0
        %3215 = vmatpush2.msra.mxu0 0.0
        %3216 = vmatprep.subr.mxu0 0.0
        %3217 = vmatpush2.msra.mxu0 0.0
        %3218 = vmatprep.subr.mxu0 0.0
        %3219 = vmatpush2.msra.mxu0 0.0
        %3220 = vmatprep.subr.mxu0 0.0
        %3221 = vmatpush2.msra.mxu0 0.0
        %3222 = vmatprep.subr.mxu0 0.0
        %3223 = vmatpush2.msra.mxu0 0.0
        %3224 = vmatprep.subr.mxu0 0.0
        %3225 = vmatpush2.msra.mxu0 0.0
        %3226 = vmatprep.subr.mxu0 0.0
        %3227 = vmatpush2.msra.mxu0 0.0
        %3228 = vmatprep.subr.mxu0 0.0
        %3229 = vmatpush2.msra.mxu0 0.0
        %3230 = vmatprep.subr.mxu0 0.0
        %3231 = vmatpush2.msra.mxu0 0.0
        %3232 = vmatprep.subr.mxu0 0.0
        %3233 = vmatpush2.msra.mxu0 0.0
        %3234 = vmatprep.subr.mxu0 0.0
        %3235 = vmatpush2.msra.mxu0 0.0
        %3236 = vmatprep.subr.mxu0 0.0
        %3237 = vmatpush2.msra.mxu0 0.0
        %3238 = vmatprep.subr.mxu0 0.0
        %3239 = vmatpush2.msra.mxu0 0.0
        %3240 = vmatprep.subr.mxu0 0.0
        %3241 = vmatpush2.msra.mxu0 0.0
        %3242 = vmatprep.mubr.f32.mxu0 0.0
        %3243 = vmatmul.mubr.f32.gmra.mxu0 %v3034
        %v3244 = vpop.f32.mrf.mxu0
        %v3245 = vadd.f32 %v3031, %v3244
        %v3246 = vpop.f32.mrf.mxu0
        %v3247 = vadd.f32 %v3031, %v3246
        %3248 = vdwg.mxu0
        %3249 = vmatprep.subr.mxu0 0.0
        %3250 = vmatpush1.msra.mxu0 0.0
        %3251 = vmatprep.subr.mxu0 0.0
        %3252 = vmatpush1.msra.mxu0 0.0
        %3253 = vmatprep.subr.mxu0 0.0
        %3254 = vmatpush1.msra.mxu0 0.0
        %3255 = vmatprep.subr.mxu0 0.0
        %3256 = vmatpush1.msra.mxu0 0.0
        %3257 = vmatprep.subr.mxu0 0.0
        %3258 = vmatpush1.msra.mxu0 0.0
        %3259 = vmatprep.subr.mxu0 0.0
        %3260 = vmatpush1.msra.mxu0 0.0
        %3261 = vmatprep.subr.mxu0 0.0
        %3262 = vmatpush1.msra.mxu0 0.0
        %3263 = vmatprep.subr.mxu0 0.0
        %3264 = vmatpush1.msra.mxu0 0.0
        %3265 = vmatprep.subr.mxu0 %v3025
        %3266 = vmatpush1.msra.mxu0 %v3024
        %3267 = vmatprep.subr.mxu0 %v3017
        %3268 = vmatpush1.msra.mxu0 %v3016
        %3269 = vmatprep.subr.mxu0 %v3009
        %3270 = vmatpush1.msra.mxu0 %v3008
        %3271 = vmatprep.subr.mxu0 %v3001
        %3272 = vmatpush1.msra.mxu0 %v3000
        %3273 = vmatprep.subr.mxu0 %v2993
        %3274 = vmatpush1.msra.mxu0 %v2992
        %3275 = vmatprep.subr.mxu0 %v2985
        %3276 = vmatpush1.msra.mxu0 %v2984
        %3277 = vmatprep.subr.mxu0 %v2977
        %3278 = vmatpush1.msra.mxu0 %v2976
        %3279 = vmatprep.subr.mxu0 %v2969
        %3280 = vmatpush1.msra.mxu0 %v2968
        %3281 = vmatprep.subr.mxu0 0.0
        %3282 = vmatpush2.msra.mxu0 0.0
        %3283 = vmatprep.subr.mxu0 0.0
        %3284 = vmatpush2.msra.mxu0 0.0
        %3285 = vmatprep.subr.mxu0 0.0
        %3286 = vmatpush2.msra.mxu0 0.0
        %3287 = vmatprep.subr.mxu0 0.0
        %3288 = vmatpush2.msra.mxu0 0.0
        %3289 = vmatprep.subr.mxu0 0.0
        %3290 = vmatpush2.msra.mxu0 0.0
        %3291 = vmatprep.subr.mxu0 0.0
        %3292 = vmatpush2.msra.mxu0 0.0
        %3293 = vmatprep.subr.mxu0 0.0
        %3294 = vmatpush2.msra.mxu0 0.0
        %3295 = vmatprep.subr.mxu0 0.0
        %3296 = vmatpush2.msra.mxu0 0.0
        %3297 = vmatprep.subr.mxu0 0.0
        %3298 = vmatpush2.msra.mxu0 0.0
        %3299 = vmatprep.subr.mxu0 0.0
        %3300 = vmatpush2.msra.mxu0 0.0
        %3301 = vmatprep.subr.mxu0 0.0
        %3302 = vmatpush2.msra.mxu0 0.0
        %3303 = vmatprep.subr.mxu0 0.0
        %3304 = vmatpush2.msra.mxu0 0.0
        %3305 = vmatprep.subr.mxu0 0.0
        %3306 = vmatpush2.msra.mxu0 0.0
        %3307 = vmatprep.subr.mxu0 0.0
        %3308 = vmatpush2.msra.mxu0 0.0
        %3309 = vmatprep.subr.mxu0 0.0
        %3310 = vmatpush2.msra.mxu0 0.0
        %3311 = vmatprep.subr.mxu0 0.0
        %3312 = vmatpush2.msra.mxu0 0.0
        %3313 = vmatprep.mubr.f32.mxu0 0.0
        %3314 = vmatmul.mubr.f32.gmra.mxu0 %v3034
        %v3315 = vpop.f32.mrf.mxu0
        %v3316 = vadd.f32 %v3031, %v3315
        %v3317 = vpop.f32.mrf.mxu0
        %v3318 = vadd.f32 %v3031, %v3317
        %3319 = vdwg.mxu0
        %v3328 = vcombine.low %v3103, %v3105
        %v3329 = vcombine.low %v3174, %v3176
        %v3330 = vcombine.low %v3245, %v3247
        %v3331 = vcombine.low %v3316, %v3318
        %v3336 = vadd.f32 %v444, %v3328
        %v3337 = vadd.f32 %v445, %v3329
        %v3338 = vadd.f32 %v446, %v3330
        %v3339 = vadd.f32 %v447, %v3331
        %v3340 = vld [vmem:[%s7] sm:$0xff]
        %v3341 = vld [vmem:[%s7 + $0x8] sm:$0xff]
        %v3342 = vld [vmem:[%s7 + $0x10] sm:$0xff]
        %v3343 = vld [vmem:[%s7 + $0x18] sm:$0xff]
        %v3344 = vld [vmem:[%s7 + $0x20] sm:$0xff]
        %v3345 = vld [vmem:[%s7 + $0x28] sm:$0xff]
        %v3346 = vld [vmem:[%s7 + $0x30] sm:$0xff]
        %v3347 = vld [vmem:[%s7 + $0x38] sm:$0xff]
        %v3348 = vld [vmem:[%s8] sm:$0xff]
        %v3349 = vld [vmem:[%s8 + $0x8] sm:$0xff]
        %v3350 = vld [vmem:[%s8 + $0x10] sm:$0xff]
        %v3351 = vld [vmem:[%s8 + $0x18] sm:$0xff]
        %v3352 = vld [vmem:[%s8 + $0x20] sm:$0xff]
        %v3353 = vld [vmem:[%s8 + $0x28] sm:$0xff]
        %v3354 = vld [vmem:[%s8 + $0x30] sm:$0xff]
        %v3355 = vld [vmem:[%s8 + $0x38] sm:$0xff]
        %3357 = vset.pattern.permute.xlu0 0
        %3358 = vperm.xlu0 %3357, %v3340
        %v3359 = vpop.permute.xlu0 %3358
        %3362 = vset.pattern.permute.xlu0 0
        %3363 = vperm.xlu0 %3362, %v3341
        %v3364 = vpop.permute.xlu0 %3363
        %3367 = vset.pattern.permute.xlu0 0
        %3368 = vperm.xlu0 %3367, %v3342
        %v3369 = vpop.permute.xlu0 %3368
        %3372 = vset.pattern.permute.xlu0 0
        %3373 = vperm.xlu0 %3372, %v3343
        %v3374 = vpop.permute.xlu0 %3373
        %3377 = vset.pattern.permute.xlu0 0
        %3378 = vperm.xlu0 %3377, %v3344
        %v3379 = vpop.permute.xlu0 %3378
        %3382 = vset.pattern.permute.xlu0 0
        %3383 = vperm.xlu0 %3382, %v3345
        %v3384 = vpop.permute.xlu0 %3383
        %3387 = vset.pattern.permute.xlu0 0
        %3388 = vperm.xlu0 %3387, %v3346
        %v3389 = vpop.permute.xlu0 %3388
        %3392 = vset.pattern.permute.xlu0 0
        %3393 = vperm.xlu0 %3392, %v3347
        %v3394 = vpop.permute.xlu0 %3393
        %v3400 = vlaneseq
        %v3401 = vshrl.u32 %v3400, 7
        %v3402 = vsub.s32 0, %v3401
        %v3403 = vrot.slane %v3336, %v3402
        %v3404 = vlaneseq
        %v3405 = vshrl.u32 %v3404, 7
        %v3406 = vsub.s32 4, %v3405
        %v3407 = vrot.slane %v3336, %v3406
        %v3408 = vlaneseq
        %v3409 = vshrl.u32 %v3408, 7
        %v3410 = vsub.s32 0, %v3409
        %v3411 = vrot.slane %v3337, %v3410
        %v3412 = vlaneseq
        %v3413 = vshrl.u32 %v3412, 7
        %v3414 = vsub.s32 4, %v3413
        %v3415 = vrot.slane %v3337, %v3414
        %v3416 = vlaneseq
        %v3417 = vshrl.u32 %v3416, 7
        %v3418 = vsub.s32 0, %v3417
        %v3419 = vrot.slane %v3338, %v3418
        %v3420 = vlaneseq
        %v3421 = vshrl.u32 %v3420, 7
        %v3422 = vsub.s32 4, %v3421
        %v3423 = vrot.slane %v3338, %v3422
        %v3424 = vlaneseq
        %v3425 = vshrl.u32 %v3424, 7
        %v3426 = vsub.s32 0, %v3425
        %v3427 = vrot.slane %v3339, %v3426
        %v3428 = vlaneseq
        %v3429 = vshrl.u32 %v3428, 7
        %v3430 = vsub.s32 4, %v3429
        %v3431 = vrot.slane %v3339, %v3430
        %v3440 = vlaneseq
        %v3441 = vshrl.u32 %v3440, 7
        %v3442 = vsub.s32 0, %v3441
        %v3443 = vrot.slane %v3403, %v3442
        %v3444 = vlaneseq
        %v3445 = vshrl.u32 %v3444, 7
        %v3446 = vsub.s32 0, %v3445
        %v3447 = vrot.slane %v3407, %v3446
        %v3448 = vlaneseq
        %v3449 = vshrl.u32 %v3448, 7
        %v3450 = vsub.s32 0, %v3449
        %v3451 = vrot.slane %v3411, %v3450
        %v3452 = vlaneseq
        %v3453 = vshrl.u32 %v3452, 7
        %v3454 = vsub.s32 0, %v3453
        %v3455 = vrot.slane %v3415, %v3454
        %v3456 = vlaneseq
        %v3457 = vshrl.u32 %v3456, 7
        %v3458 = vsub.s32 0, %v3457
        %v3459 = vrot.slane %v3419, %v3458
        %v3460 = vlaneseq
        %v3461 = vshrl.u32 %v3460, 7
        %v3462 = vsub.s32 0, %v3461
        %v3463 = vrot.slane %v3423, %v3462
        %v3464 = vlaneseq
        %v3465 = vshrl.u32 %v3464, 7
        %v3466 = vsub.s32 0, %v3465
        %v3467 = vrot.slane %v3427, %v3466
        %v3468 = vlaneseq
        %v3469 = vshrl.u32 %v3468, 7
        %v3470 = vsub.s32 0, %v3469
        %v3471 = vrot.slane %v3431, %v3470
        %v3472 = vmul.f32 %v3359, %v3443
        %v3473 = vmul.f32 %v3359, %v3447
        %v3474 = vmul.f32 %v3359, %v3451
        %v3475 = vmul.f32 %v3359, %v3455
        %v3476 = vmul.f32 %v3359, %v3459
        %v3477 = vmul.f32 %v3359, %v3463
        %v3478 = vmul.f32 %v3359, %v3467
        %v3479 = vmul.f32 %v3359, %v3471
        %v3480 = vmul.f32 %v3364, %v3443
        %v3481 = vmul.f32 %v3364, %v3447
        %v3482 = vmul.f32 %v3364, %v3451
        %v3483 = vmul.f32 %v3364, %v3455
        %v3484 = vmul.f32 %v3364, %v3459
        %v3485 = vmul.f32 %v3364, %v3463
        %v3486 = vmul.f32 %v3364, %v3467
        %v3487 = vmul.f32 %v3364, %v3471
        %v3488 = vmul.f32 %v3369, %v3443
        %v3489 = vmul.f32 %v3369, %v3447
        %v3490 = vmul.f32 %v3369, %v3451
        %v3491 = vmul.f32 %v3369, %v3455
        %v3492 = vmul.f32 %v3369, %v3459
        %v3493 = vmul.f32 %v3369, %v3463
        %v3494 = vmul.f32 %v3369, %v3467
        %v3495 = vmul.f32 %v3369, %v3471
        %v3496 = vmul.f32 %v3374, %v3443
        %v3497 = vmul.f32 %v3374, %v3447
        %v3498 = vmul.f32 %v3374, %v3451
        %v3499 = vmul.f32 %v3374, %v3455
        %v3500 = vmul.f32 %v3374, %v3459
        %v3501 = vmul.f32 %v3374, %v3463
        %v3502 = vmul.f32 %v3374, %v3467
        %v3503 = vmul.f32 %v3374, %v3471
        %v3504 = vmul.f32 %v3379, %v3443
        %v3505 = vmul.f32 %v3379, %v3447
        %v3506 = vmul.f32 %v3379, %v3451
        %v3507 = vmul.f32 %v3379, %v3455
        %v3508 = vmul.f32 %v3379, %v3459
        %v3509 = vmul.f32 %v3379, %v3463
        %v3510 = vmul.f32 %v3379, %v3467
        %v3511 = vmul.f32 %v3379, %v3471
        %v3512 = vmul.f32 %v3384, %v3443
        %v3513 = vmul.f32 %v3384, %v3447
        %v3514 = vmul.f32 %v3384, %v3451
        %v3515 = vmul.f32 %v3384, %v3455
        %v3516 = vmul.f32 %v3384, %v3459
        %v3517 = vmul.f32 %v3384, %v3463
        %v3518 = vmul.f32 %v3384, %v3467
        %v3519 = vmul.f32 %v3384, %v3471
        %v3520 = vmul.f32 %v3389, %v3443
        %v3521 = vmul.f32 %v3389, %v3447
        %v3522 = vmul.f32 %v3389, %v3451
        %v3523 = vmul.f32 %v3389, %v3455
        %v3524 = vmul.f32 %v3389, %v3459
        %v3525 = vmul.f32 %v3389, %v3463
        %v3526 = vmul.f32 %v3389, %v3467
        %v3527 = vmul.f32 %v3389, %v3471
        %v3528 = vmul.f32 %v3394, %v3443
        %v3529 = vmul.f32 %v3394, %v3447
        %v3530 = vmul.f32 %v3394, %v3451
        %v3531 = vmul.f32 %v3394, %v3455
        %v3532 = vmul.f32 %v3394, %v3459
        %v3533 = vmul.f32 %v3394, %v3463
        %v3534 = vmul.f32 %v3394, %v3467
        %v3535 = vmul.f32 %v3394, %v3471
        %3537 = vset.pattern.permute.xlu0 0
        %3538 = vperm.xlu0 %3537, %v3348
        %v3539 = vpop.permute.xlu0 %3538
        %3542 = vset.pattern.permute.xlu0 0
        %3543 = vperm.xlu0 %3542, %v3349
        %v3544 = vpop.permute.xlu0 %3543
        %3547 = vset.pattern.permute.xlu0 0
        %3548 = vperm.xlu0 %3547, %v3350
        %v3549 = vpop.permute.xlu0 %3548
        %3552 = vset.pattern.permute.xlu0 0
        %3553 = vperm.xlu0 %3552, %v3351
        %v3554 = vpop.permute.xlu0 %3553
        %3557 = vset.pattern.permute.xlu0 0
        %3558 = vperm.xlu0 %3557, %v3352
        %v3559 = vpop.permute.xlu0 %3558
        %3562 = vset.pattern.permute.xlu0 0
        %3563 = vperm.xlu0 %3562, %v3353
        %v3564 = vpop.permute.xlu0 %3563
        %3567 = vset.pattern.permute.xlu0 0
        %3568 = vperm.xlu0 %3567, %v3354
        %v3569 = vpop.permute.xlu0 %3568
        %3572 = vset.pattern.permute.xlu0 0
        %3573 = vperm.xlu0 %3572, %v3355
        %v3574 = vpop.permute.xlu0 %3573
        %v3576 = vadd.f32 %v3539, %v3472
        %v3577 = vadd.f32 %v3539, %v3473
        %v3578 = vadd.f32 %v3539, %v3474
        %v3579 = vadd.f32 %v3539, %v3475
        %v3580 = vadd.f32 %v3539, %v3476
        %v3581 = vadd.f32 %v3539, %v3477
        %v3582 = vadd.f32 %v3539, %v3478
        %v3583 = vadd.f32 %v3539, %v3479
        %v3584 = vadd.f32 %v3544, %v3480
        %v3585 = vadd.f32 %v3544, %v3481
        %v3586 = vadd.f32 %v3544, %v3482
        %v3587 = vadd.f32 %v3544, %v3483
        %v3588 = vadd.f32 %v3544, %v3484
        %v3589 = vadd.f32 %v3544, %v3485
        %v3590 = vadd.f32 %v3544, %v3486
        %v3591 = vadd.f32 %v3544, %v3487
        %v3592 = vadd.f32 %v3549, %v3488
        %v3593 = vadd.f32 %v3549, %v3489
        %v3594 = vadd.f32 %v3549, %v3490
        %v3595 = vadd.f32 %v3549, %v3491
        %v3596 = vadd.f32 %v3549, %v3492
        %v3597 = vadd.f32 %v3549, %v3493
        %v3598 = vadd.f32 %v3549, %v3494
        %v3599 = vadd.f32 %v3549, %v3495
        %v3600 = vadd.f32 %v3554, %v3496
        %v3601 = vadd.f32 %v3554, %v3497
        %v3602 = vadd.f32 %v3554, %v3498
        %v3603 = vadd.f32 %v3554, %v3499
        %v3604 = vadd.f32 %v3554, %v3500
        %v3605 = vadd.f32 %v3554, %v3501
        %v3606 = vadd.f32 %v3554, %v3502
        %v3607 = vadd.f32 %v3554, %v3503
        %v3608 = vadd.f32 %v3559, %v3504
        %v3609 = vadd.f32 %v3559, %v3505
        %v3610 = vadd.f32 %v3559, %v3506
        %v3611 = vadd.f32 %v3559, %v3507
        %v3612 = vadd.f32 %v3559, %v3508
        %v3613 = vadd.f32 %v3559, %v3509
        %v3614 = vadd.f32 %v3559, %v3510
        %v3615 = vadd.f32 %v3559, %v3511
        %v3616 = vadd.f32 %v3564, %v3512
        %v3617 = vadd.f32 %v3564, %v3513
        %v3618 = vadd.f32 %v3564, %v3514
        %v3619 = vadd.f32 %v3564, %v3515
        %v3620 = vadd.f32 %v3564, %v3516
        %v3621 = vadd.f32 %v3564, %v3517
        %v3622 = vadd.f32 %v3564, %v3518
        %v3623 = vadd.f32 %v3564, %v3519
        %v3624 = vadd.f32 %v3569, %v3520
        %v3625 = vadd.f32 %v3569, %v3521
        %v3626 = vadd.f32 %v3569, %v3522
        %v3627 = vadd.f32 %v3569, %v3523
        %v3628 = vadd.f32 %v3569, %v3524
        %v3629 = vadd.f32 %v3569, %v3525
        %v3630 = vadd.f32 %v3569, %v3526
        %v3631 = vadd.f32 %v3569, %v3527
        %v3632 = vadd.f32 %v3574, %v3528
        %v3633 = vadd.f32 %v3574, %v3529
        %v3634 = vadd.f32 %v3574, %v3530
        %v3635 = vadd.f32 %v3574, %v3531
        %v3636 = vadd.f32 %v3574, %v3532
        %v3637 = vadd.f32 %v3574, %v3533
        %v3638 = vadd.f32 %v3574, %v3534
        %v3639 = vadd.f32 %v3574, %v3535
        %3640 = vset.pattern.permute.xlu0 1
        %3641 = vperm.xlu0 %3640, %v3340
        %v3642 = vpop.permute.xlu0 %3641
        %3644 = vset.pattern.permute.xlu0 1
        %3645 = vperm.xlu0 %3644, %v3341
        %v3646 = vpop.permute.xlu0 %3645
        %3648 = vset.pattern.permute.xlu0 1
        %3649 = vperm.xlu0 %3648, %v3342
        %v3650 = vpop.permute.xlu0 %3649
        %3652 = vset.pattern.permute.xlu0 1
        %3653 = vperm.xlu0 %3652, %v3343
        %v3654 = vpop.permute.xlu0 %3653
        %3656 = vset.pattern.permute.xlu0 1
        %3657 = vperm.xlu0 %3656, %v3344
        %v3658 = vpop.permute.xlu0 %3657
        %3660 = vset.pattern.permute.xlu0 1
        %3661 = vperm.xlu0 %3660, %v3345
        %v3662 = vpop.permute.xlu0 %3661
        %3664 = vset.pattern.permute.xlu0 1
        %3665 = vperm.xlu0 %3664, %v3346
        %v3666 = vpop.permute.xlu0 %3665
        %3668 = vset.pattern.permute.xlu0 1
        %3669 = vperm.xlu0 %3668, %v3347
        %v3670 = vpop.permute.xlu0 %3669
        %v3672 = vlaneseq
        %v3673 = vshrl.u32 %v3672, 7
        %v3674 = vsub.s32 1, %v3673
        %v3675 = vrot.slane %v3336, %v3674
        %v3676 = vlaneseq
        %v3677 = vshrl.u32 %v3676, 7
        %v3678 = vsub.s32 5, %v3677
        %v3679 = vrot.slane %v3336, %v3678
        %v3680 = vlaneseq
        %v3681 = vshrl.u32 %v3680, 7
        %v3682 = vsub.s32 1, %v3681
        %v3683 = vrot.slane %v3337, %v3682
        %v3684 = vlaneseq
        %v3685 = vshrl.u32 %v3684, 7
        %v3686 = vsub.s32 5, %v3685
        %v3687 = vrot.slane %v3337, %v3686
        %v3688 = vlaneseq
        %v3689 = vshrl.u32 %v3688, 7
        %v3690 = vsub.s32 1, %v3689
        %v3691 = vrot.slane %v3338, %v3690
        %v3692 = vlaneseq
        %v3693 = vshrl.u32 %v3692, 7
        %v3694 = vsub.s32 5, %v3693
        %v3695 = vrot.slane %v3338, %v3694
        %v3696 = vlaneseq
        %v3697 = vshrl.u32 %v3696, 7
        %v3698 = vsub.s32 1, %v3697
        %v3699 = vrot.slane %v3339, %v3698
        %v3700 = vlaneseq
        %v3701 = vshrl.u32 %v3700, 7
        %v3702 = vsub.s32 5, %v3701
        %v3703 = vrot.slane %v3339, %v3702
        %v3712 = vlaneseq
        %v3713 = vshrl.u32 %v3712, 7
        %v3714 = vsub.s32 1, %v3713
        %v3715 = vrot.slane %v3675, %v3714
        %v3716 = vlaneseq
        %v3717 = vshrl.u32 %v3716, 7
        %v3718 = vsub.s32 1, %v3717
        %v3719 = vrot.slane %v3679, %v3718
        %v3720 = vlaneseq
        %v3721 = vshrl.u32 %v3720, 7
        %v3722 = vsub.s32 1, %v3721
        %v3723 = vrot.slane %v3683, %v3722
        %v3724 = vlaneseq
        %v3725 = vshrl.u32 %v3724, 7
        %v3726 = vsub.s32 1, %v3725
        %v3727 = vrot.slane %v3687, %v3726
        %v3728 = vlaneseq
        %v3729 = vshrl.u32 %v3728, 7
        %v3730 = vsub.s32 1, %v3729
        %v3731 = vrot.slane %v3691, %v3730
        %v3732 = vlaneseq
        %v3733 = vshrl.u32 %v3732, 7
        %v3734 = vsub.s32 1, %v3733
        %v3735 = vrot.slane %v3695, %v3734
        %v3736 = vlaneseq
        %v3737 = vshrl.u32 %v3736, 7
        %v3738 = vsub.s32 1, %v3737
        %v3739 = vrot.slane %v3699, %v3738
        %v3740 = vlaneseq
        %v3741 = vshrl.u32 %v3740, 7
        %v3742 = vsub.s32 1, %v3741
        %v3743 = vrot.slane %v3703, %v3742
        %v3744 = vmul.f32 %v3642, %v3715
        %v3745 = vmul.f32 %v3642, %v3719
        %v3746 = vmul.f32 %v3642, %v3723
        %v3747 = vmul.f32 %v3642, %v3727
        %v3748 = vmul.f32 %v3642, %v3731
        %v3749 = vmul.f32 %v3642, %v3735
        %v3750 = vmul.f32 %v3642, %v3739
        %v3751 = vmul.f32 %v3642, %v3743
        %v3752 = vmul.f32 %v3646, %v3715
        %v3753 = vmul.f32 %v3646, %v3719
        %v3754 = vmul.f32 %v3646, %v3723
        %v3755 = vmul.f32 %v3646, %v3727
        %v3756 = vmul.f32 %v3646, %v3731
        %v3757 = vmul.f32 %v3646, %v3735
        %v3758 = vmul.f32 %v3646, %v3739
        %v3759 = vmul.f32 %v3646, %v3743
        %v3760 = vmul.f32 %v3650, %v3715
        %v3761 = vmul.f32 %v3650, %v3719
        %v3762 = vmul.f32 %v3650, %v3723
        %v3763 = vmul.f32 %v3650, %v3727
        %v3764 = vmul.f32 %v3650, %v3731
        %v3765 = vmul.f32 %v3650, %v3735
        %v3766 = vmul.f32 %v3650, %v3739
        %v3767 = vmul.f32 %v3650, %v3743
        %v3768 = vmul.f32 %v3654, %v3715
        %v3769 = vmul.f32 %v3654, %v3719
        %v3770 = vmul.f32 %v3654, %v3723
        %v3771 = vmul.f32 %v3654, %v3727
        %v3772 = vmul.f32 %v3654, %v3731
        %v3773 = vmul.f32 %v3654, %v3735
        %v3774 = vmul.f32 %v3654, %v3739
        %v3775 = vmul.f32 %v3654, %v3743
        %v3776 = vmul.f32 %v3658, %v3715
        %v3777 = vmul.f32 %v3658, %v3719
        %v3778 = vmul.f32 %v3658, %v3723
        %v3779 = vmul.f32 %v3658, %v3727
        %v3780 = vmul.f32 %v3658, %v3731
        %v3781 = vmul.f32 %v3658, %v3735
        %v3782 = vmul.f32 %v3658, %v3739
        %v3783 = vmul.f32 %v3658, %v3743
        %v3784 = vmul.f32 %v3662, %v3715
        %v3785 = vmul.f32 %v3662, %v3719
        %v3786 = vmul.f32 %v3662, %v3723
        %v3787 = vmul.f32 %v3662, %v3727
        %v3788 = vmul.f32 %v3662, %v3731
        %v3789 = vmul.f32 %v3662, %v3735
        %v3790 = vmul.f32 %v3662, %v3739
        %v3791 = vmul.f32 %v3662, %v3743
        %v3792 = vmul.f32 %v3666, %v3715
        %v3793 = vmul.f32 %v3666, %v3719
        %v3794 = vmul.f32 %v3666, %v3723
        %v3795 = vmul.f32 %v3666, %v3727
        %v3796 = vmul.f32 %v3666, %v3731
        %v3797 = vmul.f32 %v3666, %v3735
        %v3798 = vmul.f32 %v3666, %v3739
        %v3799 = vmul.f32 %v3666, %v3743
        %v3800 = vmul.f32 %v3670, %v3715
        %v3801 = vmul.f32 %v3670, %v3719
        %v3802 = vmul.f32 %v3670, %v3723
        %v3803 = vmul.f32 %v3670, %v3727
        %v3804 = vmul.f32 %v3670, %v3731
        %v3805 = vmul.f32 %v3670, %v3735
        %v3806 = vmul.f32 %v3670, %v3739
        %v3807 = vmul.f32 %v3670, %v3743
        %v3808 = vadd.f32 %v3576, %v3744
        %v3809 = vadd.f32 %v3577, %v3745
        %v3810 = vadd.f32 %v3578, %v3746
        %v3811 = vadd.f32 %v3579, %v3747
        %v3812 = vadd.f32 %v3580, %v3748
        %v3813 = vadd.f32 %v3581, %v3749
        %v3814 = vadd.f32 %v3582, %v3750
        %v3815 = vadd.f32 %v3583, %v3751
        %v3816 = vadd.f32 %v3584, %v3752
        %v3817 = vadd.f32 %v3585, %v3753
        %v3818 = vadd.f32 %v3586, %v3754
        %v3819 = vadd.f32 %v3587, %v3755
        %v3820 = vadd.f32 %v3588, %v3756
        %v3821 = vadd.f32 %v3589, %v3757
        %v3822 = vadd.f32 %v3590, %v3758
        %v3823 = vadd.f32 %v3591, %v3759
        %v3824 = vadd.f32 %v3592, %v3760
        %v3825 = vadd.f32 %v3593, %v3761
        %v3826 = vadd.f32 %v3594, %v3762
        %v3827 = vadd.f32 %v3595, %v3763
        %v3828 = vadd.f32 %v3596, %v3764
        %v3829 = vadd.f32 %v3597, %v3765
        %v3830 = vadd.f32 %v3598, %v3766
        %v3831 = vadd.f32 %v3599, %v3767
        %v3832 = vadd.f32 %v3600, %v3768
        %v3833 = vadd.f32 %v3601, %v3769
        %v3834 = vadd.f32 %v3602, %v3770
        %v3835 = vadd.f32 %v3603, %v3771
        %v3836 = vadd.f32 %v3604, %v3772
        %v3837 = vadd.f32 %v3605, %v3773
        %v3838 = vadd.f32 %v3606, %v3774
        %v3839 = vadd.f32 %v3607, %v3775
        %v3840 = vadd.f32 %v3608, %v3776
        %v3841 = vadd.f32 %v3609, %v3777
        %v3842 = vadd.f32 %v3610, %v3778
        %v3843 = vadd.f32 %v3611, %v3779
        %v3844 = vadd.f32 %v3612, %v3780
        %v3845 = vadd.f32 %v3613, %v3781
        %v3846 = vadd.f32 %v3614, %v3782
        %v3847 = vadd.f32 %v3615, %v3783
        %v3848 = vadd.f32 %v3616, %v3784
        %v3849 = vadd.f32 %v3617, %v3785
        %v3850 = vadd.f32 %v3618, %v3786
        %v3851 = vadd.f32 %v3619, %v3787
        %v3852 = vadd.f32 %v3620, %v3788
        %v3853 = vadd.f32 %v3621, %v3789
        %v3854 = vadd.f32 %v3622, %v3790
        %v3855 = vadd.f32 %v3623, %v3791
        %v3856 = vadd.f32 %v3624, %v3792
        %v3857 = vadd.f32 %v3625, %v3793
        %v3858 = vadd.f32 %v3626, %v3794
        %v3859 = vadd.f32 %v3627, %v3795
        %v3860 = vadd.f32 %v3628, %v3796
        %v3861 = vadd.f32 %v3629, %v3797
        %v3862 = vadd.f32 %v3630, %v3798
        %v3863 = vadd.f32 %v3631, %v3799
        %v3864 = vadd.f32 %v3632, %v3800
        %v3865 = vadd.f32 %v3633, %v3801
        %v3866 = vadd.f32 %v3634, %v3802
        %v3867 = vadd.f32 %v3635, %v3803
        %v3868 = vadd.f32 %v3636, %v3804
        %v3869 = vadd.f32 %v3637, %v3805
        %v3870 = vadd.f32 %v3638, %v3806
        %v3871 = vadd.f32 %v3639, %v3807
        %3872 = vset.pattern.permute.xlu0 2
        %3873 = vperm.xlu0 %3872, %v3340
        %v3874 = vpop.permute.xlu0 %3873
        %3876 = vset.pattern.permute.xlu0 2
        %3877 = vperm.xlu0 %3876, %v3341
        %v3878 = vpop.permute.xlu0 %3877
        %3880 = vset.pattern.permute.xlu0 2
        %3881 = vperm.xlu0 %3880, %v3342
        %v3882 = vpop.permute.xlu0 %3881
        %3884 = vset.pattern.permute.xlu0 2
        %3885 = vperm.xlu0 %3884, %v3343
        %v3886 = vpop.permute.xlu0 %3885
        %3888 = vset.pattern.permute.xlu0 2
        %3889 = vperm.xlu0 %3888, %v3344
        %v3890 = vpop.permute.xlu0 %3889
        %3892 = vset.pattern.permute.xlu0 2
        %3893 = vperm.xlu0 %3892, %v3345
        %v3894 = vpop.permute.xlu0 %3893
        %3896 = vset.pattern.permute.xlu0 2
        %3897 = vperm.xlu0 %3896, %v3346
        %v3898 = vpop.permute.xlu0 %3897
        %3900 = vset.pattern.permute.xlu0 2
        %3901 = vperm.xlu0 %3900, %v3347
        %v3902 = vpop.permute.xlu0 %3901
        %v3904 = vlaneseq
        %v3905 = vshrl.u32 %v3904, 7
        %v3906 = vsub.s32 2, %v3905
        %v3907 = vrot.slane %v3336, %v3906
        %v3908 = vlaneseq
        %v3909 = vshrl.u32 %v3908, 7
        %v3910 = vsub.s32 6, %v3909
        %v3911 = vrot.slane %v3336, %v3910
        %v3912 = vlaneseq
        %v3913 = vshrl.u32 %v3912, 7
        %v3914 = vsub.s32 2, %v3913
        %v3915 = vrot.slane %v3337, %v3914
        %v3916 = vlaneseq
        %v3917 = vshrl.u32 %v3916, 7
        %v3918 = vsub.s32 6, %v3917
        %v3919 = vrot.slane %v3337, %v3918
        %v3920 = vlaneseq
        %v3921 = vshrl.u32 %v3920, 7
        %v3922 = vsub.s32 2, %v3921
        %v3923 = vrot.slane %v3338, %v3922
        %v3924 = vlaneseq
        %v3925 = vshrl.u32 %v3924, 7
        %v3926 = vsub.s32 6, %v3925
        %v3927 = vrot.slane %v3338, %v3926
        %v3928 = vlaneseq
        %v3929 = vshrl.u32 %v3928, 7
        %v3930 = vsub.s32 2, %v3929
        %v3931 = vrot.slane %v3339, %v3930
        %v3932 = vlaneseq
        %v3933 = vshrl.u32 %v3932, 7
        %v3934 = vsub.s32 6, %v3933
        %v3935 = vrot.slane %v3339, %v3934
        %v3944 = vlaneseq
        %v3945 = vshrl.u32 %v3944, 7
        %v3946 = vsub.s32 2, %v3945
        %v3947 = vrot.slane %v3907, %v3946
        %v3948 = vlaneseq
        %v3949 = vshrl.u32 %v3948, 7
        %v3950 = vsub.s32 2, %v3949
        %v3951 = vrot.slane %v3911, %v3950
        %v3952 = vlaneseq
        %v3953 = vshrl.u32 %v3952, 7
        %v3954 = vsub.s32 2, %v3953
        %v3955 = vrot.slane %v3915, %v3954
        %v3956 = vlaneseq
        %v3957 = vshrl.u32 %v3956, 7
        %v3958 = vsub.s32 2, %v3957
        %v3959 = vrot.slane %v3919, %v3958
        %v3960 = vlaneseq
        %v3961 = vshrl.u32 %v3960, 7
        %v3962 = vsub.s32 2, %v3961
        %v3963 = vrot.slane %v3923, %v3962
        %v3964 = vlaneseq
        %v3965 = vshrl.u32 %v3964, 7
        %v3966 = vsub.s32 2, %v3965
        %v3967 = vrot.slane %v3927, %v3966
        %v3968 = vlaneseq
        %v3969 = vshrl.u32 %v3968, 7
        %v3970 = vsub.s32 2, %v3969
        %v3971 = vrot.slane %v3931, %v3970
        %v3972 = vlaneseq
        %v3973 = vshrl.u32 %v3972, 7
        %v3974 = vsub.s32 2, %v3973
        %v3975 = vrot.slane %v3935, %v3974
        %v3976 = vmul.f32 %v3874, %v3947
        %v3977 = vmul.f32 %v3874, %v3951
        %v3978 = vmul.f32 %v3874, %v3955
        %v3979 = vmul.f32 %v3874, %v3959
        %v3980 = vmul.f32 %v3874, %v3963
        %v3981 = vmul.f32 %v3874, %v3967
        %v3982 = vmul.f32 %v3874, %v3971
        %v3983 = vmul.f32 %v3874, %v3975
        %v3984 = vmul.f32 %v3878, %v3947
        %v3985 = vmul.f32 %v3878, %v3951
        %v3986 = vmul.f32 %v3878, %v3955
        %v3987 = vmul.f32 %v3878, %v3959
        %v3988 = vmul.f32 %v3878, %v3963
        %v3989 = vmul.f32 %v3878, %v3967
        %v3990 = vmul.f32 %v3878, %v3971
        %v3991 = vmul.f32 %v3878, %v3975
        %v3992 = vmul.f32 %v3882, %v3947
        %v3993 = vmul.f32 %v3882, %v3951
        %v3994 = vmul.f32 %v3882, %v3955
        %v3995 = vmul.f32 %v3882, %v3959
        %v3996 = vmul.f32 %v3882, %v3963
        %v3997 = vmul.f32 %v3882, %v3967
        %v3998 = vmul.f32 %v3882, %v3971
        %v3999 = vmul.f32 %v3882, %v3975
        %v4000 = vmul.f32 %v3886, %v3947
        %v4001 = vmul.f32 %v3886, %v3951
        %v4002 = vmul.f32 %v3886, %v3955
        %v4003 = vmul.f32 %v3886, %v3959
        %v4004 = vmul.f32 %v3886, %v3963
        %v4005 = vmul.f32 %v3886, %v3967
        %v4006 = vmul.f32 %v3886, %v3971
        %v4007 = vmul.f32 %v3886, %v3975
        %v4008 = vmul.f32 %v3890, %v3947
        %v4009 = vmul.f32 %v3890, %v3951
        %v4010 = vmul.f32 %v3890, %v3955
        %v4011 = vmul.f32 %v3890, %v3959
        %v4012 = vmul.f32 %v3890, %v3963
        %v4013 = vmul.f32 %v3890, %v3967
        %v4014 = vmul.f32 %v3890, %v3971
        %v4015 = vmul.f32 %v3890, %v3975
        %v4016 = vmul.f32 %v3894, %v3947
        %v4017 = vmul.f32 %v3894, %v3951
        %v4018 = vmul.f32 %v3894, %v3955
        %v4019 = vmul.f32 %v3894, %v3959
        %v4020 = vmul.f32 %v3894, %v3963
        %v4021 = vmul.f32 %v3894, %v3967
        %v4022 = vmul.f32 %v3894, %v3971
        %v4023 = vmul.f32 %v3894, %v3975
        %v4024 = vmul.f32 %v3898, %v3947
        %v4025 = vmul.f32 %v3898, %v3951
        %v4026 = vmul.f32 %v3898, %v3955
        %v4027 = vmul.f32 %v3898, %v3959
        %v4028 = vmul.f32 %v3898, %v3963
        %v4029 = vmul.f32 %v3898, %v3967
        %v4030 = vmul.f32 %v3898, %v3971
        %v4031 = vmul.f32 %v3898, %v3975
        %v4032 = vmul.f32 %v3902, %v3947
        %v4033 = vmul.f32 %v3902, %v3951
        %v4034 = vmul.f32 %v3902, %v3955
        %v4035 = vmul.f32 %v3902, %v3959
        %v4036 = vmul.f32 %v3902, %v3963
        %v4037 = vmul.f32 %v3902, %v3967
        %v4038 = vmul.f32 %v3902, %v3971
        %v4039 = vmul.f32 %v3902, %v3975
        %v4040 = vadd.f32 %v3808, %v3976
        %v4041 = vadd.f32 %v3809, %v3977
        %v4042 = vadd.f32 %v3810, %v3978
        %v4043 = vadd.f32 %v3811, %v3979
        %v4044 = vadd.f32 %v3812, %v3980
        %v4045 = vadd.f32 %v3813, %v3981
        %v4046 = vadd.f32 %v3814, %v3982
        %v4047 = vadd.f32 %v3815, %v3983
        %v4048 = vadd.f32 %v3816, %v3984
        %v4049 = vadd.f32 %v3817, %v3985
        %v4050 = vadd.f32 %v3818, %v3986
        %v4051 = vadd.f32 %v3819, %v3987
        %v4052 = vadd.f32 %v3820, %v3988
        %v4053 = vadd.f32 %v3821, %v3989
        %v4054 = vadd.f32 %v3822, %v3990
        %v4055 = vadd.f32 %v3823, %v3991
        %v4056 = vadd.f32 %v3824, %v3992
        %v4057 = vadd.f32 %v3825, %v3993
        %v4058 = vadd.f32 %v3826, %v3994
        %v4059 = vadd.f32 %v3827, %v3995
        %v4060 = vadd.f32 %v3828, %v3996
        %v4061 = vadd.f32 %v3829, %v3997
        %v4062 = vadd.f32 %v3830, %v3998
        %v4063 = vadd.f32 %v3831, %v3999
        %v4064 = vadd.f32 %v3832, %v4000
        %v4065 = vadd.f32 %v3833, %v4001
        %v4066 = vadd.f32 %v3834, %v4002
        %v4067 = vadd.f32 %v3835, %v4003
        %v4068 = vadd.f32 %v3836, %v4004
        %v4069 = vadd.f32 %v3837, %v4005
        %v4070 = vadd.f32 %v3838, %v4006
        %v4071 = vadd.f32 %v3839, %v4007
        %v4072 = vadd.f32 %v3840, %v4008
        %v4073 = vadd.f32 %v3841, %v4009
        %v4074 = vadd.f32 %v3842, %v4010
        %v4075 = vadd.f32 %v3843, %v4011
        %v4076 = vadd.f32 %v3844, %v4012
        %v4077 = vadd.f32 %v3845, %v4013
        %v4078 = vadd.f32 %v3846, %v4014
        %v4079 = vadd.f32 %v3847, %v4015
        %v4080 = vadd.f32 %v3848, %v4016
        %v4081 = vadd.f32 %v3849, %v4017
        %v4082 = vadd.f32 %v3850, %v4018
        %v4083 = vadd.f32 %v3851, %v4019
        %v4084 = vadd.f32 %v3852, %v4020
        %v4085 = vadd.f32 %v3853, %v4021
        %v4086 = vadd.f32 %v3854, %v4022
        %v4087 = vadd.f32 %v3855, %v4023
        %v4088 = vadd.f32 %v3856, %v4024
        %v4089 = vadd.f32 %v3857, %v4025
        %v4090 = vadd.f32 %v3858, %v4026
        %v4091 = vadd.f32 %v3859, %v4027
        %v4092 = vadd.f32 %v3860, %v4028
        %v4093 = vadd.f32 %v3861, %v4029
        %v4094 = vadd.f32 %v3862, %v4030
        %v4095 = vadd.f32 %v3863, %v4031
        %v4096 = vadd.f32 %v3864, %v4032
        %v4097 = vadd.f32 %v3865, %v4033
        %v4098 = vadd.f32 %v3866, %v4034
        %v4099 = vadd.f32 %v3867, %v4035
        %v4100 = vadd.f32 %v3868, %v4036
        %v4101 = vadd.f32 %v3869, %v4037
        %v4102 = vadd.f32 %v3870, %v4038
        %v4103 = vadd.f32 %v3871, %v4039
        %v4104 = vmul.f32 %v4040, 100.0
        %v4105 = vmul.f32 %v4041, 100.0
        %v4106 = vmul.f32 %v4042, 100.0
        %v4107 = vmul.f32 %v4043, 100.0
        %v4108 = vmul.f32 %v4044, 100.0
        %v4109 = vmul.f32 %v4045, 100.0
        %v4110 = vmul.f32 %v4046, 100.0
        %v4111 = vmul.f32 %v4047, 100.0
        %v4112 = vmul.f32 %v4048, 100.0
        %v4113 = vmul.f32 %v4049, 100.0
        %v4114 = vmul.f32 %v4050, 100.0
        %v4115 = vmul.f32 %v4051, 100.0
        %v4116 = vmul.f32 %v4052, 100.0
        %v4117 = vmul.f32 %v4053, 100.0
        %v4118 = vmul.f32 %v4054, 100.0
        %v4119 = vmul.f32 %v4055, 100.0
        %v4120 = vmul.f32 %v4056, 100.0
        %v4121 = vmul.f32 %v4057, 100.0
        %v4122 = vmul.f32 %v4058, 100.0
        %v4123 = vmul.f32 %v4059, 100.0
        %v4124 = vmul.f32 %v4060, 100.0
        %v4125 = vmul.f32 %v4061, 100.0
        %v4126 = vmul.f32 %v4062, 100.0
        %v4127 = vmul.f32 %v4063, 100.0
        %v4128 = vmul.f32 %v4064, 100.0
        %v4129 = vmul.f32 %v4065, 100.0
        %v4130 = vmul.f32 %v4066, 100.0
        %v4131 = vmul.f32 %v4067, 100.0
        %v4132 = vmul.f32 %v4068, 100.0
        %v4133 = vmul.f32 %v4069, 100.0
        %v4134 = vmul.f32 %v4070, 100.0
        %v4135 = vmul.f32 %v4071, 100.0
        %v4136 = vmul.f32 %v4072, 100.0
        %v4137 = vmul.f32 %v4073, 100.0
        %v4138 = vmul.f32 %v4074, 100.0
        %v4139 = vmul.f32 %v4075, 100.0
        %v4140 = vmul.f32 %v4076, 100.0
        %v4141 = vmul.f32 %v4077, 100.0
        %v4142 = vmul.f32 %v4078, 100.0
        %v4143 = vmul.f32 %v4079, 100.0
        %v4144 = vmul.f32 %v4080, 100.0
        %v4145 = vmul.f32 %v4081, 100.0
        %v4146 = vmul.f32 %v4082, 100.0
        %v4147 = vmul.f32 %v4083, 100.0
        %v4148 = vmul.f32 %v4084, 100.0
        %v4149 = vmul.f32 %v4085, 100.0
        %v4150 = vmul.f32 %v4086, 100.0
        %v4151 = vmul.f32 %v4087, 100.0
        %v4152 = vmul.f32 %v4088, 100.0
        %v4153 = vmul.f32 %v4089, 100.0
        %v4154 = vmul.f32 %v4090, 100.0
        %v4155 = vmul.f32 %v4091, 100.0
        %v4156 = vmul.f32 %v4092, 100.0
        %v4157 = vmul.f32 %v4093, 100.0
        %v4158 = vmul.f32 %v4094, 100.0
        %v4159 = vmul.f32 %v4095, 100.0
        %v4160 = vmul.f32 %v4096, 100.0
        %v4161 = vmul.f32 %v4097, 100.0
        %v4162 = vmul.f32 %v4098, 100.0
        %v4163 = vmul.f32 %v4099, 100.0
        %v4164 = vmul.f32 %v4100, 100.0
        %v4165 = vmul.f32 %v4101, 100.0
        %v4166 = vmul.f32 %v4102, 100.0
        %v4167 = vmul.f32 %v4103, 100.0
        %vm4168 = vcmp.gt.f32.partialorder %v4104, 20.0
        %vm4169 = vcmp.gt.f32.partialorder %v4105, 20.0
        %vm4170 = vcmp.gt.f32.partialorder %v4106, 20.0
        %vm4171 = vcmp.gt.f32.partialorder %v4107, 20.0
        %vm4172 = vcmp.gt.f32.partialorder %v4108, 20.0
        %vm4173 = vcmp.gt.f32.partialorder %v4109, 20.0
        %vm4174 = vcmp.gt.f32.partialorder %v4110, 20.0
        %vm4175 = vcmp.gt.f32.partialorder %v4111, 20.0
        %vm4176 = vcmp.gt.f32.partialorder %v4112, 20.0
        %vm4177 = vcmp.gt.f32.partialorder %v4113, 20.0
        %vm4178 = vcmp.gt.f32.partialorder %v4114, 20.0
        %vm4179 = vcmp.gt.f32.partialorder %v4115, 20.0
        %vm4180 = vcmp.gt.f32.partialorder %v4116, 20.0
        %vm4181 = vcmp.gt.f32.partialorder %v4117, 20.0
        %vm4182 = vcmp.gt.f32.partialorder %v4118, 20.0
        %vm4183 = vcmp.gt.f32.partialorder %v4119, 20.0
        %vm4184 = vcmp.gt.f32.partialorder %v4120, 20.0
        %vm4185 = vcmp.gt.f32.partialorder %v4121, 20.0
        %vm4186 = vcmp.gt.f32.partialorder %v4122, 20.0
        %vm4187 = vcmp.gt.f32.partialorder %v4123, 20.0
        %vm4188 = vcmp.gt.f32.partialorder %v4124, 20.0
        %vm4189 = vcmp.gt.f32.partialorder %v4125, 20.0
        %vm4190 = vcmp.gt.f32.partialorder %v4126, 20.0
        %vm4191 = vcmp.gt.f32.partialorder %v4127, 20.0
        %vm4192 = vcmp.gt.f32.partialorder %v4128, 20.0
        %vm4193 = vcmp.gt.f32.partialorder %v4129, 20.0
        %vm4194 = vcmp.gt.f32.partialorder %v4130, 20.0
        %vm4195 = vcmp.gt.f32.partialorder %v4131, 20.0
        %vm4196 = vcmp.gt.f32.partialorder %v4132, 20.0
        %vm4197 = vcmp.gt.f32.partialorder %v4133, 20.0
        %vm4198 = vcmp.gt.f32.partialorder %v4134, 20.0
        %vm4199 = vcmp.gt.f32.partialorder %v4135, 20.0
        %vm4200 = vcmp.gt.f32.partialorder %v4136, 20.0
        %vm4201 = vcmp.gt.f32.partialorder %v4137, 20.0
        %vm4202 = vcmp.gt.f32.partialorder %v4138, 20.0
        %vm4203 = vcmp.gt.f32.partialorder %v4139, 20.0
        %vm4204 = vcmp.gt.f32.partialorder %v4140, 20.0
        %vm4205 = vcmp.gt.f32.partialorder %v4141, 20.0
        %vm4206 = vcmp.gt.f32.partialorder %v4142, 20.0
        %vm4207 = vcmp.gt.f32.partialorder %v4143, 20.0
        %vm4208 = vcmp.gt.f32.partialorder %v4144, 20.0
        %vm4209 = vcmp.gt.f32.partialorder %v4145, 20.0
        %vm4210 = vcmp.gt.f32.partialorder %v4146, 20.0
        %vm4211 = vcmp.gt.f32.partialorder %v4147, 20.0
        %vm4212 = vcmp.gt.f32.partialorder %v4148, 20.0
        %vm4213 = vcmp.gt.f32.partialorder %v4149, 20.0
        %vm4214 = vcmp.gt.f32.partialorder %v4150, 20.0
        %vm4215 = vcmp.gt.f32.partialorder %v4151, 20.0
        %vm4216 = vcmp.gt.f32.partialorder %v4152, 20.0
        %vm4217 = vcmp.gt.f32.partialorder %v4153, 20.0
        %vm4218 = vcmp.gt.f32.partialorder %v4154, 20.0
        %vm4219 = vcmp.gt.f32.partialorder %v4155, 20.0
        %vm4220 = vcmp.gt.f32.partialorder %v4156, 20.0
        %vm4221 = vcmp.gt.f32.partialorder %v4157, 20.0
        %vm4222 = vcmp.gt.f32.partialorder %v4158, 20.0
        %vm4223 = vcmp.gt.f32.partialorder %v4159, 20.0
        %vm4224 = vcmp.gt.f32.partialorder %v4160, 20.0
        %vm4225 = vcmp.gt.f32.partialorder %v4161, 20.0
        %vm4226 = vcmp.gt.f32.partialorder %v4162, 20.0
        %vm4227 = vcmp.gt.f32.partialorder %v4163, 20.0
        %vm4228 = vcmp.gt.f32.partialorder %v4164, 20.0
        %vm4229 = vcmp.gt.f32.partialorder %v4165, 20.0
        %vm4230 = vcmp.gt.f32.partialorder %v4166, 20.0
        %vm4231 = vcmp.gt.f32.partialorder %v4167, 20.0
        %v4232 = vmin.f32 %v4104, 20.0
        %v4233 = vmin.f32 %v4105, 20.0
        %v4234 = vmin.f32 %v4106, 20.0
        %v4235 = vmin.f32 %v4107, 20.0
        %v4236 = vmin.f32 %v4108, 20.0
        %v4237 = vmin.f32 %v4109, 20.0
        %v4238 = vmin.f32 %v4110, 20.0
        %v4239 = vmin.f32 %v4111, 20.0
        %v4240 = vmin.f32 %v4112, 20.0
        %v4241 = vmin.f32 %v4113, 20.0
        %v4242 = vmin.f32 %v4114, 20.0
        %v4243 = vmin.f32 %v4115, 20.0
        %v4244 = vmin.f32 %v4116, 20.0
        %v4245 = vmin.f32 %v4117, 20.0
        %v4246 = vmin.f32 %v4118, 20.0
        %v4247 = vmin.f32 %v4119, 20.0
        %v4248 = vmin.f32 %v4120, 20.0
        %v4249 = vmin.f32 %v4121, 20.0
        %v4250 = vmin.f32 %v4122, 20.0
        %v4251 = vmin.f32 %v4123, 20.0
        %v4252 = vmin.f32 %v4124, 20.0
        %v4253 = vmin.f32 %v4125, 20.0
        %v4254 = vmin.f32 %v4126, 20.0
        %v4255 = vmin.f32 %v4127, 20.0
        %v4256 = vmin.f32 %v4128, 20.0
        %v4257 = vmin.f32 %v4129, 20.0
        %v4258 = vmin.f32 %v4130, 20.0
        %v4259 = vmin.f32 %v4131, 20.0
        %v4260 = vmin.f32 %v4132, 20.0
        %v4261 = vmin.f32 %v4133, 20.0
        %v4262 = vmin.f32 %v4134, 20.0
        %v4263 = vmin.f32 %v4135, 20.0
        %v4264 = vmin.f32 %v4136, 20.0
        %v4265 = vmin.f32 %v4137, 20.0
        %v4266 = vmin.f32 %v4138, 20.0
        %v4267 = vmin.f32 %v4139, 20.0
        %v4268 = vmin.f32 %v4140, 20.0
        %v4269 = vmin.f32 %v4141, 20.0
        %v4270 = vmin.f32 %v4142, 20.0
        %v4271 = vmin.f32 %v4143, 20.0
        %v4272 = vmin.f32 %v4144, 20.0
        %v4273 = vmin.f32 %v4145, 20.0
        %v4274 = vmin.f32 %v4146, 20.0
        %v4275 = vmin.f32 %v4147, 20.0
        %v4276 = vmin.f32 %v4148, 20.0
        %v4277 = vmin.f32 %v4149, 20.0
        %v4278 = vmin.f32 %v4150, 20.0
        %v4279 = vmin.f32 %v4151, 20.0
        %v4280 = vmin.f32 %v4152, 20.0
        %v4281 = vmin.f32 %v4153, 20.0
        %v4282 = vmin.f32 %v4154, 20.0
        %v4283 = vmin.f32 %v4155, 20.0
        %v4284 = vmin.f32 %v4156, 20.0
        %v4285 = vmin.f32 %v4157, 20.0
        %v4286 = vmin.f32 %v4158, 20.0
        %v4287 = vmin.f32 %v4159, 20.0
        %v4288 = vmin.f32 %v4160, 20.0
        %v4289 = vmin.f32 %v4161, 20.0
        %v4290 = vmin.f32 %v4162, 20.0
        %v4291 = vmin.f32 %v4163, 20.0
        %v4292 = vmin.f32 %v4164, 20.0
        %v4293 = vmin.f32 %v4165, 20.0
        %v4294 = vmin.f32 %v4166, 20.0
        %v4295 = vmin.f32 %v4167, 20.0
        %v4296 = vmul.f32 %v4232, 1.442695
        %v4297 = vpow.pop %v4296
        %v4298 = vmul.f32 %v4233, 1.442695
        %v4299 = vpow.pop %v4298
        %v4300 = vmul.f32 %v4234, 1.442695
        %v4301 = vpow.pop %v4300
        %v4302 = vmul.f32 %v4235, 1.442695
        %v4303 = vpow.pop %v4302
        %v4304 = vmul.f32 %v4236, 1.442695
        %v4305 = vpow.pop %v4304
        %v4306 = vmul.f32 %v4237, 1.442695
        %v4307 = vpow.pop %v4306
        %v4308 = vmul.f32 %v4238, 1.442695
        %v4309 = vpow.pop %v4308
        %v4310 = vmul.f32 %v4239, 1.442695
        %v4311 = vpow.pop %v4310
        %v4312 = vmul.f32 %v4240, 1.442695
        %v4313 = vpow.pop %v4312
        %v4314 = vmul.f32 %v4241, 1.442695
        %v4315 = vpow.pop %v4314
        %v4316 = vmul.f32 %v4242, 1.442695
        %v4317 = vpow.pop %v4316
        %v4318 = vmul.f32 %v4243, 1.442695
        %v4319 = vpow.pop %v4318
        %v4320 = vmul.f32 %v4244, 1.442695
        %v4321 = vpow.pop %v4320
        %v4322 = vmul.f32 %v4245, 1.442695
        %v4323 = vpow.pop %v4322
        %v4324 = vmul.f32 %v4246, 1.442695
        %v4325 = vpow.pop %v4324
        %v4326 = vmul.f32 %v4247, 1.442695
        %v4327 = vpow.pop %v4326
        %v4328 = vmul.f32 %v4248, 1.442695
        %v4329 = vpow.pop %v4328
        %v4330 = vmul.f32 %v4249, 1.442695
        %v4331 = vpow.pop %v4330
        %v4332 = vmul.f32 %v4250, 1.442695
        %v4333 = vpow.pop %v4332
        %v4334 = vmul.f32 %v4251, 1.442695
        %v4335 = vpow.pop %v4334
        %v4336 = vmul.f32 %v4252, 1.442695
        %v4337 = vpow.pop %v4336
        %v4338 = vmul.f32 %v4253, 1.442695
        %v4339 = vpow.pop %v4338
        %v4340 = vmul.f32 %v4254, 1.442695
        %v4341 = vpow.pop %v4340
        %v4342 = vmul.f32 %v4255, 1.442695
        %v4343 = vpow.pop %v4342
        %v4344 = vmul.f32 %v4256, 1.442695
        %v4345 = vpow.pop %v4344
        %v4346 = vmul.f32 %v4257, 1.442695
        %v4347 = vpow.pop %v4346
        %v4348 = vmul.f32 %v4258, 1.442695
        %v4349 = vpow.pop %v4348
        %v4350 = vmul.f32 %v4259, 1.442695
        %v4351 = vpow.pop %v4350
        %v4352 = vmul.f32 %v4260, 1.442695
        %v4353 = vpow.pop %v4352
        %v4354 = vmul.f32 %v4261, 1.442695
        %v4355 = vpow.pop %v4354
        %v4356 = vmul.f32 %v4262, 1.442695
        %v4357 = vpow.pop %v4356
        %v4358 = vmul.f32 %v4263, 1.442695
        %v4359 = vpow.pop %v4358
        %v4360 = vmul.f32 %v4264, 1.442695
        %v4361 = vpow.pop %v4360
        %v4362 = vmul.f32 %v4265, 1.442695
        %v4363 = vpow.pop %v4362
        %v4364 = vmul.f32 %v4266, 1.442695
        %v4365 = vpow.pop %v4364
        %v4366 = vmul.f32 %v4267, 1.442695
        %v4367 = vpow.pop %v4366
        %v4368 = vmul.f32 %v4268, 1.442695
        %v4369 = vpow.pop %v4368
        %v4370 = vmul.f32 %v4269, 1.442695
        %v4371 = vpow.pop %v4370
        %v4372 = vmul.f32 %v4270, 1.442695
        %v4373 = vpow.pop %v4372
        %v4374 = vmul.f32 %v4271, 1.442695
        %v4375 = vpow.pop %v4374
        %v4376 = vmul.f32 %v4272, 1.442695
        %v4377 = vpow.pop %v4376
        %v4378 = vmul.f32 %v4273, 1.442695
        %v4379 = vpow.pop %v4378
        %v4380 = vmul.f32 %v4274, 1.442695
        %v4381 = vpow.pop %v4380
        %v4382 = vmul.f32 %v4275, 1.442695
        %v4383 = vpow.pop %v4382
        %v4384 = vmul.f32 %v4276, 1.442695
        %v4385 = vpow.pop %v4384
        %v4386 = vmul.f32 %v4277, 1.442695
        %v4387 = vpow.pop %v4386
        %v4388 = vmul.f32 %v4278, 1.442695
        %v4389 = vpow.pop %v4388
        %v4390 = vmul.f32 %v4279, 1.442695
        %v4391 = vpow.pop %v4390
        %v4392 = vmul.f32 %v4280, 1.442695
        %v4393 = vpow.pop %v4392
        %v4394 = vmul.f32 %v4281, 1.442695
        %v4395 = vpow.pop %v4394
        %v4396 = vmul.f32 %v4282, 1.442695
        %v4397 = vpow.pop %v4396
        %v4398 = vmul.f32 %v4283, 1.442695
        %v4399 = vpow.pop %v4398
        %v4400 = vmul.f32 %v4284, 1.442695
        %v4401 = vpow.pop %v4400
        %v4402 = vmul.f32 %v4285, 1.442695
        %v4403 = vpow.pop %v4402
        %v4404 = vmul.f32 %v4286, 1.442695
        %v4405 = vpow.pop %v4404
        %v4406 = vmul.f32 %v4287, 1.442695
        %v4407 = vpow.pop %v4406
        %v4408 = vmul.f32 %v4288, 1.442695
        %v4409 = vpow.pop %v4408
        %v4410 = vmul.f32 %v4289, 1.442695
        %v4411 = vpow.pop %v4410
        %v4412 = vmul.f32 %v4290, 1.442695
        %v4413 = vpow.pop %v4412
        %v4414 = vmul.f32 %v4291, 1.442695
        %v4415 = vpow.pop %v4414
        %v4416 = vmul.f32 %v4292, 1.442695
        %v4417 = vpow.pop %v4416
        %v4418 = vmul.f32 %v4293, 1.442695
        %v4419 = vpow.pop %v4418
        %v4420 = vmul.f32 %v4294, 1.442695
        %v4421 = vpow.pop %v4420
        %v4422 = vmul.f32 %v4295, 1.442695
        %v4423 = vpow.pop %v4422
        %v4424 = vadd.f32 %v4297, 1.0
        %v4425 = vadd.f32 %v4299, 1.0
        %v4426 = vadd.f32 %v4301, 1.0
        %v4427 = vadd.f32 %v4303, 1.0
        %v4428 = vadd.f32 %v4305, 1.0
        %v4429 = vadd.f32 %v4307, 1.0
        %v4430 = vadd.f32 %v4309, 1.0
        %v4431 = vadd.f32 %v4311, 1.0
        %v4432 = vadd.f32 %v4313, 1.0
        %v4433 = vadd.f32 %v4315, 1.0
        %v4434 = vadd.f32 %v4317, 1.0
        %v4435 = vadd.f32 %v4319, 1.0
        %v4436 = vadd.f32 %v4321, 1.0
        %v4437 = vadd.f32 %v4323, 1.0
        %v4438 = vadd.f32 %v4325, 1.0
        %v4439 = vadd.f32 %v4327, 1.0
        %v4440 = vadd.f32 %v4329, 1.0
        %v4441 = vadd.f32 %v4331, 1.0
        %v4442 = vadd.f32 %v4333, 1.0
        %v4443 = vadd.f32 %v4335, 1.0
        %v4444 = vadd.f32 %v4337, 1.0
        %v4445 = vadd.f32 %v4339, 1.0
        %v4446 = vadd.f32 %v4341, 1.0
        %v4447 = vadd.f32 %v4343, 1.0
        %v4448 = vadd.f32 %v4345, 1.0
        %v4449 = vadd.f32 %v4347, 1.0
        %v4450 = vadd.f32 %v4349, 1.0
        %v4451 = vadd.f32 %v4351, 1.0
        %v4452 = vadd.f32 %v4353, 1.0
        %v4453 = vadd.f32 %v4355, 1.0
        %v4454 = vadd.f32 %v4357, 1.0
        %v4455 = vadd.f32 %v4359, 1.0
        %v4456 = vadd.f32 %v4361, 1.0
        %v4457 = vadd.f32 %v4363, 1.0
        %v4458 = vadd.f32 %v4365, 1.0
        %v4459 = vadd.f32 %v4367, 1.0
        %v4460 = vadd.f32 %v4369, 1.0
        %v4461 = vadd.f32 %v4371, 1.0
        %v4462 = vadd.f32 %v4373, 1.0
        %v4463 = vadd.f32 %v4375, 1.0
        %v4464 = vadd.f32 %v4377, 1.0
        %v4465 = vadd.f32 %v4379, 1.0
        %v4466 = vadd.f32 %v4381, 1.0
        %v4467 = vadd.f32 %v4383, 1.0
        %v4468 = vadd.f32 %v4385, 1.0
        %v4469 = vadd.f32 %v4387, 1.0
        %v4470 = vadd.f32 %v4389, 1.0
        %v4471 = vadd.f32 %v4391, 1.0
        %v4472 = vadd.f32 %v4393, 1.0
        %v4473 = vadd.f32 %v4395, 1.0
        %v4474 = vadd.f32 %v4397, 1.0
        %v4475 = vadd.f32 %v4399, 1.0
        %v4476 = vadd.f32 %v4401, 1.0
        %v4477 = vadd.f32 %v4403, 1.0
        %v4478 = vadd.f32 %v4405, 1.0
        %v4479 = vadd.f32 %v4407, 1.0
        %v4480 = vadd.f32 %v4409, 1.0
        %v4481 = vadd.f32 %v4411, 1.0
        %v4482 = vadd.f32 %v4413, 1.0
        %v4483 = vadd.f32 %v4415, 1.0
        %v4484 = vadd.f32 %v4417, 1.0
        %v4485 = vadd.f32 %v4419, 1.0
        %v4486 = vadd.f32 %v4421, 1.0
        %v4487 = vadd.f32 %v4423, 1.0
        %v4488 = vlog2.pop %v4424
        %v4489 = vmul.f32 %v4488, 0.6931472
        %v4490 = vlog2.pop %v4425
        %v4491 = vmul.f32 %v4490, 0.6931472
        %v4492 = vlog2.pop %v4426
        %v4493 = vmul.f32 %v4492, 0.6931472
        %v4494 = vlog2.pop %v4427
        %v4495 = vmul.f32 %v4494, 0.6931472
        %v4496 = vlog2.pop %v4428
        %v4497 = vmul.f32 %v4496, 0.6931472
        %v4498 = vlog2.pop %v4429
        %v4499 = vmul.f32 %v4498, 0.6931472
        %v4500 = vlog2.pop %v4430
        %v4501 = vmul.f32 %v4500, 0.6931472
        %v4502 = vlog2.pop %v4431
        %v4503 = vmul.f32 %v4502, 0.6931472
        %v4504 = vlog2.pop %v4432
        %v4505 = vmul.f32 %v4504, 0.6931472
        %v4506 = vlog2.pop %v4433
        %v4507 = vmul.f32 %v4506, 0.6931472
        %v4508 = vlog2.pop %v4434
        %v4509 = vmul.f32 %v4508, 0.6931472
        %v4510 = vlog2.pop %v4435
        %v4511 = vmul.f32 %v4510, 0.6931472
        %v4512 = vlog2.pop %v4436
        %v4513 = vmul.f32 %v4512, 0.6931472
        %v4514 = vlog2.pop %v4437
        %v4515 = vmul.f32 %v4514, 0.6931472
        %v4516 = vlog2.pop %v4438
        %v4517 = vmul.f32 %v4516, 0.6931472
        %v4518 = vlog2.pop %v4439
        %v4519 = vmul.f32 %v4518, 0.6931472
        %v4520 = vlog2.pop %v4440
        %v4521 = vmul.f32 %v4520, 0.6931472
        %v4522 = vlog2.pop %v4441
        %v4523 = vmul.f32 %v4522, 0.6931472
        %v4524 = vlog2.pop %v4442
        %v4525 = vmul.f32 %v4524, 0.6931472
        %v4526 = vlog2.pop %v4443
        %v4527 = vmul.f32 %v4526, 0.6931472
        %v4528 = vlog2.pop %v4444
        %v4529 = vmul.f32 %v4528, 0.6931472
        %v4530 = vlog2.pop %v4445
        %v4531 = vmul.f32 %v4530, 0.6931472
        %v4532 = vlog2.pop %v4446
        %v4533 = vmul.f32 %v4532, 0.6931472
        %v4534 = vlog2.pop %v4447
        %v4535 = vmul.f32 %v4534, 0.6931472
        %v4536 = vlog2.pop %v4448
        %v4537 = vmul.f32 %v4536, 0.6931472
        %v4538 = vlog2.pop %v4449
        %v4539 = vmul.f32 %v4538, 0.6931472
        %v4540 = vlog2.pop %v4450
        %v4541 = vmul.f32 %v4540, 0.6931472
        %v4542 = vlog2.pop %v4451
        %v4543 = vmul.f32 %v4542, 0.6931472
        %v4544 = vlog2.pop %v4452
        %v4545 = vmul.f32 %v4544, 0.6931472
        %v4546 = vlog2.pop %v4453
        %v4547 = vmul.f32 %v4546, 0.6931472
        %v4548 = vlog2.pop %v4454
        %v4549 = vmul.f32 %v4548, 0.6931472
        %v4550 = vlog2.pop %v4455
        %v4551 = vmul.f32 %v4550, 0.6931472
        %v4552 = vlog2.pop %v4456
        %v4553 = vmul.f32 %v4552, 0.6931472
        %v4554 = vlog2.pop %v4457
        %v4555 = vmul.f32 %v4554, 0.6931472
        %v4556 = vlog2.pop %v4458
        %v4557 = vmul.f32 %v4556, 0.6931472
        %v4558 = vlog2.pop %v4459
        %v4559 = vmul.f32 %v4558, 0.6931472
        %v4560 = vlog2.pop %v4460
        %v4561 = vmul.f32 %v4560, 0.6931472
        %v4562 = vlog2.pop %v4461
        %v4563 = vmul.f32 %v4562, 0.6931472
        %v4564 = vlog2.pop %v4462
        %v4565 = vmul.f32 %v4564, 0.6931472
        %v4566 = vlog2.pop %v4463
        %v4567 = vmul.f32 %v4566, 0.6931472
        %v4568 = vlog2.pop %v4464
        %v4569 = vmul.f32 %v4568, 0.6931472
        %v4570 = vlog2.pop %v4465
        %v4571 = vmul.f32 %v4570, 0.6931472
        %v4572 = vlog2.pop %v4466
        %v4573 = vmul.f32 %v4572, 0.6931472
        %v4574 = vlog2.pop %v4467
        %v4575 = vmul.f32 %v4574, 0.6931472
        %v4576 = vlog2.pop %v4468
        %v4577 = vmul.f32 %v4576, 0.6931472
        %v4578 = vlog2.pop %v4469
        %v4579 = vmul.f32 %v4578, 0.6931472
        %v4580 = vlog2.pop %v4470
        %v4581 = vmul.f32 %v4580, 0.6931472
        %v4582 = vlog2.pop %v4471
        %v4583 = vmul.f32 %v4582, 0.6931472
        %v4584 = vlog2.pop %v4472
        %v4585 = vmul.f32 %v4584, 0.6931472
        %v4586 = vlog2.pop %v4473
        %v4587 = vmul.f32 %v4586, 0.6931472
        %v4588 = vlog2.pop %v4474
        %v4589 = vmul.f32 %v4588, 0.6931472
        %v4590 = vlog2.pop %v4475
        %v4591 = vmul.f32 %v4590, 0.6931472
        %v4592 = vlog2.pop %v4476
        %v4593 = vmul.f32 %v4592, 0.6931472
        %v4594 = vlog2.pop %v4477
        %v4595 = vmul.f32 %v4594, 0.6931472
        %v4596 = vlog2.pop %v4478
        %v4597 = vmul.f32 %v4596, 0.6931472
        %v4598 = vlog2.pop %v4479
        %v4599 = vmul.f32 %v4598, 0.6931472
        %v4600 = vlog2.pop %v4480
        %v4601 = vmul.f32 %v4600, 0.6931472
        %v4602 = vlog2.pop %v4481
        %v4603 = vmul.f32 %v4602, 0.6931472
        %v4604 = vlog2.pop %v4482
        %v4605 = vmul.f32 %v4604, 0.6931472
        %v4606 = vlog2.pop %v4483
        %v4607 = vmul.f32 %v4606, 0.6931472
        %v4608 = vlog2.pop %v4484
        %v4609 = vmul.f32 %v4608, 0.6931472
        %v4610 = vlog2.pop %v4485
        %v4611 = vmul.f32 %v4610, 0.6931472
        %v4612 = vlog2.pop %v4486
        %v4613 = vmul.f32 %v4612, 0.6931472
        %v4614 = vlog2.pop %v4487
        %v4615 = vmul.f32 %v4614, 0.6931472
        %v4616 = vmul.f32 %v4489, %v1724
        %v4617 = vmul.f32 %v4491, %v1724
        %v4618 = vmul.f32 %v4493, %v1724
        %v4619 = vmul.f32 %v4495, %v1724
        %v4620 = vmul.f32 %v4497, %v1724
        %v4621 = vmul.f32 %v4499, %v1724
        %v4622 = vmul.f32 %v4501, %v1724
        %v4623 = vmul.f32 %v4503, %v1724
        %v4624 = vmul.f32 %v4505, %v1724
        %v4625 = vmul.f32 %v4507, %v1724
        %v4626 = vmul.f32 %v4509, %v1724
        %v4627 = vmul.f32 %v4511, %v1724
        %v4628 = vmul.f32 %v4513, %v1724
        %v4629 = vmul.f32 %v4515, %v1724
        %v4630 = vmul.f32 %v4517, %v1724
        %v4631 = vmul.f32 %v4519, %v1724
        %v4632 = vmul.f32 %v4521, %v1724
        %v4633 = vmul.f32 %v4523, %v1724
        %v4634 = vmul.f32 %v4525, %v1724
        %v4635 = vmul.f32 %v4527, %v1724
        %v4636 = vmul.f32 %v4529, %v1724
        %v4637 = vmul.f32 %v4531, %v1724
        %v4638 = vmul.f32 %v4533, %v1724
        %v4639 = vmul.f32 %v4535, %v1724
        %v4640 = vmul.f32 %v4537, %v1724
        %v4641 = vmul.f32 %v4539, %v1724
        %v4642 = vmul.f32 %v4541, %v1724
        %v4643 = vmul.f32 %v4543, %v1724
        %v4644 = vmul.f32 %v4545, %v1724
        %v4645 = vmul.f32 %v4547, %v1724
        %v4646 = vmul.f32 %v4549, %v1724
        %v4647 = vmul.f32 %v4551, %v1724
        %v4648 = vmul.f32 %v4553, %v1724
        %v4649 = vmul.f32 %v4555, %v1724
        %v4650 = vmul.f32 %v4557, %v1724
        %v4651 = vmul.f32 %v4559, %v1724
        %v4652 = vmul.f32 %v4561, %v1724
        %v4653 = vmul.f32 %v4563, %v1724
        %v4654 = vmul.f32 %v4565, %v1724
        %v4655 = vmul.f32 %v4567, %v1724
        %v4656 = vmul.f32 %v4569, %v1724
        %v4657 = vmul.f32 %v4571, %v1724
        %v4658 = vmul.f32 %v4573, %v1724
        %v4659 = vmul.f32 %v4575, %v1724
        %v4660 = vmul.f32 %v4577, %v1724
        %v4661 = vmul.f32 %v4579, %v1724
        %v4662 = vmul.f32 %v4581, %v1724
        %v4663 = vmul.f32 %v4583, %v1724
        %v4664 = vmul.f32 %v4585, %v1724
        %v4665 = vmul.f32 %v4587, %v1724
        %v4666 = vmul.f32 %v4589, %v1724
        %v4667 = vmul.f32 %v4591, %v1724
        %v4668 = vmul.f32 %v4593, %v1724
        %v4669 = vmul.f32 %v4595, %v1724
        %v4670 = vmul.f32 %v4597, %v1724
        %v4671 = vmul.f32 %v4599, %v1724
        %v4672 = vmul.f32 %v4601, %v1724
        %v4673 = vmul.f32 %v4603, %v1724
        %v4674 = vmul.f32 %v4605, %v1724
        %v4675 = vmul.f32 %v4607, %v1724
        %v4676 = vmul.f32 %v4609, %v1724
        %v4677 = vmul.f32 %v4611, %v1724
        %v4678 = vmul.f32 %v4613, %v1724
        %v4679 = vmul.f32 %v4615, %v1724
        %v4680 = vsel %vm4168, %v4040, %v4616
        %v4681 = vsel %vm4169, %v4041, %v4617
        %v4682 = vsel %vm4170, %v4042, %v4618
        %v4683 = vsel %vm4171, %v4043, %v4619
        %v4684 = vsel %vm4172, %v4044, %v4620
        %v4685 = vsel %vm4173, %v4045, %v4621
        %v4686 = vsel %vm4174, %v4046, %v4622
        %v4687 = vsel %vm4175, %v4047, %v4623
        %v4688 = vsel %vm4176, %v4048, %v4624
        %v4689 = vsel %vm4177, %v4049, %v4625
        %v4690 = vsel %vm4178, %v4050, %v4626
        %v4691 = vsel %vm4179, %v4051, %v4627
        %v4692 = vsel %vm4180, %v4052, %v4628
        %v4693 = vsel %vm4181, %v4053, %v4629
        %v4694 = vsel %vm4182, %v4054, %v4630
        %v4695 = vsel %vm4183, %v4055, %v4631
        %v4696 = vsel %vm4184, %v4056, %v4632
        %v4697 = vsel %vm4185, %v4057, %v4633
        %v4698 = vsel %vm4186, %v4058, %v4634
        %v4699 = vsel %vm4187, %v4059, %v4635
        %v4700 = vsel %vm4188, %v4060, %v4636
        %v4701 = vsel %vm4189, %v4061, %v4637
        %v4702 = vsel %vm4190, %v4062, %v4638
        %v4703 = vsel %vm4191, %v4063, %v4639
        %v4704 = vsel %vm4192, %v4064, %v4640
        %v4705 = vsel %vm4193, %v4065, %v4641
        %v4706 = vsel %vm4194, %v4066, %v4642
        %v4707 = vsel %vm4195, %v4067, %v4643
        %v4708 = vsel %vm4196, %v4068, %v4644
        %v4709 = vsel %vm4197, %v4069, %v4645
        %v4710 = vsel %vm4198, %v4070, %v4646
        %v4711 = vsel %vm4199, %v4071, %v4647
        %v4712 = vsel %vm4200, %v4072, %v4648
        %v4713 = vsel %vm4201, %v4073, %v4649
        %v4714 = vsel %vm4202, %v4074, %v4650
        %v4715 = vsel %vm4203, %v4075, %v4651
        %v4716 = vsel %vm4204, %v4076, %v4652
        %v4717 = vsel %vm4205, %v4077, %v4653
        %v4718 = vsel %vm4206, %v4078, %v4654
        %v4719 = vsel %vm4207, %v4079, %v4655
        %v4720 = vsel %vm4208, %v4080, %v4656
        %v4721 = vsel %vm4209, %v4081, %v4657
        %v4722 = vsel %vm4210, %v4082, %v4658
        %v4723 = vsel %vm4211, %v4083, %v4659
        %v4724 = vsel %vm4212, %v4084, %v4660
        %v4725 = vsel %vm4213, %v4085, %v4661
        %v4726 = vsel %vm4214, %v4086, %v4662
        %v4727 = vsel %vm4215, %v4087, %v4663
        %v4728 = vsel %vm4216, %v4088, %v4664
        %v4729 = vsel %vm4217, %v4089, %v4665
        %v4730 = vsel %vm4218, %v4090, %v4666
        %v4731 = vsel %vm4219, %v4091, %v4667
        %v4732 = vsel %vm4220, %v4092, %v4668
        %v4733 = vsel %vm4221, %v4093, %v4669
        %v4734 = vsel %vm4222, %v4094, %v4670
        %v4735 = vsel %vm4223, %v4095, %v4671
        %v4736 = vsel %vm4224, %v4096, %v4672
        %v4737 = vsel %vm4225, %v4097, %v4673
        %v4738 = vsel %vm4226, %v4098, %v4674
        %v4739 = vsel %vm4227, %v4099, %v4675
        %v4740 = vsel %vm4228, %v4100, %v4676
        %v4741 = vsel %vm4229, %v4101, %v4677
        %v4742 = vsel %vm4230, %v4102, %v4678
        %v4743 = vsel %vm4231, %v4103, %v4679
        %v4744 = vld [vmem:[%s9] sm:$0xff]
        %v4745 = vld [vmem:[%s9 + $0x8] sm:$0xff]
        %v4746 = vld [vmem:[%s9 + $0x10] sm:$0xff]
        %v4747 = vld [vmem:[%s9 + $0x18] sm:$0xff]
        %v4748 = vld [vmem:[%s9 + $0x20] sm:$0xff]
        %v4749 = vld [vmem:[%s9 + $0x28] sm:$0xff]
        %v4750 = vld [vmem:[%s9 + $0x30] sm:$0xff]
        %v4751 = vld [vmem:[%s9 + $0x38] sm:$0xff]
        %v4752 = vld [vmem:[%s10] sm:$0xff]
        %v4753 = vld [vmem:[%s10 + $0x8] sm:$0xff]
        %v4754 = vld [vmem:[%s10 + $0x10] sm:$0xff]
        %v4755 = vld [vmem:[%s10 + $0x18] sm:$0xff]
        %v4756 = vld [vmem:[%s10 + $0x20] sm:$0xff]
        %v4757 = vld [vmem:[%s10 + $0x28] sm:$0xff]
        %v4758 = vld [vmem:[%s10 + $0x30] sm:$0xff]
        %v4759 = vld [vmem:[%s10 + $0x38] sm:$0xff]
        %4761 = vset.pattern.permute.xlu0 0
        %4762 = vperm.xlu0 %4761, %v4752
        %v4763 = vpop.permute.xlu0 %4762
        %4766 = vset.pattern.permute.xlu0 0
        %4767 = vperm.xlu0 %4766, %v4753
        %v4768 = vpop.permute.xlu0 %4767
        %4771 = vset.pattern.permute.xlu0 0
        %4772 = vperm.xlu0 %4771, %v4754
        %v4773 = vpop.permute.xlu0 %4772
        %4776 = vset.pattern.permute.xlu0 0
        %4777 = vperm.xlu0 %4776, %v4755
        %v4778 = vpop.permute.xlu0 %4777
        %4781 = vset.pattern.permute.xlu0 0
        %4782 = vperm.xlu0 %4781, %v4756
        %v4783 = vpop.permute.xlu0 %4782
        %4786 = vset.pattern.permute.xlu0 0
        %4787 = vperm.xlu0 %4786, %v4757
        %v4788 = vpop.permute.xlu0 %4787
        %4791 = vset.pattern.permute.xlu0 0
        %4792 = vperm.xlu0 %4791, %v4758
        %v4793 = vpop.permute.xlu0 %4792
        %4796 = vset.pattern.permute.xlu0 0
        %4797 = vperm.xlu0 %4796, %v4759
        %v4798 = vpop.permute.xlu0 %4797
        %v4801 = vsel %vm1909, %v4744, 0
        %v4804 = vsel %vm1909, %v4745, 0
        %v4807 = vsel %vm1909, %v4746, 0
        %v4810 = vsel %vm1909, %v4747, 0
        %v4813 = vsel %vm1909, %v4748, 0
        %v4816 = vsel %vm1909, %v4749, 0
        %v4819 = vsel %vm1909, %v4750, 0
        %v4822 = vsel %vm1909, %v4751, 0
        %4824 = vmatprep.subr.mxu0 0.0
        %4825 = vmatpush1.msra.mxu0 0.0
        %4826 = vmatprep.subr.mxu0 0.0
        %4827 = vmatpush1.msra.mxu0 0.0
        %4828 = vmatprep.subr.mxu0 0.0
        %4829 = vmatpush1.msra.mxu0 0.0
        %4830 = vmatprep.subr.mxu0 0.0
        %4831 = vmatpush1.msra.mxu0 0.0
        %4832 = vmatprep.subr.mxu0 0.0
        %4833 = vmatpush1.msra.mxu0 0.0
        %4834 = vmatprep.subr.mxu0 0.0
        %4835 = vmatpush1.msra.mxu0 0.0
        %4836 = vmatprep.subr.mxu0 0.0
        %4837 = vmatpush1.msra.mxu0 0.0
        %4838 = vmatprep.subr.mxu0 0.0
        %4839 = vmatpush1.msra.mxu0 0.0
        %4840 = vmatprep.subr.mxu0 %v4737
        %4841 = vmatpush1.msra.mxu0 %v4736
        %4842 = vmatprep.subr.mxu0 %v4729
        %4843 = vmatpush1.msra.mxu0 %v4728
        %4844 = vmatprep.subr.mxu0 %v4721
        %4845 = vmatpush1.msra.mxu0 %v4720
        %4846 = vmatprep.subr.mxu0 %v4713
        %4847 = vmatpush1.msra.mxu0 %v4712
        %4848 = vmatprep.subr.mxu0 %v4705
        %4849 = vmatpush1.msra.mxu0 %v4704
        %4850 = vmatprep.subr.mxu0 %v4697
        %4851 = vmatpush1.msra.mxu0 %v4696
        %4852 = vmatprep.subr.mxu0 %v4689
        %4853 = vmatpush1.msra.mxu0 %v4688
        %4854 = vmatprep.subr.mxu0 %v4681
        %4855 = vmatpush1.msra.mxu0 %v4680
        %4856 = vmatprep.subr.mxu0 0.0
        %4857 = vmatpush2.msra.mxu0 0.0
        %4858 = vmatprep.subr.mxu0 0.0
        %4859 = vmatpush2.msra.mxu0 0.0
        %4860 = vmatprep.subr.mxu0 0.0
        %4861 = vmatpush2.msra.mxu0 0.0
        %4862 = vmatprep.subr.mxu0 0.0
        %4863 = vmatpush2.msra.mxu0 0.0
        %4864 = vmatprep.subr.mxu0 0.0
        %4865 = vmatpush2.msra.mxu0 0.0
        %4866 = vmatprep.subr.mxu0 0.0
        %4867 = vmatpush2.msra.mxu0 0.0
        %4868 = vmatprep.subr.mxu0 0.0
        %4869 = vmatpush2.msra.mxu0 0.0
        %4870 = vmatprep.subr.mxu0 0.0
        %4871 = vmatpush2.msra.mxu0 0.0
        %4872 = vmatprep.subr.mxu0 0.0
        %4873 = vmatpush2.msra.mxu0 0.0
        %4874 = vmatprep.subr.mxu0 0.0
        %4875 = vmatpush2.msra.mxu0 0.0
        %4876 = vmatprep.subr.mxu0 0.0
        %4877 = vmatpush2.msra.mxu0 0.0
        %4878 = vmatprep.subr.mxu0 0.0
        %4879 = vmatpush2.msra.mxu0 0.0
        %4880 = vmatprep.subr.mxu0 0.0
        %4881 = vmatpush2.msra.mxu0 0.0
        %4882 = vmatprep.subr.mxu0 0.0
        %4883 = vmatpush2.msra.mxu0 0.0
        %4884 = vmatprep.subr.mxu0 0.0
        %4885 = vmatpush2.msra.mxu0 0.0
        %4886 = vmatprep.subr.mxu0 0.0
        %4887 = vmatpush2.msra.mxu0 0.0
        %4888 = vmatprep.mubr.f32.mxu0 0.0
        %4889 = vmatmul.mubr.f32.gmra.mxu0 %v4801
        %v4890 = vpop.f32.mrf.mxu0
        %v4891 = vadd.f32 %v4763, %v4890
        %v4892 = vpop.f32.mrf.mxu0
        %v4893 = vadd.f32 %v4763, %v4892
        %4894 = vmatprep.mubr.f32.mxu0 0.0
        %4895 = vmatmul.mubr.f32.gmra.mxu0 %v4804
        %v4896 = vpop.f32.mrf.mxu0
        %v4897 = vadd.f32 %v4768, %v4896
        %v4898 = vpop.f32.mrf.mxu0
        %v4899 = vadd.f32 %v4768, %v4898
        %4900 = vmatprep.mubr.f32.mxu0 0.0
        %4901 = vmatmul.mubr.f32.gmra.mxu0 %v4807
        %v4902 = vpop.f32.mrf.mxu0
        %v4903 = vadd.f32 %v4773, %v4902
        %v4904 = vpop.f32.mrf.mxu0
        %v4905 = vadd.f32 %v4773, %v4904
        %4906 = vmatprep.mubr.f32.mxu0 0.0
        %4907 = vmatmul.mubr.f32.gmra.mxu0 %v4810
        %v4908 = vpop.f32.mrf.mxu0
        %v4909 = vadd.f32 %v4778, %v4908
        %v4910 = vpop.f32.mrf.mxu0
        %v4911 = vadd.f32 %v4778, %v4910
        %4912 = vmatprep.mubr.f32.mxu0 0.0
        %4913 = vmatmul.mubr.f32.gmra.mxu0 %v4813
        %v4914 = vpop.f32.mrf.mxu0
        %v4915 = vadd.f32 %v4783, %v4914
        %v4916 = vpop.f32.mrf.mxu0
        %v4917 = vadd.f32 %v4783, %v4916
        %4918 = vmatprep.mubr.f32.mxu0 0.0
        %4919 = vmatmul.mubr.f32.gmra.mxu0 %v4816
        %v4920 = vpop.f32.mrf.mxu0
        %v4921 = vadd.f32 %v4788, %v4920
        %v4922 = vpop.f32.mrf.mxu0
        %v4923 = vadd.f32 %v4788, %v4922
        %4924 = vmatprep.mubr.f32.mxu0 0.0
        %4925 = vmatmul.mubr.f32.gmra.mxu0 %v4819
        %v4926 = vpop.f32.mrf.mxu0
        %v4927 = vadd.f32 %v4793, %v4926
        %v4928 = vpop.f32.mrf.mxu0
        %v4929 = vadd.f32 %v4793, %v4928
        %4930 = vmatprep.mubr.f32.mxu0 0.0
        %4931 = vmatmul.mubr.f32.gmra.mxu0 %v4822
        %v4932 = vpop.f32.mrf.mxu0
        %v4933 = vadd.f32 %v4798, %v4932
        %v4934 = vpop.f32.mrf.mxu0
        %v4935 = vadd.f32 %v4798, %v4934
        %4936 = vdwg.mxu0
        %4937 = vmatprep.subr.mxu0 0.0
        %4938 = vmatpush1.msra.mxu0 0.0
        %4939 = vmatprep.subr.mxu0 0.0
        %4940 = vmatpush1.msra.mxu0 0.0
        %4941 = vmatprep.subr.mxu0 0.0
        %4942 = vmatpush1.msra.mxu0 0.0
        %4943 = vmatprep.subr.mxu0 0.0
        %4944 = vmatpush1.msra.mxu0 0.0
        %4945 = vmatprep.subr.mxu0 0.0
        %4946 = vmatpush1.msra.mxu0 0.0
        %4947 = vmatprep.subr.mxu0 0.0
        %4948 = vmatpush1.msra.mxu0 0.0
        %4949 = vmatprep.subr.mxu0 0.0
        %4950 = vmatpush1.msra.mxu0 0.0
        %4951 = vmatprep.subr.mxu0 0.0
        %4952 = vmatpush1.msra.mxu0 0.0
        %4953 = vmatprep.subr.mxu0 %v4739
        %4954 = vmatpush1.msra.mxu0 %v4738
        %4955 = vmatprep.subr.mxu0 %v4731
        %4956 = vmatpush1.msra.mxu0 %v4730
        %4957 = vmatprep.subr.mxu0 %v4723
        %4958 = vmatpush1.msra.mxu0 %v4722
        %4959 = vmatprep.subr.mxu0 %v4715
        %4960 = vmatpush1.msra.mxu0 %v4714
        %4961 = vmatprep.subr.mxu0 %v4707
        %4962 = vmatpush1.msra.mxu0 %v4706
        %4963 = vmatprep.subr.mxu0 %v4699
        %4964 = vmatpush1.msra.mxu0 %v4698
        %4965 = vmatprep.subr.mxu0 %v4691
        %4966 = vmatpush1.msra.mxu0 %v4690
        %4967 = vmatprep.subr.mxu0 %v4683
        %4968 = vmatpush1.msra.mxu0 %v4682
        %4969 = vmatprep.subr.mxu0 0.0
        %4970 = vmatpush2.msra.mxu0 0.0
        %4971 = vmatprep.subr.mxu0 0.0
        %4972 = vmatpush2.msra.mxu0 0.0
        %4973 = vmatprep.subr.mxu0 0.0
        %4974 = vmatpush2.msra.mxu0 0.0
        %4975 = vmatprep.subr.mxu0 0.0
        %4976 = vmatpush2.msra.mxu0 0.0
        %4977 = vmatprep.subr.mxu0 0.0
        %4978 = vmatpush2.msra.mxu0 0.0
        %4979 = vmatprep.subr.mxu0 0.0
        %4980 = vmatpush2.msra.mxu0 0.0
        %4981 = vmatprep.subr.mxu0 0.0
        %4982 = vmatpush2.msra.mxu0 0.0
        %4983 = vmatprep.subr.mxu0 0.0
        %4984 = vmatpush2.msra.mxu0 0.0
        %4985 = vmatprep.subr.mxu0 0.0
        %4986 = vmatpush2.msra.mxu0 0.0
        %4987 = vmatprep.subr.mxu0 0.0
        %4988 = vmatpush2.msra.mxu0 0.0
        %4989 = vmatprep.subr.mxu0 0.0
        %4990 = vmatpush2.msra.mxu0 0.0
        %4991 = vmatprep.subr.mxu0 0.0
        %4992 = vmatpush2.msra.mxu0 0.0
        %4993 = vmatprep.subr.mxu0 0.0
        %4994 = vmatpush2.msra.mxu0 0.0
        %4995 = vmatprep.subr.mxu0 0.0
        %4996 = vmatpush2.msra.mxu0 0.0
        %4997 = vmatprep.subr.mxu0 0.0
        %4998 = vmatpush2.msra.mxu0 0.0
        %4999 = vmatprep.subr.mxu0 0.0
        %5000 = vmatpush2.msra.mxu0 0.0
        %5001 = vmatprep.mubr.f32.mxu0 0.0
        %5002 = vmatmul.mubr.f32.gmra.mxu0 %v4801
        %v5003 = vpop.f32.mrf.mxu0
        %v5004 = vadd.f32 %v4763, %v5003
        %v5005 = vpop.f32.mrf.mxu0
        %v5006 = vadd.f32 %v4763, %v5005
        %5007 = vmatprep.mubr.f32.mxu0 0.0
        %5008 = vmatmul.mubr.f32.gmra.mxu0 %v4804
        %v5009 = vpop.f32.mrf.mxu0
        %v5010 = vadd.f32 %v4768, %v5009
        %v5011 = vpop.f32.mrf.mxu0
        %v5012 = vadd.f32 %v4768, %v5011
        %5013 = vmatprep.mubr.f32.mxu0 0.0
        %5014 = vmatmul.mubr.f32.gmra.mxu0 %v4807
        %v5015 = vpop.f32.mrf.mxu0
        %v5016 = vadd.f32 %v4773, %v5015
        %v5017 = vpop.f32.mrf.mxu0
        %v5018 = vadd.f32 %v4773, %v5017
        %5019 = vmatprep.mubr.f32.mxu0 0.0
        %5020 = vmatmul.mubr.f32.gmra.mxu0 %v4810
        %v5021 = vpop.f32.mrf.mxu0
        %v5022 = vadd.f32 %v4778, %v5021
        %v5023 = vpop.f32.mrf.mxu0
        %v5024 = vadd.f32 %v4778, %v5023
        %5025 = vmatprep.mubr.f32.mxu0 0.0
        %5026 = vmatmul.mubr.f32.gmra.mxu0 %v4813
        %v5027 = vpop.f32.mrf.mxu0
        %v5028 = vadd.f32 %v4783, %v5027
        %v5029 = vpop.f32.mrf.mxu0
        %v5030 = vadd.f32 %v4783, %v5029
        %5031 = vmatprep.mubr.f32.mxu0 0.0
        %5032 = vmatmul.mubr.f32.gmra.mxu0 %v4816
        %v5033 = vpop.f32.mrf.mxu0
        %v5034 = vadd.f32 %v4788, %v5033
        %v5035 = vpop.f32.mrf.mxu0
        %v5036 = vadd.f32 %v4788, %v5035
        %5037 = vmatprep.mubr.f32.mxu0 0.0
        %5038 = vmatmul.mubr.f32.gmra.mxu0 %v4819
        %v5039 = vpop.f32.mrf.mxu0
        %v5040 = vadd.f32 %v4793, %v5039
        %v5041 = vpop.f32.mrf.mxu0
        %v5042 = vadd.f32 %v4793, %v5041
        %5043 = vmatprep.mubr.f32.mxu0 0.0
        %5044 = vmatmul.mubr.f32.gmra.mxu0 %v4822
        %v5045 = vpop.f32.mrf.mxu0
        %v5046 = vadd.f32 %v4798, %v5045
        %v5047 = vpop.f32.mrf.mxu0
        %v5048 = vadd.f32 %v4798, %v5047
        %5049 = vdwg.mxu0
        %5050 = vmatprep.subr.mxu0 0.0
        %5051 = vmatpush1.msra.mxu0 0.0
        %5052 = vmatprep.subr.mxu0 0.0
        %5053 = vmatpush1.msra.mxu0 0.0
        %5054 = vmatprep.subr.mxu0 0.0
        %5055 = vmatpush1.msra.mxu0 0.0
        %5056 = vmatprep.subr.mxu0 0.0
        %5057 = vmatpush1.msra.mxu0 0.0
        %5058 = vmatprep.subr.mxu0 0.0
        %5059 = vmatpush1.msra.mxu0 0.0
        %5060 = vmatprep.subr.mxu0 0.0
        %5061 = vmatpush1.msra.mxu0 0.0
        %5062 = vmatprep.subr.mxu0 0.0
        %5063 = vmatpush1.msra.mxu0 0.0
        %5064 = vmatprep.subr.mxu0 0.0
        %5065 = vmatpush1.msra.mxu0 0.0
        %5066 = vmatprep.subr.mxu0 %v4741
        %5067 = vmatpush1.msra.mxu0 %v4740
        %5068 = vmatprep.subr.mxu0 %v4733
        %5069 = vmatpush1.msra.mxu0 %v4732
        %5070 = vmatprep.subr.mxu0 %v4725
        %5071 = vmatpush1.msra.mxu0 %v4724
        %5072 = vmatprep.subr.mxu0 %v4717
        %5073 = vmatpush1.msra.mxu0 %v4716
        %5074 = vmatprep.subr.mxu0 %v4709
        %5075 = vmatpush1.msra.mxu0 %v4708
        %5076 = vmatprep.subr.mxu0 %v4701
        %5077 = vmatpush1.msra.mxu0 %v4700
        %5078 = vmatprep.subr.mxu0 %v4693
        %5079 = vmatpush1.msra.mxu0 %v4692
        %5080 = vmatprep.subr.mxu0 %v4685
        %5081 = vmatpush1.msra.mxu0 %v4684
        %5082 = vmatprep.subr.mxu0 0.0
        %5083 = vmatpush2.msra.mxu0 0.0
        %5084 = vmatprep.subr.mxu0 0.0
        %5085 = vmatpush2.msra.mxu0 0.0
        %5086 = vmatprep.subr.mxu0 0.0
        %5087 = vmatpush2.msra.mxu0 0.0
        %5088 = vmatprep.subr.mxu0 0.0
        %5089 = vmatpush2.msra.mxu0 0.0
        %5090 = vmatprep.subr.mxu0 0.0
        %5091 = vmatpush2.msra.mxu0 0.0
        %5092 = vmatprep.subr.mxu0 0.0
        %5093 = vmatpush2.msra.mxu0 0.0
        %5094 = vmatprep.subr.mxu0 0.0
        %5095 = vmatpush2.msra.mxu0 0.0
        %5096 = vmatprep.subr.mxu0 0.0
        %5097 = vmatpush2.msra.mxu0 0.0
        %5098 = vmatprep.subr.mxu0 0.0
        %5099 = vmatpush2.msra.mxu0 0.0
        %5100 = vmatprep.subr.mxu0 0.0
        %5101 = vmatpush2.msra.mxu0 0.0
        %5102 = vmatprep.subr.mxu0 0.0
        %5103 = vmatpush2.msra.mxu0 0.0
        %5104 = vmatprep.subr.mxu0 0.0
        %5105 = vmatpush2.msra.mxu0 0.0
        %5106 = vmatprep.subr.mxu0 0.0
        %5107 = vmatpush2.msra.mxu0 0.0
        %5108 = vmatprep.subr.mxu0 0.0
        %5109 = vmatpush2.msra.mxu0 0.0
        %5110 = vmatprep.subr.mxu0 0.0
        %5111 = vmatpush2.msra.mxu0 0.0
        %5112 = vmatprep.subr.mxu0 0.0
        %5113 = vmatpush2.msra.mxu0 0.0
        %5114 = vmatprep.mubr.f32.mxu0 0.0
        %5115 = vmatmul.mubr.f32.gmra.mxu0 %v4801
        %v5116 = vpop.f32.mrf.mxu0
        %v5117 = vadd.f32 %v4763, %v5116
        %v5118 = vpop.f32.mrf.mxu0
        %v5119 = vadd.f32 %v4763, %v5118
        %5120 = vmatprep.mubr.f32.mxu0 0.0
        %5121 = vmatmul.mubr.f32.gmra.mxu0 %v4804
        %v5122 = vpop.f32.mrf.mxu0
        %v5123 = vadd.f32 %v4768, %v5122
        %v5124 = vpop.f32.mrf.mxu0
        %v5125 = vadd.f32 %v4768, %v5124
        %5126 = vmatprep.mubr.f32.mxu0 0.0
        %5127 = vmatmul.mubr.f32.gmra.mxu0 %v4807
        %v5128 = vpop.f32.mrf.mxu0
        %v5129 = vadd.f32 %v4773, %v5128
        %v5130 = vpop.f32.mrf.mxu0
        %v5131 = vadd.f32 %v4773, %v5130
        %5132 = vmatprep.mubr.f32.mxu0 0.0
        %5133 = vmatmul.mubr.f32.gmra.mxu0 %v4810
        %v5134 = vpop.f32.mrf.mxu0
        %v5135 = vadd.f32 %v4778, %v5134
        %v5136 = vpop.f32.mrf.mxu0
        %v5137 = vadd.f32 %v4778, %v5136
        %5138 = vmatprep.mubr.f32.mxu0 0.0
        %5139 = vmatmul.mubr.f32.gmra.mxu0 %v4813
        %v5140 = vpop.f32.mrf.mxu0
        %v5141 = vadd.f32 %v4783, %v5140
        %v5142 = vpop.f32.mrf.mxu0
        %v5143 = vadd.f32 %v4783, %v5142
        %5144 = vmatprep.mubr.f32.mxu0 0.0
        %5145 = vmatmul.mubr.f32.gmra.mxu0 %v4816
        %v5146 = vpop.f32.mrf.mxu0
        %v5147 = vadd.f32 %v4788, %v5146
        %v5148 = vpop.f32.mrf.mxu0
        %v5149 = vadd.f32 %v4788, %v5148
        %5150 = vmatprep.mubr.f32.mxu0 0.0
        %5151 = vmatmul.mubr.f32.gmra.mxu0 %v4819
        %v5152 = vpop.f32.mrf.mxu0
        %v5153 = vadd.f32 %v4793, %v5152
        %v5154 = vpop.f32.mrf.mxu0
        %v5155 = vadd.f32 %v4793, %v5154
        %5156 = vmatprep.mubr.f32.mxu0 0.0
        %5157 = vmatmul.mubr.f32.gmra.mxu0 %v4822
        %v5158 = vpop.f32.mrf.mxu0
        %v5159 = vadd.f32 %v4798, %v5158
        %v5160 = vpop.f32.mrf.mxu0
        %v5161 = vadd.f32 %v4798, %v5160
        %5162 = vdwg.mxu0
        %5163 = vmatprep.subr.mxu0 0.0
        %5164 = vmatpush1.msra.mxu0 0.0
        %5165 = vmatprep.subr.mxu0 0.0
        %5166 = vmatpush1.msra.mxu0 0.0
        %5167 = vmatprep.subr.mxu0 0.0
        %5168 = vmatpush1.msra.mxu0 0.0
        %5169 = vmatprep.subr.mxu0 0.0
        %5170 = vmatpush1.msra.mxu0 0.0
        %5171 = vmatprep.subr.mxu0 0.0
        %5172 = vmatpush1.msra.mxu0 0.0
        %5173 = vmatprep.subr.mxu0 0.0
        %5174 = vmatpush1.msra.mxu0 0.0
        %5175 = vmatprep.subr.mxu0 0.0
        %5176 = vmatpush1.msra.mxu0 0.0
        %5177 = vmatprep.subr.mxu0 0.0
        %5178 = vmatpush1.msra.mxu0 0.0
        %5179 = vmatprep.subr.mxu0 %v4743
        %5180 = vmatpush1.msra.mxu0 %v4742
        %5181 = vmatprep.subr.mxu0 %v4735
        %5182 = vmatpush1.msra.mxu0 %v4734
        %5183 = vmatprep.subr.mxu0 %v4727
        %5184 = vmatpush1.msra.mxu0 %v4726
        %5185 = vmatprep.subr.mxu0 %v4719
        %5186 = vmatpush1.msra.mxu0 %v4718
        %5187 = vmatprep.subr.mxu0 %v4711
        %5188 = vmatpush1.msra.mxu0 %v4710
        %5189 = vmatprep.subr.mxu0 %v4703
        %5190 = vmatpush1.msra.mxu0 %v4702
        %5191 = vmatprep.subr.mxu0 %v4695
        %5192 = vmatpush1.msra.mxu0 %v4694
        %5193 = vmatprep.subr.mxu0 %v4687
        %5194 = vmatpush1.msra.mxu0 %v4686
        %5195 = vmatprep.subr.mxu0 0.0
        %5196 = vmatpush2.msra.mxu0 0.0
        %5197 = vmatprep.subr.mxu0 0.0
        %5198 = vmatpush2.msra.mxu0 0.0
        %5199 = vmatprep.subr.mxu0 0.0
        %5200 = vmatpush2.msra.mxu0 0.0
        %5201 = vmatprep.subr.mxu0 0.0
        %5202 = vmatpush2.msra.mxu0 0.0
        %5203 = vmatprep.subr.mxu0 0.0
        %5204 = vmatpush2.msra.mxu0 0.0
        %5205 = vmatprep.subr.mxu0 0.0
        %5206 = vmatpush2.msra.mxu0 0.0
        %5207 = vmatprep.subr.mxu0 0.0
        %5208 = vmatpush2.msra.mxu0 0.0
        %5209 = vmatprep.subr.mxu0 0.0
        %5210 = vmatpush2.msra.mxu0 0.0
        %5211 = vmatprep.subr.mxu0 0.0
        %5212 = vmatpush2.msra.mxu0 0.0
        %5213 = vmatprep.subr.mxu0 0.0
        %5214 = vmatpush2.msra.mxu0 0.0
        %5215 = vmatprep.subr.mxu0 0.0
        %5216 = vmatpush2.msra.mxu0 0.0
        %5217 = vmatprep.subr.mxu0 0.0
        %5218 = vmatpush2.msra.mxu0 0.0
        %5219 = vmatprep.subr.mxu0 0.0
        %5220 = vmatpush2.msra.mxu0 0.0
        %5221 = vmatprep.subr.mxu0 0.0
        %5222 = vmatpush2.msra.mxu0 0.0
        %5223 = vmatprep.subr.mxu0 0.0
        %5224 = vmatpush2.msra.mxu0 0.0
        %5225 = vmatprep.subr.mxu0 0.0
        %5226 = vmatpush2.msra.mxu0 0.0
        %5227 = vmatprep.mubr.f32.mxu0 0.0
        %5228 = vmatmul.mubr.f32.gmra.mxu0 %v4801
        %v5229 = vpop.f32.mrf.mxu0
        %v5230 = vadd.f32 %v4763, %v5229
        %v5231 = vpop.f32.mrf.mxu0
        %v5232 = vadd.f32 %v4763, %v5231
        %5233 = vmatprep.mubr.f32.mxu0 0.0
        %5234 = vmatmul.mubr.f32.gmra.mxu0 %v4804
        %v5235 = vpop.f32.mrf.mxu0
        %v5236 = vadd.f32 %v4768, %v5235
        %v5237 = vpop.f32.mrf.mxu0
        %v5238 = vadd.f32 %v4768, %v5237
        %5239 = vmatprep.mubr.f32.mxu0 0.0
        %5240 = vmatmul.mubr.f32.gmra.mxu0 %v4807
        %v5241 = vpop.f32.mrf.mxu0
        %v5242 = vadd.f32 %v4773, %v5241
        %v5243 = vpop.f32.mrf.mxu0
        %v5244 = vadd.f32 %v4773, %v5243
        %5245 = vmatprep.mubr.f32.mxu0 0.0
        %5246 = vmatmul.mubr.f32.gmra.mxu0 %v4810
        %v5247 = vpop.f32.mrf.mxu0
        %v5248 = vadd.f32 %v4778, %v5247
        %v5249 = vpop.f32.mrf.mxu0
        %v5250 = vadd.f32 %v4778, %v5249
        %5251 = vmatprep.mubr.f32.mxu0 0.0
        %5252 = vmatmul.mubr.f32.gmra.mxu0 %v4813
        %v5253 = vpop.f32.mrf.mxu0
        %v5254 = vadd.f32 %v4783, %v5253
        %v5255 = vpop.f32.mrf.mxu0
        %v5256 = vadd.f32 %v4783, %v5255
        %5257 = vmatprep.mubr.f32.mxu0 0.0
        %5258 = vmatmul.mubr.f32.gmra.mxu0 %v4816
        %v5259 = vpop.f32.mrf.mxu0
        %v5260 = vadd.f32 %v4788, %v5259
        %v5261 = vpop.f32.mrf.mxu0
        %v5262 = vadd.f32 %v4788, %v5261
        %5263 = vmatprep.mubr.f32.mxu0 0.0
        %5264 = vmatmul.mubr.f32.gmra.mxu0 %v4819
        %v5265 = vpop.f32.mrf.mxu0
        %v5266 = vadd.f32 %v4793, %v5265
        %v5267 = vpop.f32.mrf.mxu0
        %v5268 = vadd.f32 %v4793, %v5267
        %5269 = vmatprep.mubr.f32.mxu0 0.0
        %5270 = vmatmul.mubr.f32.gmra.mxu0 %v4822
        %v5271 = vpop.f32.mrf.mxu0
        %v5272 = vadd.f32 %v4798, %v5271
        %v5273 = vpop.f32.mrf.mxu0
        %v5274 = vadd.f32 %v4798, %v5273
        %5275 = vdwg.mxu0
        %v5276 = vmul.f32 %v4891, 100.0
        %v5277 = vmul.f32 %v4893, 100.0
        %v5278 = vmul.f32 %v5004, 100.0
        %v5279 = vmul.f32 %v5006, 100.0
        %v5280 = vmul.f32 %v5117, 100.0
        %v5281 = vmul.f32 %v5119, 100.0
        %v5282 = vmul.f32 %v5230, 100.0
        %v5283 = vmul.f32 %v5232, 100.0
        %v5284 = vmul.f32 %v4897, 100.0
        %v5285 = vmul.f32 %v4899, 100.0
        %v5286 = vmul.f32 %v5010, 100.0
        %v5287 = vmul.f32 %v5012, 100.0
        %v5288 = vmul.f32 %v5123, 100.0
        %v5289 = vmul.f32 %v5125, 100.0
        %v5290 = vmul.f32 %v5236, 100.0
        %v5291 = vmul.f32 %v5238, 100.0
        %v5292 = vmul.f32 %v4903, 100.0
        %v5293 = vmul.f32 %v4905, 100.0
        %v5294 = vmul.f32 %v5016, 100.0
        %v5295 = vmul.f32 %v5018, 100.0
        %v5296 = vmul.f32 %v5129, 100.0
        %v5297 = vmul.f32 %v5131, 100.0
        %v5298 = vmul.f32 %v5242, 100.0
        %v5299 = vmul.f32 %v5244, 100.0
        %v5300 = vmul.f32 %v4909, 100.0
        %v5301 = vmul.f32 %v4911, 100.0
        %v5302 = vmul.f32 %v5022, 100.0
        %v5303 = vmul.f32 %v5024, 100.0
        %v5304 = vmul.f32 %v5135, 100.0
        %v5305 = vmul.f32 %v5137, 100.0
        %v5306 = vmul.f32 %v5248, 100.0
        %v5307 = vmul.f32 %v5250, 100.0
        %v5308 = vmul.f32 %v4915, 100.0
        %v5309 = vmul.f32 %v4917, 100.0
        %v5310 = vmul.f32 %v5028, 100.0
        %v5311 = vmul.f32 %v5030, 100.0
        %v5312 = vmul.f32 %v5141, 100.0
        %v5313 = vmul.f32 %v5143, 100.0
        %v5314 = vmul.f32 %v5254, 100.0
        %v5315 = vmul.f32 %v5256, 100.0
        %v5316 = vmul.f32 %v4921, 100.0
        %v5317 = vmul.f32 %v4923, 100.0
        %v5318 = vmul.f32 %v5034, 100.0
        %v5319 = vmul.f32 %v5036, 100.0
        %v5320 = vmul.f32 %v5147, 100.0
        %v5321 = vmul.f32 %v5149, 100.0
        %v5322 = vmul.f32 %v5260, 100.0
        %v5323 = vmul.f32 %v5262, 100.0
        %v5324 = vmul.f32 %v4927, 100.0
        %v5325 = vmul.f32 %v4929, 100.0
        %v5326 = vmul.f32 %v5040, 100.0
        %v5327 = vmul.f32 %v5042, 100.0
        %v5328 = vmul.f32 %v5153, 100.0
        %v5329 = vmul.f32 %v5155, 100.0
        %v5330 = vmul.f32 %v5266, 100.0
        %v5331 = vmul.f32 %v5268, 100.0
        %v5332 = vmul.f32 %v4933, 100.0
        %v5333 = vmul.f32 %v4935, 100.0
        %v5334 = vmul.f32 %v5046, 100.0
        %v5335 = vmul.f32 %v5048, 100.0
        %v5336 = vmul.f32 %v5159, 100.0
        %v5337 = vmul.f32 %v5161, 100.0
        %v5338 = vmul.f32 %v5272, 100.0
        %v5339 = vmul.f32 %v5274, 100.0
        %vm5340 = vcmp.gt.f32.partialorder %v5276, 20.0
        %vm5341 = vcmp.gt.f32.partialorder %v5277, 20.0
        %vm5342 = vcmp.gt.f32.partialorder %v5278, 20.0
        %vm5343 = vcmp.gt.f32.partialorder %v5279, 20.0
        %vm5344 = vcmp.gt.f32.partialorder %v5280, 20.0
        %vm5345 = vcmp.gt.f32.partialorder %v5281, 20.0
        %vm5346 = vcmp.gt.f32.partialorder %v5282, 20.0
        %vm5347 = vcmp.gt.f32.partialorder %v5283, 20.0
        %vm5348 = vcmp.gt.f32.partialorder %v5284, 20.0
        %vm5349 = vcmp.gt.f32.partialorder %v5285, 20.0
        %vm5350 = vcmp.gt.f32.partialorder %v5286, 20.0
        %vm5351 = vcmp.gt.f32.partialorder %v5287, 20.0
        %vm5352 = vcmp.gt.f32.partialorder %v5288, 20.0
        %vm5353 = vcmp.gt.f32.partialorder %v5289, 20.0
        %vm5354 = vcmp.gt.f32.partialorder %v5290, 20.0
        %vm5355 = vcmp.gt.f32.partialorder %v5291, 20.0
        %vm5356 = vcmp.gt.f32.partialorder %v5292, 20.0
        %vm5357 = vcmp.gt.f32.partialorder %v5293, 20.0
        %vm5358 = vcmp.gt.f32.partialorder %v5294, 20.0
        %vm5359 = vcmp.gt.f32.partialorder %v5295, 20.0
        %vm5360 = vcmp.gt.f32.partialorder %v5296, 20.0
        %vm5361 = vcmp.gt.f32.partialorder %v5297, 20.0
        %vm5362 = vcmp.gt.f32.partialorder %v5298, 20.0
        %vm5363 = vcmp.gt.f32.partialorder %v5299, 20.0
        %vm5364 = vcmp.gt.f32.partialorder %v5300, 20.0
        %vm5365 = vcmp.gt.f32.partialorder %v5301, 20.0
        %vm5366 = vcmp.gt.f32.partialorder %v5302, 20.0
        %vm5367 = vcmp.gt.f32.partialorder %v5303, 20.0
        %vm5368 = vcmp.gt.f32.partialorder %v5304, 20.0
        %vm5369 = vcmp.gt.f32.partialorder %v5305, 20.0
        %vm5370 = vcmp.gt.f32.partialorder %v5306, 20.0
        %vm5371 = vcmp.gt.f32.partialorder %v5307, 20.0
        %vm5372 = vcmp.gt.f32.partialorder %v5308, 20.0
        %vm5373 = vcmp.gt.f32.partialorder %v5309, 20.0
        %vm5374 = vcmp.gt.f32.partialorder %v5310, 20.0
        %vm5375 = vcmp.gt.f32.partialorder %v5311, 20.0
        %vm5376 = vcmp.gt.f32.partialorder %v5312, 20.0
        %vm5377 = vcmp.gt.f32.partialorder %v5313, 20.0
        %vm5378 = vcmp.gt.f32.partialorder %v5314, 20.0
        %vm5379 = vcmp.gt.f32.partialorder %v5315, 20.0
        %vm5380 = vcmp.gt.f32.partialorder %v5316, 20.0
        %vm5381 = vcmp.gt.f32.partialorder %v5317, 20.0
        %vm5382 = vcmp.gt.f32.partialorder %v5318, 20.0
        %vm5383 = vcmp.gt.f32.partialorder %v5319, 20.0
        %vm5384 = vcmp.gt.f32.partialorder %v5320, 20.0
        %vm5385 = vcmp.gt.f32.partialorder %v5321, 20.0
        %vm5386 = vcmp.gt.f32.partialorder %v5322, 20.0
        %vm5387 = vcmp.gt.f32.partialorder %v5323, 20.0
        %vm5388 = vcmp.gt.f32.partialorder %v5324, 20.0
        %vm5389 = vcmp.gt.f32.partialorder %v5325, 20.0
        %vm5390 = vcmp.gt.f32.partialorder %v5326, 20.0
        %vm5391 = vcmp.gt.f32.partialorder %v5327, 20.0
        %vm5392 = vcmp.gt.f32.partialorder %v5328, 20.0
        %vm5393 = vcmp.gt.f32.partialorder %v5329, 20.0
        %vm5394 = vcmp.gt.f32.partialorder %v5330, 20.0
        %vm5395 = vcmp.gt.f32.partialorder %v5331, 20.0
        %vm5396 = vcmp.gt.f32.partialorder %v5332, 20.0
        %vm5397 = vcmp.gt.f32.partialorder %v5333, 20.0
        %vm5398 = vcmp.gt.f32.partialorder %v5334, 20.0
        %vm5399 = vcmp.gt.f32.partialorder %v5335, 20.0
        %vm5400 = vcmp.gt.f32.partialorder %v5336, 20.0
        %vm5401 = vcmp.gt.f32.partialorder %v5337, 20.0
        %vm5402 = vcmp.gt.f32.partialorder %v5338, 20.0
        %vm5403 = vcmp.gt.f32.partialorder %v5339, 20.0
        %v5404 = vmin.f32 %v5276, 20.0
        %v5405 = vmin.f32 %v5277, 20.0
        %v5406 = vmin.f32 %v5278, 20.0
        %v5407 = vmin.f32 %v5279, 20.0
        %v5408 = vmin.f32 %v5280, 20.0
        %v5409 = vmin.f32 %v5281, 20.0
        %v5410 = vmin.f32 %v5282, 20.0
        %v5411 = vmin.f32 %v5283, 20.0
        %v5412 = vmin.f32 %v5284, 20.0
        %v5413 = vmin.f32 %v5285, 20.0
        %v5414 = vmin.f32 %v5286, 20.0
        %v5415 = vmin.f32 %v5287, 20.0
        %v5416 = vmin.f32 %v5288, 20.0
        %v5417 = vmin.f32 %v5289, 20.0
        %v5418 = vmin.f32 %v5290, 20.0
        %v5419 = vmin.f32 %v5291, 20.0
        %v5420 = vmin.f32 %v5292, 20.0
        %v5421 = vmin.f32 %v5293, 20.0
        %v5422 = vmin.f32 %v5294, 20.0
        %v5423 = vmin.f32 %v5295, 20.0
        %v5424 = vmin.f32 %v5296, 20.0
        %v5425 = vmin.f32 %v5297, 20.0
        %v5426 = vmin.f32 %v5298, 20.0
        %v5427 = vmin.f32 %v5299, 20.0
        %v5428 = vmin.f32 %v5300, 20.0
        %v5429 = vmin.f32 %v5301, 20.0
        %v5430 = vmin.f32 %v5302, 20.0
        %v5431 = vmin.f32 %v5303, 20.0
        %v5432 = vmin.f32 %v5304, 20.0
        %v5433 = vmin.f32 %v5305, 20.0
        %v5434 = vmin.f32 %v5306, 20.0
        %v5435 = vmin.f32 %v5307, 20.0
        %v5436 = vmin.f32 %v5308, 20.0
        %v5437 = vmin.f32 %v5309, 20.0
        %v5438 = vmin.f32 %v5310, 20.0
        %v5439 = vmin.f32 %v5311, 20.0
        %v5440 = vmin.f32 %v5312, 20.0
        %v5441 = vmin.f32 %v5313, 20.0
        %v5442 = vmin.f32 %v5314, 20.0
        %v5443 = vmin.f32 %v5315, 20.0
        %v5444 = vmin.f32 %v5316, 20.0
        %v5445 = vmin.f32 %v5317, 20.0
        %v5446 = vmin.f32 %v5318, 20.0
        %v5447 = vmin.f32 %v5319, 20.0
        %v5448 = vmin.f32 %v5320, 20.0
        %v5449 = vmin.f32 %v5321, 20.0
        %v5450 = vmin.f32 %v5322, 20.0
        %v5451 = vmin.f32 %v5323, 20.0
        %v5452 = vmin.f32 %v5324, 20.0
        %v5453 = vmin.f32 %v5325, 20.0
        %v5454 = vmin.f32 %v5326, 20.0
        %v5455 = vmin.f32 %v5327, 20.0
        %v5456 = vmin.f32 %v5328, 20.0
        %v5457 = vmin.f32 %v5329, 20.0
        %v5458 = vmin.f32 %v5330, 20.0
        %v5459 = vmin.f32 %v5331, 20.0
        %v5460 = vmin.f32 %v5332, 20.0
        %v5461 = vmin.f32 %v5333, 20.0
        %v5462 = vmin.f32 %v5334, 20.0
        %v5463 = vmin.f32 %v5335, 20.0
        %v5464 = vmin.f32 %v5336, 20.0
        %v5465 = vmin.f32 %v5337, 20.0
        %v5466 = vmin.f32 %v5338, 20.0
        %v5467 = vmin.f32 %v5339, 20.0
        %v5468 = vmul.f32 %v5404, 1.442695
        %v5469 = vpow.pop %v5468
        %v5470 = vmul.f32 %v5405, 1.442695
        %v5471 = vpow.pop %v5470
        %v5472 = vmul.f32 %v5406, 1.442695
        %v5473 = vpow.pop %v5472
        %v5474 = vmul.f32 %v5407, 1.442695
        %v5475 = vpow.pop %v5474
        %v5476 = vmul.f32 %v5408, 1.442695
        %v5477 = vpow.pop %v5476
        %v5478 = vmul.f32 %v5409, 1.442695
        %v5479 = vpow.pop %v5478
        %v5480 = vmul.f32 %v5410, 1.442695
        %v5481 = vpow.pop %v5480
        %v5482 = vmul.f32 %v5411, 1.442695
        %v5483 = vpow.pop %v5482
        %v5484 = vmul.f32 %v5412, 1.442695
        %v5485 = vpow.pop %v5484
        %v5486 = vmul.f32 %v5413, 1.442695
        %v5487 = vpow.pop %v5486
        %v5488 = vmul.f32 %v5414, 1.442695
        %v5489 = vpow.pop %v5488
        %v5490 = vmul.f32 %v5415, 1.442695
        %v5491 = vpow.pop %v5490
        %v5492 = vmul.f32 %v5416, 1.442695
        %v5493 = vpow.pop %v5492
        %v5494 = vmul.f32 %v5417, 1.442695
        %v5495 = vpow.pop %v5494
        %v5496 = vmul.f32 %v5418, 1.442695
        %v5497 = vpow.pop %v5496
        %v5498 = vmul.f32 %v5419, 1.442695
        %v5499 = vpow.pop %v5498
        %v5500 = vmul.f32 %v5420, 1.442695
        %v5501 = vpow.pop %v5500
        %v5502 = vmul.f32 %v5421, 1.442695
        %v5503 = vpow.pop %v5502
        %v5504 = vmul.f32 %v5422, 1.442695
        %v5505 = vpow.pop %v5504
        %v5506 = vmul.f32 %v5423, 1.442695
        %v5507 = vpow.pop %v5506
        %v5508 = vmul.f32 %v5424, 1.442695
        %v5509 = vpow.pop %v5508
        %v5510 = vmul.f32 %v5425, 1.442695
        %v5511 = vpow.pop %v5510
        %v5512 = vmul.f32 %v5426, 1.442695
        %v5513 = vpow.pop %v5512
        %v5514 = vmul.f32 %v5427, 1.442695
        %v5515 = vpow.pop %v5514
        %v5516 = vmul.f32 %v5428, 1.442695
        %v5517 = vpow.pop %v5516
        %v5518 = vmul.f32 %v5429, 1.442695
        %v5519 = vpow.pop %v5518
        %v5520 = vmul.f32 %v5430, 1.442695
        %v5521 = vpow.pop %v5520
        %v5522 = vmul.f32 %v5431, 1.442695
        %v5523 = vpow.pop %v5522
        %v5524 = vmul.f32 %v5432, 1.442695
        %v5525 = vpow.pop %v5524
        %v5526 = vmul.f32 %v5433, 1.442695
        %v5527 = vpow.pop %v5526
        %v5528 = vmul.f32 %v5434, 1.442695
        %v5529 = vpow.pop %v5528
        %v5530 = vmul.f32 %v5435, 1.442695
        %v5531 = vpow.pop %v5530
        %v5532 = vmul.f32 %v5436, 1.442695
        %v5533 = vpow.pop %v5532
        %v5534 = vmul.f32 %v5437, 1.442695
        %v5535 = vpow.pop %v5534
        %v5536 = vmul.f32 %v5438, 1.442695
        %v5537 = vpow.pop %v5536
        %v5538 = vmul.f32 %v5439, 1.442695
        %v5539 = vpow.pop %v5538
        %v5540 = vmul.f32 %v5440, 1.442695
        %v5541 = vpow.pop %v5540
        %v5542 = vmul.f32 %v5441, 1.442695
        %v5543 = vpow.pop %v5542
        %v5544 = vmul.f32 %v5442, 1.442695
        %v5545 = vpow.pop %v5544
        %v5546 = vmul.f32 %v5443, 1.442695
        %v5547 = vpow.pop %v5546
        %v5548 = vmul.f32 %v5444, 1.442695
        %v5549 = vpow.pop %v5548
        %v5550 = vmul.f32 %v5445, 1.442695
        %v5551 = vpow.pop %v5550
        %v5552 = vmul.f32 %v5446, 1.442695
        %v5553 = vpow.pop %v5552
        %v5554 = vmul.f32 %v5447, 1.442695
        %v5555 = vpow.pop %v5554
        %v5556 = vmul.f32 %v5448, 1.442695
        %v5557 = vpow.pop %v5556
        %v5558 = vmul.f32 %v5449, 1.442695
        %v5559 = vpow.pop %v5558
        %v5560 = vmul.f32 %v5450, 1.442695
        %v5561 = vpow.pop %v5560
        %v5562 = vmul.f32 %v5451, 1.442695
        %v5563 = vpow.pop %v5562
        %v5564 = vmul.f32 %v5452, 1.442695
        %v5565 = vpow.pop %v5564
        %v5566 = vmul.f32 %v5453, 1.442695
        %v5567 = vpow.pop %v5566
        %v5568 = vmul.f32 %v5454, 1.442695
        %v5569 = vpow.pop %v5568
        %v5570 = vmul.f32 %v5455, 1.442695
        %v5571 = vpow.pop %v5570
        %v5572 = vmul.f32 %v5456, 1.442695
        %v5573 = vpow.pop %v5572
        %v5574 = vmul.f32 %v5457, 1.442695
        %v5575 = vpow.pop %v5574
        %v5576 = vmul.f32 %v5458, 1.442695
        %v5577 = vpow.pop %v5576
        %v5578 = vmul.f32 %v5459, 1.442695
        %v5579 = vpow.pop %v5578
        %v5580 = vmul.f32 %v5460, 1.442695
        %v5581 = vpow.pop %v5580
        %v5582 = vmul.f32 %v5461, 1.442695
        %v5583 = vpow.pop %v5582
        %v5584 = vmul.f32 %v5462, 1.442695
        %v5585 = vpow.pop %v5584
        %v5586 = vmul.f32 %v5463, 1.442695
        %v5587 = vpow.pop %v5586
        %v5588 = vmul.f32 %v5464, 1.442695
        %v5589 = vpow.pop %v5588
        %v5590 = vmul.f32 %v5465, 1.442695
        %v5591 = vpow.pop %v5590
        %v5592 = vmul.f32 %v5466, 1.442695
        %v5593 = vpow.pop %v5592
        %v5594 = vmul.f32 %v5467, 1.442695
        %v5595 = vpow.pop %v5594
        %v5596 = vadd.f32 %v5469, 1.0
        %v5597 = vadd.f32 %v5471, 1.0
        %v5598 = vadd.f32 %v5473, 1.0
        %v5599 = vadd.f32 %v5475, 1.0
        %v5600 = vadd.f32 %v5477, 1.0
        %v5601 = vadd.f32 %v5479, 1.0
        %v5602 = vadd.f32 %v5481, 1.0
        %v5603 = vadd.f32 %v5483, 1.0
        %v5604 = vadd.f32 %v5485, 1.0
        %v5605 = vadd.f32 %v5487, 1.0
        %v5606 = vadd.f32 %v5489, 1.0
        %v5607 = vadd.f32 %v5491, 1.0
        %v5608 = vadd.f32 %v5493, 1.0
        %v5609 = vadd.f32 %v5495, 1.0
        %v5610 = vadd.f32 %v5497, 1.0
        %v5611 = vadd.f32 %v5499, 1.0
        %v5612 = vadd.f32 %v5501, 1.0
        %v5613 = vadd.f32 %v5503, 1.0
        %v5614 = vadd.f32 %v5505, 1.0
        %v5615 = vadd.f32 %v5507, 1.0
        %v5616 = vadd.f32 %v5509, 1.0
        %v5617 = vadd.f32 %v5511, 1.0
        %v5618 = vadd.f32 %v5513, 1.0
        %v5619 = vadd.f32 %v5515, 1.0
        %v5620 = vadd.f32 %v5517, 1.0
        %v5621 = vadd.f32 %v5519, 1.0
        %v5622 = vadd.f32 %v5521, 1.0
        %v5623 = vadd.f32 %v5523, 1.0
        %v5624 = vadd.f32 %v5525, 1.0
        %v5625 = vadd.f32 %v5527, 1.0
        %v5626 = vadd.f32 %v5529, 1.0
        %v5627 = vadd.f32 %v5531, 1.0
        %v5628 = vadd.f32 %v5533, 1.0
        %v5629 = vadd.f32 %v5535, 1.0
        %v5630 = vadd.f32 %v5537, 1.0
        %v5631 = vadd.f32 %v5539, 1.0
        %v5632 = vadd.f32 %v5541, 1.0
        %v5633 = vadd.f32 %v5543, 1.0
        %v5634 = vadd.f32 %v5545, 1.0
        %v5635 = vadd.f32 %v5547, 1.0
        %v5636 = vadd.f32 %v5549, 1.0
        %v5637 = vadd.f32 %v5551, 1.0
        %v5638 = vadd.f32 %v5553, 1.0
        %v5639 = vadd.f32 %v5555, 1.0
        %v5640 = vadd.f32 %v5557, 1.0
        %v5641 = vadd.f32 %v5559, 1.0
        %v5642 = vadd.f32 %v5561, 1.0
        %v5643 = vadd.f32 %v5563, 1.0
        %v5644 = vadd.f32 %v5565, 1.0
        %v5645 = vadd.f32 %v5567, 1.0
        %v5646 = vadd.f32 %v5569, 1.0
        %v5647 = vadd.f32 %v5571, 1.0
        %v5648 = vadd.f32 %v5573, 1.0
        %v5649 = vadd.f32 %v5575, 1.0
        %v5650 = vadd.f32 %v5577, 1.0
        %v5651 = vadd.f32 %v5579, 1.0
        %v5652 = vadd.f32 %v5581, 1.0
        %v5653 = vadd.f32 %v5583, 1.0
        %v5654 = vadd.f32 %v5585, 1.0
        %v5655 = vadd.f32 %v5587, 1.0
        %v5656 = vadd.f32 %v5589, 1.0
        %v5657 = vadd.f32 %v5591, 1.0
        %v5658 = vadd.f32 %v5593, 1.0
        %v5659 = vadd.f32 %v5595, 1.0
        %v5660 = vlog2.pop %v5596
        %v5661 = vmul.f32 %v5660, 0.6931472
        %v5662 = vlog2.pop %v5597
        %v5663 = vmul.f32 %v5662, 0.6931472
        %v5664 = vlog2.pop %v5598
        %v5665 = vmul.f32 %v5664, 0.6931472
        %v5666 = vlog2.pop %v5599
        %v5667 = vmul.f32 %v5666, 0.6931472
        %v5668 = vlog2.pop %v5600
        %v5669 = vmul.f32 %v5668, 0.6931472
        %v5670 = vlog2.pop %v5601
        %v5671 = vmul.f32 %v5670, 0.6931472
        %v5672 = vlog2.pop %v5602
        %v5673 = vmul.f32 %v5672, 0.6931472
        %v5674 = vlog2.pop %v5603
        %v5675 = vmul.f32 %v5674, 0.6931472
        %v5676 = vlog2.pop %v5604
        %v5677 = vmul.f32 %v5676, 0.6931472
        %v5678 = vlog2.pop %v5605
        %v5679 = vmul.f32 %v5678, 0.6931472
        %v5680 = vlog2.pop %v5606
        %v5681 = vmul.f32 %v5680, 0.6931472
        %v5682 = vlog2.pop %v5607
        %v5683 = vmul.f32 %v5682, 0.6931472
        %v5684 = vlog2.pop %v5608
        %v5685 = vmul.f32 %v5684, 0.6931472
        %v5686 = vlog2.pop %v5609
        %v5687 = vmul.f32 %v5686, 0.6931472
        %v5688 = vlog2.pop %v5610
        %v5689 = vmul.f32 %v5688, 0.6931472
        %v5690 = vlog2.pop %v5611
        %v5691 = vmul.f32 %v5690, 0.6931472
        %v5692 = vlog2.pop %v5612
        %v5693 = vmul.f32 %v5692, 0.6931472
        %v5694 = vlog2.pop %v5613
        %v5695 = vmul.f32 %v5694, 0.6931472
        %v5696 = vlog2.pop %v5614
        %v5697 = vmul.f32 %v5696, 0.6931472
        %v5698 = vlog2.pop %v5615
        %v5699 = vmul.f32 %v5698, 0.6931472
        %v5700 = vlog2.pop %v5616
        %v5701 = vmul.f32 %v5700, 0.6931472
        %v5702 = vlog2.pop %v5617
        %v5703 = vmul.f32 %v5702, 0.6931472
        %v5704 = vlog2.pop %v5618
        %v5705 = vmul.f32 %v5704, 0.6931472
        %v5706 = vlog2.pop %v5619
        %v5707 = vmul.f32 %v5706, 0.6931472
        %v5708 = vlog2.pop %v5620
        %v5709 = vmul.f32 %v5708, 0.6931472
        %v5710 = vlog2.pop %v5621
        %v5711 = vmul.f32 %v5710, 0.6931472
        %v5712 = vlog2.pop %v5622
        %v5713 = vmul.f32 %v5712, 0.6931472
        %v5714 = vlog2.pop %v5623
        %v5715 = vmul.f32 %v5714, 0.6931472
        %v5716 = vlog2.pop %v5624
        %v5717 = vmul.f32 %v5716, 0.6931472
        %v5718 = vlog2.pop %v5625
        %v5719 = vmul.f32 %v5718, 0.6931472
        %v5720 = vlog2.pop %v5626
        %v5721 = vmul.f32 %v5720, 0.6931472
        %v5722 = vlog2.pop %v5627
        %v5723 = vmul.f32 %v5722, 0.6931472
        %v5724 = vlog2.pop %v5628
        %v5725 = vmul.f32 %v5724, 0.6931472
        %v5726 = vlog2.pop %v5629
        %v5727 = vmul.f32 %v5726, 0.6931472
        %v5728 = vlog2.pop %v5630
        %v5729 = vmul.f32 %v5728, 0.6931472
        %v5730 = vlog2.pop %v5631
        %v5731 = vmul.f32 %v5730, 0.6931472
        %v5732 = vlog2.pop %v5632
        %v5733 = vmul.f32 %v5732, 0.6931472
        %v5734 = vlog2.pop %v5633
        %v5735 = vmul.f32 %v5734, 0.6931472
        %v5736 = vlog2.pop %v5634
        %v5737 = vmul.f32 %v5736, 0.6931472
        %v5738 = vlog2.pop %v5635
        %v5739 = vmul.f32 %v5738, 0.6931472
        %v5740 = vlog2.pop %v5636
        %v5741 = vmul.f32 %v5740, 0.6931472
        %v5742 = vlog2.pop %v5637
        %v5743 = vmul.f32 %v5742, 0.6931472
        %v5744 = vlog2.pop %v5638
        %v5745 = vmul.f32 %v5744, 0.6931472
        %v5746 = vlog2.pop %v5639
        %v5747 = vmul.f32 %v5746, 0.6931472
        %v5748 = vlog2.pop %v5640
        %v5749 = vmul.f32 %v5748, 0.6931472
        %v5750 = vlog2.pop %v5641
        %v5751 = vmul.f32 %v5750, 0.6931472
        %v5752 = vlog2.pop %v5642
        %v5753 = vmul.f32 %v5752, 0.6931472
        %v5754 = vlog2.pop %v5643
        %v5755 = vmul.f32 %v5754, 0.6931472
        %v5756 = vlog2.pop %v5644
        %v5757 = vmul.f32 %v5756, 0.6931472
        %v5758 = vlog2.pop %v5645
        %v5759 = vmul.f32 %v5758, 0.6931472
        %v5760 = vlog2.pop %v5646
        %v5761 = vmul.f32 %v5760, 0.6931472
        %v5762 = vlog2.pop %v5647
        %v5763 = vmul.f32 %v5762, 0.6931472
        %v5764 = vlog2.pop %v5648
        %v5765 = vmul.f32 %v5764, 0.6931472
        %v5766 = vlog2.pop %v5649
        %v5767 = vmul.f32 %v5766, 0.6931472
        %v5768 = vlog2.pop %v5650
        %v5769 = vmul.f32 %v5768, 0.6931472
        %v5770 = vlog2.pop %v5651
        %v5771 = vmul.f32 %v5770, 0.6931472
        %v5772 = vlog2.pop %v5652
        %v5773 = vmul.f32 %v5772, 0.6931472
        %v5774 = vlog2.pop %v5653
        %v5775 = vmul.f32 %v5774, 0.6931472
        %v5776 = vlog2.pop %v5654
        %v5777 = vmul.f32 %v5776, 0.6931472
        %v5778 = vlog2.pop %v5655
        %v5779 = vmul.f32 %v5778, 0.6931472
        %v5780 = vlog2.pop %v5656
        %v5781 = vmul.f32 %v5780, 0.6931472
        %v5782 = vlog2.pop %v5657
        %v5783 = vmul.f32 %v5782, 0.6931472
        %v5784 = vlog2.pop %v5658
        %v5785 = vmul.f32 %v5784, 0.6931472
        %v5786 = vlog2.pop %v5659
        %v5787 = vmul.f32 %v5786, 0.6931472
        %v5788 = vmul.f32 %v5661, %v1724
        %v5789 = vmul.f32 %v5663, %v1724
        %v5790 = vmul.f32 %v5665, %v1724
        %v5791 = vmul.f32 %v5667, %v1724
        %v5792 = vmul.f32 %v5669, %v1724
        %v5793 = vmul.f32 %v5671, %v1724
        %v5794 = vmul.f32 %v5673, %v1724
        %v5795 = vmul.f32 %v5675, %v1724
        %v5796 = vmul.f32 %v5677, %v1724
        %v5797 = vmul.f32 %v5679, %v1724
        %v5798 = vmul.f32 %v5681, %v1724
        %v5799 = vmul.f32 %v5683, %v1724
        %v5800 = vmul.f32 %v5685, %v1724
        %v5801 = vmul.f32 %v5687, %v1724
        %v5802 = vmul.f32 %v5689, %v1724
        %v5803 = vmul.f32 %v5691, %v1724
        %v5804 = vmul.f32 %v5693, %v1724
        %v5805 = vmul.f32 %v5695, %v1724
        %v5806 = vmul.f32 %v5697, %v1724
        %v5807 = vmul.f32 %v5699, %v1724
        %v5808 = vmul.f32 %v5701, %v1724
        %v5809 = vmul.f32 %v5703, %v1724
        %v5810 = vmul.f32 %v5705, %v1724
        %v5811 = vmul.f32 %v5707, %v1724
        %v5812 = vmul.f32 %v5709, %v1724
        %v5813 = vmul.f32 %v5711, %v1724
        %v5814 = vmul.f32 %v5713, %v1724
        %v5815 = vmul.f32 %v5715, %v1724
        %v5816 = vmul.f32 %v5717, %v1724
        %v5817 = vmul.f32 %v5719, %v1724
        %v5818 = vmul.f32 %v5721, %v1724
        %v5819 = vmul.f32 %v5723, %v1724
        %v5820 = vmul.f32 %v5725, %v1724
        %v5821 = vmul.f32 %v5727, %v1724
        %v5822 = vmul.f32 %v5729, %v1724
        %v5823 = vmul.f32 %v5731, %v1724
        %v5824 = vmul.f32 %v5733, %v1724
        %v5825 = vmul.f32 %v5735, %v1724
        %v5826 = vmul.f32 %v5737, %v1724
        %v5827 = vmul.f32 %v5739, %v1724
        %v5828 = vmul.f32 %v5741, %v1724
        %v5829 = vmul.f32 %v5743, %v1724
        %v5830 = vmul.f32 %v5745, %v1724
        %v5831 = vmul.f32 %v5747, %v1724
        %v5832 = vmul.f32 %v5749, %v1724
        %v5833 = vmul.f32 %v5751, %v1724
        %v5834 = vmul.f32 %v5753, %v1724
        %v5835 = vmul.f32 %v5755, %v1724
        %v5836 = vmul.f32 %v5757, %v1724
        %v5837 = vmul.f32 %v5759, %v1724
        %v5838 = vmul.f32 %v5761, %v1724
        %v5839 = vmul.f32 %v5763, %v1724
        %v5840 = vmul.f32 %v5765, %v1724
        %v5841 = vmul.f32 %v5767, %v1724
        %v5842 = vmul.f32 %v5769, %v1724
        %v5843 = vmul.f32 %v5771, %v1724
        %v5844 = vmul.f32 %v5773, %v1724
        %v5845 = vmul.f32 %v5775, %v1724
        %v5846 = vmul.f32 %v5777, %v1724
        %v5847 = vmul.f32 %v5779, %v1724
        %v5848 = vmul.f32 %v5781, %v1724
        %v5849 = vmul.f32 %v5783, %v1724
        %v5850 = vmul.f32 %v5785, %v1724
        %v5851 = vmul.f32 %v5787, %v1724
        %v5852 = vsel %vm5340, %v4891, %v5788
        %v5853 = vsel %vm5341, %v4893, %v5789
        %v5854 = vsel %vm5342, %v5004, %v5790
        %v5855 = vsel %vm5343, %v5006, %v5791
        %v5856 = vsel %vm5344, %v5117, %v5792
        %v5857 = vsel %vm5345, %v5119, %v5793
        %v5858 = vsel %vm5346, %v5230, %v5794
        %v5859 = vsel %vm5347, %v5232, %v5795
        %v5860 = vsel %vm5348, %v4897, %v5796
        %v5861 = vsel %vm5349, %v4899, %v5797
        %v5862 = vsel %vm5350, %v5010, %v5798
        %v5863 = vsel %vm5351, %v5012, %v5799
        %v5864 = vsel %vm5352, %v5123, %v5800
        %v5865 = vsel %vm5353, %v5125, %v5801
        %v5866 = vsel %vm5354, %v5236, %v5802
        %v5867 = vsel %vm5355, %v5238, %v5803
        %v5868 = vsel %vm5356, %v4903, %v5804
        %v5869 = vsel %vm5357, %v4905, %v5805
        %v5870 = vsel %vm5358, %v5016, %v5806
        %v5871 = vsel %vm5359, %v5018, %v5807
        %v5872 = vsel %vm5360, %v5129, %v5808
        %v5873 = vsel %vm5361, %v5131, %v5809
        %v5874 = vsel %vm5362, %v5242, %v5810
        %v5875 = vsel %vm5363, %v5244, %v5811
        %v5876 = vsel %vm5364, %v4909, %v5812
        %v5877 = vsel %vm5365, %v4911, %v5813
        %v5878 = vsel %vm5366, %v5022, %v5814
        %v5879 = vsel %vm5367, %v5024, %v5815
        %v5880 = vsel %vm5368, %v5135, %v5816
        %v5881 = vsel %vm5369, %v5137, %v5817
        %v5882 = vsel %vm5370, %v5248, %v5818
        %v5883 = vsel %vm5371, %v5250, %v5819
        %v5884 = vsel %vm5372, %v4915, %v5820
        %v5885 = vsel %vm5373, %v4917, %v5821
        %v5886 = vsel %vm5374, %v5028, %v5822
        %v5887 = vsel %vm5375, %v5030, %v5823
        %v5888 = vsel %vm5376, %v5141, %v5824
        %v5889 = vsel %vm5377, %v5143, %v5825
        %v5890 = vsel %vm5378, %v5254, %v5826
        %v5891 = vsel %vm5379, %v5256, %v5827
        %v5892 = vsel %vm5380, %v4921, %v5828
        %v5893 = vsel %vm5381, %v4923, %v5829
        %v5894 = vsel %vm5382, %v5034, %v5830
        %v5895 = vsel %vm5383, %v5036, %v5831
        %v5896 = vsel %vm5384, %v5147, %v5832
        %v5897 = vsel %vm5385, %v5149, %v5833
        %v5898 = vsel %vm5386, %v5260, %v5834
        %v5899 = vsel %vm5387, %v5262, %v5835
        %v5900 = vsel %vm5388, %v4927, %v5836
        %v5901 = vsel %vm5389, %v4929, %v5837
        %v5902 = vsel %vm5390, %v5040, %v5838
        %v5903 = vsel %vm5391, %v5042, %v5839
        %v5904 = vsel %vm5392, %v5153, %v5840
        %v5905 = vsel %vm5393, %v5155, %v5841
        %v5906 = vsel %vm5394, %v5266, %v5842
        %v5907 = vsel %vm5395, %v5268, %v5843
        %v5908 = vsel %vm5396, %v4933, %v5844
        %v5909 = vsel %vm5397, %v4935, %v5845
        %v5910 = vsel %vm5398, %v5046, %v5846
        %v5911 = vsel %vm5399, %v5048, %v5847
        %v5912 = vsel %vm5400, %v5159, %v5848
        %v5913 = vsel %vm5401, %v5161, %v5849
        %v5914 = vsel %vm5402, %v5272, %v5850
        %v5915 = vsel %vm5403, %v5274, %v5851
        %v5916 = vld [vmem:[%s11] sm:$0x1]
        %v5917 = vld [vmem:[#allocation2] sm:$0x1]
        %5919 = vset.pattern.permute.xlu0 0
        %5920 = vperm.xlu0 %5919, %v5917
        %v5921 = vpop.permute.xlu0 %5920
        %v5923 = vlaneseq
        %v5924 = vshrl.u32 %v5923, 7
        %v5925 = vsub.s32 0, %v5924
        %v5926 = vrot.slane %v5921, %v5925
        %v5928 = vsel %vm1909, %v5916, 0
        %5930 = vmatprep.subr.mxu0 0.0
        %5931 = vmatpush1.msra.mxu0 0.0
        %5932 = vmatprep.subr.mxu0 0.0
        %5933 = vmatpush1.msra.mxu0 0.0
        %5934 = vmatprep.subr.mxu0 0.0
        %5935 = vmatpush1.msra.mxu0 0.0
        %5936 = vmatprep.subr.mxu0 0.0
        %5937 = vmatpush1.msra.mxu0 0.0
        %5938 = vmatprep.subr.mxu0 0.0
        %5939 = vmatpush1.msra.mxu0 0.0
        %5940 = vmatprep.subr.mxu0 0.0
        %5941 = vmatpush1.msra.mxu0 0.0
        %5942 = vmatprep.subr.mxu0 0.0
        %5943 = vmatpush1.msra.mxu0 0.0
        %5944 = vmatprep.subr.mxu0 0.0
        %5945 = vmatpush1.msra.mxu0 0.0
        %5946 = vmatprep.subr.mxu0 %v5909
        %5947 = vmatpush1.msra.mxu0 %v5908
        %5948 = vmatprep.subr.mxu0 %v5901
        %5949 = vmatpush1.msra.mxu0 %v5900
        %5950 = vmatprep.subr.mxu0 %v5893
        %5951 = vmatpush1.msra.mxu0 %v5892
        %5952 = vmatprep.subr.mxu0 %v5885
        %5953 = vmatpush1.msra.mxu0 %v5884
        %5954 = vmatprep.subr.mxu0 %v5877
        %5955 = vmatpush1.msra.mxu0 %v5876
        %5956 = vmatprep.subr.mxu0 %v5869
        %5957 = vmatpush1.msra.mxu0 %v5868
        %5958 = vmatprep.subr.mxu0 %v5861
        %5959 = vmatpush1.msra.mxu0 %v5860
        %5960 = vmatprep.subr.mxu0 %v5853
        %5961 = vmatpush1.msra.mxu0 %v5852
        %5962 = vmatprep.subr.mxu0 0.0
        %5963 = vmatpush2.msra.mxu0 0.0
        %5964 = vmatprep.subr.mxu0 0.0
        %5965 = vmatpush2.msra.mxu0 0.0
        %5966 = vmatprep.subr.mxu0 0.0
        %5967 = vmatpush2.msra.mxu0 0.0
        %5968 = vmatprep.subr.mxu0 0.0
        %5969 = vmatpush2.msra.mxu0 0.0
        %5970 = vmatprep.subr.mxu0 0.0
        %5971 = vmatpush2.msra.mxu0 0.0
        %5972 = vmatprep.subr.mxu0 0.0
        %5973 = vmatpush2.msra.mxu0 0.0
        %5974 = vmatprep.subr.mxu0 0.0
        %5975 = vmatpush2.msra.mxu0 0.0
        %5976 = vmatprep.subr.mxu0 0.0
        %5977 = vmatpush2.msra.mxu0 0.0
        %5978 = vmatprep.subr.mxu0 0.0
        %5979 = vmatpush2.msra.mxu0 0.0
        %5980 = vmatprep.subr.mxu0 0.0
        %5981 = vmatpush2.msra.mxu0 0.0
        %5982 = vmatprep.subr.mxu0 0.0
        %5983 = vmatpush2.msra.mxu0 0.0
        %5984 = vmatprep.subr.mxu0 0.0
        %5985 = vmatpush2.msra.mxu0 0.0
        %5986 = vmatprep.subr.mxu0 0.0
        %5987 = vmatpush2.msra.mxu0 0.0
        %5988 = vmatprep.subr.mxu0 0.0
        %5989 = vmatpush2.msra.mxu0 0.0
        %5990 = vmatprep.subr.mxu0 0.0
        %5991 = vmatpush2.msra.mxu0 0.0
        %5992 = vmatprep.subr.mxu0 0.0
        %5993 = vmatpush2.msra.mxu0 0.0
        %5994 = vmatprep.mubr.f32.mxu0 0.0
        %5995 = vmatmul.mubr.f32.gmra.mxu0 %v5928
        %v5996 = vpop.f32.mrf.mxu0
        %v5997 = vadd.f32 %v5926, %v5996
        %v5998 = vpop.f32.mrf.mxu0
        %v5999 = vadd.f32 %v5926, %v5998
        %6000 = vdwg.mxu0
        %6001 = vmatprep.subr.mxu0 0.0
        %6002 = vmatpush1.msra.mxu0 0.0
        %6003 = vmatprep.subr.mxu0 0.0
        %6004 = vmatpush1.msra.mxu0 0.0
        %6005 = vmatprep.subr.mxu0 0.0
        %6006 = vmatpush1.msra.mxu0 0.0
        %6007 = vmatprep.subr.mxu0 0.0
        %6008 = vmatpush1.msra.mxu0 0.0
        %6009 = vmatprep.subr.mxu0 0.0
        %6010 = vmatpush1.msra.mxu0 0.0
        %6011 = vmatprep.subr.mxu0 0.0
        %6012 = vmatpush1.msra.mxu0 0.0
        %6013 = vmatprep.subr.mxu0 0.0
        %6014 = vmatpush1.msra.mxu0 0.0
        %6015 = vmatprep.subr.mxu0 0.0
        %6016 = vmatpush1.msra.mxu0 0.0
        %6017 = vmatprep.subr.mxu0 %v5911
        %6018 = vmatpush1.msra.mxu0 %v5910
        %6019 = vmatprep.subr.mxu0 %v5903
        %6020 = vmatpush1.msra.mxu0 %v5902
        %6021 = vmatprep.subr.mxu0 %v5895
        %6022 = vmatpush1.msra.mxu0 %v5894
        %6023 = vmatprep.subr.mxu0 %v5887
        %6024 = vmatpush1.msra.mxu0 %v5886
        %6025 = vmatprep.subr.mxu0 %v5879
        %6026 = vmatpush1.msra.mxu0 %v5878
        %6027 = vmatprep.subr.mxu0 %v5871
        %6028 = vmatpush1.msra.mxu0 %v5870
        %6029 = vmatprep.subr.mxu0 %v5863
        %6030 = vmatpush1.msra.mxu0 %v5862
        %6031 = vmatprep.subr.mxu0 %v5855
        %6032 = vmatpush1.msra.mxu0 %v5854
        %6033 = vmatprep.subr.mxu0 0.0
        %6034 = vmatpush2.msra.mxu0 0.0
        %6035 = vmatprep.subr.mxu0 0.0
        %6036 = vmatpush2.msra.mxu0 0.0
        %6037 = vmatprep.subr.mxu0 0.0
        %6038 = vmatpush2.msra.mxu0 0.0
        %6039 = vmatprep.subr.mxu0 0.0
        %6040 = vmatpush2.msra.mxu0 0.0
        %6041 = vmatprep.subr.mxu0 0.0
        %6042 = vmatpush2.msra.mxu0 0.0
        %6043 = vmatprep.subr.mxu0 0.0
        %6044 = vmatpush2.msra.mxu0 0.0
        %6045 = vmatprep.subr.mxu0 0.0
        %6046 = vmatpush2.msra.mxu0 0.0
        %6047 = vmatprep.subr.mxu0 0.0
        %6048 = vmatpush2.msra.mxu0 0.0
        %6049 = vmatprep.subr.mxu0 0.0
        %6050 = vmatpush2.msra.mxu0 0.0
        %6051 = vmatprep.subr.mxu0 0.0
        %6052 = vmatpush2.msra.mxu0 0.0
        %6053 = vmatprep.subr.mxu0 0.0
        %6054 = vmatpush2.msra.mxu0 0.0
        %6055 = vmatprep.subr.mxu0 0.0
        %6056 = vmatpush2.msra.mxu0 0.0
        %6057 = vmatprep.subr.mxu0 0.0
        %6058 = vmatpush2.msra.mxu0 0.0
        %6059 = vmatprep.subr.mxu0 0.0
        %6060 = vmatpush2.msra.mxu0 0.0
        %6061 = vmatprep.subr.mxu0 0.0
        %6062 = vmatpush2.msra.mxu0 0.0
        %6063 = vmatprep.subr.mxu0 0.0
        %6064 = vmatpush2.msra.mxu0 0.0
        %6065 = vmatprep.mubr.f32.mxu0 0.0
        %6066 = vmatmul.mubr.f32.gmra.mxu0 %v5928
        %v6067 = vpop.f32.mrf.mxu0
        %v6068 = vadd.f32 %v5926, %v6067
        %v6069 = vpop.f32.mrf.mxu0
        %v6070 = vadd.f32 %v5926, %v6069
        %6071 = vdwg.mxu0
        %6072 = vmatprep.subr.mxu0 0.0
        %6073 = vmatpush1.msra.mxu0 0.0
        %6074 = vmatprep.subr.mxu0 0.0
        %6075 = vmatpush1.msra.mxu0 0.0
        %6076 = vmatprep.subr.mxu0 0.0
        %6077 = vmatpush1.msra.mxu0 0.0
        %6078 = vmatprep.subr.mxu0 0.0
        %6079 = vmatpush1.msra.mxu0 0.0
        %6080 = vmatprep.subr.mxu0 0.0
        %6081 = vmatpush1.msra.mxu0 0.0
        %6082 = vmatprep.subr.mxu0 0.0
        %6083 = vmatpush1.msra.mxu0 0.0
        %6084 = vmatprep.subr.mxu0 0.0
        %6085 = vmatpush1.msra.mxu0 0.0
        %6086 = vmatprep.subr.mxu0 0.0
        %6087 = vmatpush1.msra.mxu0 0.0
        %6088 = vmatprep.subr.mxu0 %v5913
        %6089 = vmatpush1.msra.mxu0 %v5912
        %6090 = vmatprep.subr.mxu0 %v5905
        %6091 = vmatpush1.msra.mxu0 %v5904
        %6092 = vmatprep.subr.mxu0 %v5897
        %6093 = vmatpush1.msra.mxu0 %v5896
        %6094 = vmatprep.subr.mxu0 %v5889
        %6095 = vmatpush1.msra.mxu0 %v5888
        %6096 = vmatprep.subr.mxu0 %v5881
        %6097 = vmatpush1.msra.mxu0 %v5880
        %6098 = vmatprep.subr.mxu0 %v5873
        %6099 = vmatpush1.msra.mxu0 %v5872
        %6100 = vmatprep.subr.mxu0 %v5865
        %6101 = vmatpush1.msra.mxu0 %v5864
        %6102 = vmatprep.subr.mxu0 %v5857
        %6103 = vmatpush1.msra.mxu0 %v5856
        %6104 = vmatprep.subr.mxu0 0.0
        %6105 = vmatpush2.msra.mxu0 0.0
        %6106 = vmatprep.subr.mxu0 0.0
        %6107 = vmatpush2.msra.mxu0 0.0
        %6108 = vmatprep.subr.mxu0 0.0
        %6109 = vmatpush2.msra.mxu0 0.0
        %6110 = vmatprep.subr.mxu0 0.0
        %6111 = vmatpush2.msra.mxu0 0.0
        %6112 = vmatprep.subr.mxu0 0.0
        %6113 = vmatpush2.msra.mxu0 0.0
        %6114 = vmatprep.subr.mxu0 0.0
        %6115 = vmatpush2.msra.mxu0 0.0
        %6116 = vmatprep.subr.mxu0 0.0
        %6117 = vmatpush2.msra.mxu0 0.0
        %6118 = vmatprep.subr.mxu0 0.0
        %6119 = vmatpush2.msra.mxu0 0.0
        %6120 = vmatprep.subr.mxu0 0.0
        %6121 = vmatpush2.msra.mxu0 0.0
        %6122 = vmatprep.subr.mxu0 0.0
        %6123 = vmatpush2.msra.mxu0 0.0
        %6124 = vmatprep.subr.mxu0 0.0
        %6125 = vmatpush2.msra.mxu0 0.0
        %6126 = vmatprep.subr.mxu0 0.0
        %6127 = vmatpush2.msra.mxu0 0.0
        %6128 = vmatprep.subr.mxu0 0.0
        %6129 = vmatpush2.msra.mxu0 0.0
        %6130 = vmatprep.subr.mxu0 0.0
        %6131 = vmatpush2.msra.mxu0 0.0
        %6132 = vmatprep.subr.mxu0 0.0
        %6133 = vmatpush2.msra.mxu0 0.0
        %6134 = vmatprep.subr.mxu0 0.0
        %6135 = vmatpush2.msra.mxu0 0.0
        %6136 = vmatprep.mubr.f32.mxu0 0.0
        %6137 = vmatmul.mubr.f32.gmra.mxu0 %v5928
        %v6138 = vpop.f32.mrf.mxu0
        %v6139 = vadd.f32 %v5926, %v6138
        %v6140 = vpop.f32.mrf.mxu0
        %v6141 = vadd.f32 %v5926, %v6140
        %6142 = vdwg.mxu0
        %6143 = vmatprep.subr.mxu0 0.0
        %6144 = vmatpush1.msra.mxu0 0.0
        %6145 = vmatprep.subr.mxu0 0.0
        %6146 = vmatpush1.msra.mxu0 0.0
        %6147 = vmatprep.subr.mxu0 0.0
        %6148 = vmatpush1.msra.mxu0 0.0
        %6149 = vmatprep.subr.mxu0 0.0
        %6150 = vmatpush1.msra.mxu0 0.0
        %6151 = vmatprep.subr.mxu0 0.0
        %6152 = vmatpush1.msra.mxu0 0.0
        %6153 = vmatprep.subr.mxu0 0.0
        %6154 = vmatpush1.msra.mxu0 0.0
        %6155 = vmatprep.subr.mxu0 0.0
        %6156 = vmatpush1.msra.mxu0 0.0
        %6157 = vmatprep.subr.mxu0 0.0
        %6158 = vmatpush1.msra.mxu0 0.0
        %6159 = vmatprep.subr.mxu0 %v5915
        %6160 = vmatpush1.msra.mxu0 %v5914
        %6161 = vmatprep.subr.mxu0 %v5907
        %6162 = vmatpush1.msra.mxu0 %v5906
        %6163 = vmatprep.subr.mxu0 %v5899
        %6164 = vmatpush1.msra.mxu0 %v5898
        %6165 = vmatprep.subr.mxu0 %v5891
        %6166 = vmatpush1.msra.mxu0 %v5890
        %6167 = vmatprep.subr.mxu0 %v5883
        %6168 = vmatpush1.msra.mxu0 %v5882
        %6169 = vmatprep.subr.mxu0 %v5875
        %6170 = vmatpush1.msra.mxu0 %v5874
        %6171 = vmatprep.subr.mxu0 %v5867
        %6172 = vmatpush1.msra.mxu0 %v5866
        %6173 = vmatprep.subr.mxu0 %v5859
        %6174 = vmatpush1.msra.mxu0 %v5858
        %6175 = vmatprep.subr.mxu0 0.0
        %6176 = vmatpush2.msra.mxu0 0.0
        %6177 = vmatprep.subr.mxu0 0.0
        %6178 = vmatpush2.msra.mxu0 0.0
        %6179 = vmatprep.subr.mxu0 0.0
        %6180 = vmatpush2.msra.mxu0 0.0
        %6181 = vmatprep.subr.mxu0 0.0
        %6182 = vmatpush2.msra.mxu0 0.0
        %6183 = vmatprep.subr.mxu0 0.0
        %6184 = vmatpush2.msra.mxu0 0.0
        %6185 = vmatprep.subr.mxu0 0.0
        %6186 = vmatpush2.msra.mxu0 0.0
        %6187 = vmatprep.subr.mxu0 0.0
        %6188 = vmatpush2.msra.mxu0 0.0
        %6189 = vmatprep.subr.mxu0 0.0
        %6190 = vmatpush2.msra.mxu0 0.0
        %6191 = vmatprep.subr.mxu0 0.0
        %6192 = vmatpush2.msra.mxu0 0.0
        %6193 = vmatprep.subr.mxu0 0.0
        %6194 = vmatpush2.msra.mxu0 0.0
        %6195 = vmatprep.subr.mxu0 0.0
        %6196 = vmatpush2.msra.mxu0 0.0
        %6197 = vmatprep.subr.mxu0 0.0
        %6198 = vmatpush2.msra.mxu0 0.0
        %6199 = vmatprep.subr.mxu0 0.0
        %6200 = vmatpush2.msra.mxu0 0.0
        %6201 = vmatprep.subr.mxu0 0.0
        %6202 = vmatpush2.msra.mxu0 0.0
        %6203 = vmatprep.subr.mxu0 0.0
        %6204 = vmatpush2.msra.mxu0 0.0
        %6205 = vmatprep.subr.mxu0 0.0
        %6206 = vmatpush2.msra.mxu0 0.0
        %6207 = vmatprep.mubr.f32.mxu0 0.0
        %6208 = vmatmul.mubr.f32.gmra.mxu0 %v5928
        %v6209 = vpop.f32.mrf.mxu0
        %v6210 = vadd.f32 %v5926, %v6209
        %v6211 = vpop.f32.mrf.mxu0
        %v6212 = vadd.f32 %v5926, %v6211
        %6213 = vdwg.mxu0
        %v6222 = vcombine.low %v5997, %v5999
        %v6223 = vcombine.low %v6068, %v6070
        %v6224 = vcombine.low %v6139, %v6141
        %v6225 = vcombine.low %v6210, %v6212
        %v6227 = vunpack.c.l.s4 1966171168
        %v6228 = vunpack.c.0.s8 %v6227
        %v6229 = vlaneseq
        %v6230 = vshrl.u32 %v6229, 7
        %v6231 = vsub.s32 %v6228, %v6230
        %v6232 = vrot.slane %v6222, %v6231
        %v6234 = vunpack.c.l.s4 1966171168
        %v6235 = vunpack.c.0.s8 %v6234
        %v6236 = vlaneseq
        %v6237 = vshrl.u32 %v6236, 7
        %v6238 = vsub.s32 %v6235, %v6237
        %v6239 = vrot.slane %v6223, %v6238
        %v6241 = vunpack.c.l.s4 1966171168
        %v6242 = vunpack.c.0.s8 %v6241
        %v6243 = vlaneseq
        %v6244 = vshrl.u32 %v6243, 7
        %v6245 = vsub.s32 %v6242, %v6244
        %v6246 = vrot.slane %v6224, %v6245
        %v6248 = vunpack.c.l.s4 1966171168
        %v6249 = vunpack.c.0.s8 %v6248
        %v6250 = vlaneseq
        %v6251 = vshrl.u32 %v6250, 7
        %v6252 = vsub.s32 %v6249, %v6251
        %v6253 = vrot.slane %v6225, %v6252
        %v6254 = vcombine.low %v6232, %v6239
        %v6255 = vcombine.low %v6246, %v6253
        %v6257 = vunpack.c.l.s4 1966171168
        %v6258 = vunpack.c.0.s8 %v6257
        %v6259 = vlaneseq
        %v6260 = vshrl.u32 %v6259, 7
        %v6261 = vsub.s32 %v6258, %v6260
        %v6262 = vrot.slane %v6254, %v6261
        %v6264 = vunpack.c.l.s4 1966171168
        %v6265 = vunpack.c.0.s8 %v6264
        %v6266 = vlaneseq
        %v6267 = vshrl.u32 %v6266, 7
        %v6268 = vsub.s32 %v6265, %v6267
        %v6269 = vrot.slane %v6255, %v6268
        %v6270 = vcombine.low %v6262, %v6269
        %6272 = vst [vmem:[%s436] sm:$0xff] %v6270
        %s6273 = sand.u32 %s315, 1
        %s6274 = scalar_lea.sflag [#allocation4], %s6273
        %s6275 = sand.u32 %s315, 1
        %s6276 = smul.addr %s6275, 8
        %s6277 = scalar_lea.vmem [#allocation3], %s6276
        // Predicated region
        $region73: #{wrap_mononphm_forward.1} parent=71 // pred_check
          %p6278 = pneg %p325
        $region74: #{wrap_mononphm_forward.1} parent=71 // pred_check_branch
          %6280 = sbr.rel (%p6278) target = $region76
        $region75: #{wrap_mononphm_forward.1} parent=71 // pred_region
          %s6281 = smul.u32 8, %s29
          %s6283 = ssub.s32 128, 128
          %6284 = vsyncadd %s6274, %s6283
          %s6285 = smul.addr %s6281, 16
          %s6286 = scalar_lea.hbm %s13, %s6285
          %s6288 = sshll.u32 %s6277, 4
          %s6289 = int_to_ptr.vmem [resolvable:$true] %s6288
          %6291 = dma.vmem_to_hbm [thread:$0]  %s6289, 128, %s6286, %s6274
        $region76: #{wrap_mononphm_forward.1} parent=71 // pred_fallthru
          _
      $region72: #{wrap_mononphm_forward.1} parent=5 // pred_fallthru
        _
      %p6292 = scmp.le.s32.totalorder 2, %s24
      // Predicated region
      $region77: #{wrap_mononphm_forward.1} parent=5 // pred_check
        %p6293 = pneg %p6292
      $region78: #{wrap_mononphm_forward.1} parent=5 // pred_check_branch
        %6295 = sbr.rel (%p6293) target = $region80
      $region79: #{wrap_mononphm_forward.1} parent=5 // pred_region
        %s6296 = ssub.s32 %s24, 2
        // Predicated region
        $region81: #{wrap_mononphm_forward.1} parent=79 // pred_check
          %p6297 = pneg %p331
        $region82: #{wrap_mononphm_forward.1} parent=79 // pred_check_branch
          %6299 = sbr.rel (%p6297) target = $region84
        $region83: #{wrap_mononphm_forward.1} parent=79 // pred_region
          %s6300 = sand.u32 %s316, 1
          %s6301 = scalar_lea.sflag [#allocation4], %s6300
          %s6302 = sand.u32 %s316, 1
          %s6303 = smul.addr %s6302, 8
          %s6304 = scalar_lea.vmem [#allocation3], %s6303
          %6305 = dma.done %s6301, 128
        $region84: #{wrap_mononphm_forward.1} parent=79 // pred_fallthru
          _
      $region80: #{wrap_mononphm_forward.1} parent=5 // pred_fallthru
        _
    $region6: #{wrap_mononphm_forward.1} parent=1 // loop_footer
      %s28 = sadd.s32 1, %s24
    $region7: #{wrap_mononphm_forward.1} parent=1 // loop_footer_branch
      %23 = sbr.rel target = $region3
    $region8: #{wrap_mononphm_forward.1} parent=1 // loop_exit
      _
    %6306 = vsyncpa [#allocation4], 1
    %s6307 = scalar_lea.sflag [#allocation4], 1
    %6308 = vsyncpa %s6307, 1

</llo_original>
